<compile_context>
chip_gen: v7x
topology: tpu7x:2x2x1
jax: 0.10.0
libtpu: 0.0.40
codegen_flags: <defaults>
</compile_context>

<pallas_src>
import jax
import jax.numpy as jnp
from jax import lax
from jax.experimental import pallas as pl
from jax.experimental.pallas import tpu as pltpu

_CONV_DTYPE = jnp.bfloat16
_BN_EPS = 1e-5


# --------------------------------------------------------------------------------------
# In-kernel helpers
# --------------------------------------------------------------------------------------
def _conv3x3_shift_relu(pad_ref, w_ref, shift_ref, H, W):
    """3x3 'same' conv from a zero-padded (H+2, W+2, C) VMEM scratch.

    The three dx shifts are hoisted out of the tap loop and concatenated along the lane
    axis once, so the inner loop is 3 MXU matmuls with K = 3*C; dy slicing happens along
    the leading (untiled) axis and is free.  Returns ReLU(conv + shift) as (H*W, Co) f32.
    """
    C = pad_ref.shape[-1]
    cols = jnp.concatenate([pad_ref[:, dx:dx + W, :] for dx in range(3)], axis=-1)
    acc = None
    for dy in range(3):
        tap = cols[dy:dy + H].reshape(H * W, 3 * C)
        part = jnp.dot(tap, w_ref[dy], preferred_element_type=jnp.float32)
        acc = part if acc is None else acc + part
    return jnp.maximum(acc + shift_ref[...], 0.0)


def _unet_encoder_kernel(x_ref, w1_ref, b1_ref, w2_ref, b2_ref, o_ref,
                         pad1_ref, pad2_ref):
    # x_ref : (H, W, Cin)          bf16  (channels on lanes)
    # w1_ref: (3, 3*Cin, Cm)       bf16  tap dy -> (dx*Cin + c, o), BN scale folded in
    # b1_ref: (1, Cm)              f32   folded BN shift
    # w2_ref: (3, 3*Cm, Cout)      bf16
    # b2_ref: (1, Cout)            f32
    # o_ref : (Hp, Wp, Cout)       output dtype (pooled)
    # pad1_ref: (H+2, W+2, Cin)    bf16 VMEM scratch (zero-padded conv1 input)
    # pad2_ref: (H+2, W+2, Cm)     bf16 VMEM scratch (zero-padded conv2 input)
    H, W, _ = x_ref.shape
    Cm = w1_ref.shape[-1]
    Cout = w2_ref.shape[-1]

    def fill_pad(pad_ref, interior):
        # Zero only the four 1-element border strips; the interior is overwritten below.
        C = pad_ref.shape[-1]
        zrow = jnp.zeros((1, W + 2, C), _CONV_DTYPE)
        pad_ref[0:1, :, :] = zrow
        pad_ref[H + 1:H + 2, :, :] = zrow
        zcol = jnp.zeros((H + 2, 1, C), _CONV_DTYPE)
        pad_ref[:, 0:1, :] = zcol
        pad_ref[:, W + 1:W + 2, :] = zcol
        pad_ref[1:H + 1, 1:W + 1, :] = interior.astype(_CONV_DTYPE)

    # ---------------- conv1 (+folded-BN shift) + ReLU ----------------
    fill_pad(pad1_ref, x_ref[...])
    h = _conv3x3_shift_relu(pad1_ref, w1_ref, b1_ref, H, W)              # (H*W, Cm) f32

    # ---------------- conv2 (+folded-BN shift) + ReLU ----------------
    fill_pad(pad2_ref, h.reshape(H, W, Cm))
    y = _conv3x3_shift_relu(pad2_ref, w2_ref, b2_ref, H, W).reshape(H, W, Cout)

    # ---------------- MaxPool2d(2, stride=2, ceil_mode=True) ----------------
    # ReLU output >= 0, so zero padding of a trailing odd row/col equals -inf padding.
    # These branches are static and not generated for even H/W.
    if H % 2:
        y = jnp.concatenate([y, jnp.zeros((1, W, Cout), jnp.float32)], axis=0)
    if W % 2:
        y = jnp.concatenate([y, jnp.zeros((y.shape[0], 1, Cout), jnp.float32)], axis=1)
    Hp, Wp = y.shape[0] // 2, y.shape[1] // 2

    y4 = y.reshape(Hp, 2, 2 * Wp, Cout)                   # leading-axis split: free
    rmax = jnp.maximum(y4[:, 0], y4[:, 1])                # row pool     (Hp, 2*Wp, Cout)
    pooled = jnp.max(rmax.reshape(Hp, Wp, 2, Cout), axis=2)  # column pool (Hp, Wp, Cout)
    o_ref[...] = pooled.astype(o_ref.dtype)


# --------------------------------------------------------------------------------------
# Host-side wrappers
# --------------------------------------------------------------------------------------
def _fold_bn_into_weights(w, gamma, var, eps=_BN_EPS):
    scale = gamma / jnp.sqrt(var + eps)
    return w * scale[:, None, None, None], scale


def _pack_conv_weights(w):
    """(O, I, 3, 3) OIHW -> (3[dy], 3[dx]*I, O) matching the kernel's tap layout."""
    o, i = w.shape[0], w.shape[1]
    return jnp.transpose(w, (2, 3, 1, 0)).reshape(3, 3 * i, o)


@jax.jit
def unet_encoder_forward_nhwc(x_nhwc, params):
    """Fused _UNetEncoder forward, NHWC in / NHWC out (no layout transposes)."""
    N, H, W, Cin = x_nhwc.shape
    w1, w2 = params['w1'], params['w2']
    Cm, Cout = w1.shape[0], w2.shape[0]
    Hp, Wp = -(-H // 2), -(-W // 2)                       # ceil_mode pooled size

    # Eval-mode BatchNorm folded: scale into conv weights, shift kept for the kernel.
    w1f, sc1 = _fold_bn_into_weights(w1, params['g1'], params['v1'])
    w2f, sc2 = _fold_bn_into_weights(w2, params['g2'], params['v2'])
    sh1 = (params['b1'] - params['m1'] * sc1).reshape(1, Cm).astype(jnp.float32)
    sh2 = (params['b2'] - params['m2'] * sc2).reshape(1, Cout).astype(jnp.float32)
    w1_k = _pack_conv_weights(w1f).astype(_CONV_DTYPE)
    w2_k = _pack_conv_weights(w2f).astype(_CONV_DTYPE)

    # Rough per-step VMEM footprint: pad scratches + double-buffered in/out blocks +
    # weights + dx-concatenated taps + f32 accumulators.
    bpe = 2  # bf16
    fp = ((H + 2) * (W + 2) * (Cin + Cm) * bpe
          + 2 * H * W * Cin * bpe + 2 * Hp * Wp * Cout * 4
          + 2 * 9 * (Cin * Cm + Cm * Cout) * bpe
          + H * W * (3 * Cin + 3 * Cm) * bpe
          + 2 * H * W * (Cm + Cout) * 4)
    vmem_limit = int(min(max(4 * fp, 32 << 20), 96 << 20))

    out = pl.pallas_call(
        _unet_encoder_kernel,
        out_shape=jax.ShapeDtypeStruct((N, Hp, Wp, Cout), x_nhwc.dtype),
        grid=(N,),
        in_specs=[
            pl.BlockSpec((pl.Squeezed(), H, W, Cin), lambda n: (n, 0, 0, 0)),
            pl.BlockSpec((3, 3 * Cin, Cm), lambda n: (0, 0, 0)),
            pl.BlockSpec((1, Cm), lambda n: (0, 0)),
            pl.BlockSpec((3, 3 * Cm, Cout), lambda n: (0, 0, 0)),
            pl.BlockSpec((1, Cout), lambda n: (0, 0)),
        ],
        out_specs=pl.BlockSpec((pl.Squeezed(), Hp, Wp, Cout), lambda n: (n, 0, 0, 0)),
        scratch_shapes=[
            pltpu.VMEM((H + 2, W + 2, Cin), _CONV_DTYPE),
            pltpu.VMEM((H + 2, W + 2, Cm), _CONV_DTYPE),
        ],
        compiler_params=pltpu.CompilerParams(
            dimension_semantics=("parallel",),
            vmem_limit_bytes=vmem_limit),
    )(x_nhwc.astype(_CONV_DTYPE), w1_k, sh1, w2_k, sh2)
    return out


@jax.jit
def unet_encoder_forward(x_nchw, params):
    """NCHW-in / NCHW-out wrapper matching the PyTorch module interface.
    (Prefer unet_encoder_forward_nhwc across a whole network so activations stay NHWC
    and avoid HBM round-trip transposes around every encoder block.)"""
    x_nhwc = jnp.transpose(x_nchw, (0, 2, 3, 1))
    out = unet_encoder_forward_nhwc(x_nhwc, params)
    return jnp.transpose(out, (0, 3, 1, 2))


# --------------------------------------------------------------------------------------
# Module wrapper mirroring _UNetEncoder
# --------------------------------------------------------------------------------------
class UNetEncoderPallas:
    def __init__(self, in_channels, out_channels, key):
        # TODO(synk): original module uses `inner_channels` before defining it (spec bug);
        #             out_channels // 2 is the intended value and is used here.
        inner = out_channels // 2
        ks = jax.random.split(key, 10)
        self.params = {
            'w1': 0.2 * jax.random.normal(ks[0], (inner, in_channels, 3, 3), jnp.float32),
            'g1': 1.0 + 0.1 * jax.random.normal(ks[1], (inner,), jnp.float32),
            'b1': 0.1 * jax.random.normal(ks[2], (inner,), jnp.float32),
            'm1': 0.1 * jax.random.normal(ks[3], (inner,), jnp.float32),
            'v1': jax.random.uniform(ks[4], (inner,), jnp.float32, 0.5, 1.5),
            'w2': 0.2 * jax.random.normal(ks[5], (out_channels, inner, 3, 3), jnp.float32),
            'g2': 1.0 + 0.1 * jax.random.normal(ks[6], (out_channels,), jnp.float32),
            'b2': 0.1 * jax.random.normal(ks[7], (out_channels,), jnp.float32),
            'm2': 0.1 * jax.random.normal(ks[8], (out_channels,), jnp.float32),
            'v2': jax.random.uniform(ks[9], (out_channels,), jnp.float32, 0.5, 1.5),
        }

    def __call__(self, x):
        return unet_encoder_forward(x, self.params)


# --------------------------------------------------------------------------------------
# Independent reference (pure lax) -- same eval-mode BN folding and bf16 quantization
# points as the kernel (weights-after-folding, input, and inter-layer activation are
# rounded to bf16; products/accumulation in f32), so only summation-order noise remains.
# --------------------------------------------------------------------------------------
def unet_encoder_ref(x, p, eps=_BN_EPS):
    def q(a):
        return a.astype(jnp.bfloat16).astype(jnp.float32)

    def conv(z, w):
        return lax.conv_general_dilated(
            q(z), q(w), (1, 1), [(1, 1), (1, 1)],
            dimension_numbers=('NCHW', 'OIHW', 'NCHW'),
            precision=lax.Precision.HIGHEST)

    sc1 = p['g1'] / jnp.sqrt(p['v1'] + eps)
    sh1 = p['b1'] - p['m1'] * sc1
    sc2 = p['g2'] / jnp.sqrt(p['v2'] + eps)
    sh2 = p['b2'] - p['m2'] * sc2

    h = jax.nn.relu(conv(x, p['w1'] * sc1[:, None, None, None]) + sh1[None, :, None, None])
    y = jax.nn.relu(conv(h, p['w2'] * sc2[:, None, None, None]) + sh2[None, :, None, None])

    # MaxPool2d(2, ceil_mode=True)
    _, _, H, W = y.shape
    ph, pw = (-H) % 2, (-W) % 2
    y = jnp.pad(y, ((0, 0), (0, 0), (0, ph), (0, pw)), constant_values=-jnp.inf)
    return lax.reduce_window(y, -jnp.inf, lax.max,
                             (1, 1, 2, 2), (1, 1, 2, 2), 'VALID')


if __name__ == "__main__":
    key = jax.random.PRNGKey(0)
    kx, kp = jax.random.split(key)

    N, Cin, H, W = 2, 4, 16, 16
    out_channels = 32
    x = jax.random.normal(kx, (N, Cin, H, W), jnp.float32)

    model = UNetEncoderPallas(Cin, out_channels, kp)
    y = model(x)
    y = jax.block_until_ready(y)

    assert y.shape == (N, out_channels, H // 2, W // 2), y.shape
    y_ref = unet_encoder_ref(x, model.params)
    err = float(jnp.max(jnp.abs(y - y_ref)))
    assert jnp.allclose(y, y_ref, rtol=5e-3, atol=5e-3), err

    print("KERNEL_OK")
</pallas_src>

<mosaic_0001>
module attributes {stable_mosaic.version = 11 : i64} {
  func.func @_unet_encoder_kernel(%arg0: i32, %arg1: memref<1x16x16x4xbf16, #tpu.memory_space<vmem>>, %arg2: memref<3x12x16xbf16, #tpu.memory_space<vmem>>, %arg3: memref<1x16xf32, #tpu.memory_space<vmem>>, %arg4: memref<3x48x32xbf16, #tpu.memory_space<vmem>>, %arg5: memref<1x32xf32, #tpu.memory_space<vmem>>, %arg6: memref<1x8x8x32xf32, #tpu.memory_space<vmem>>, %arg7: memref<18x18x4xbf16, #tpu.memory_space<vmem>>, %arg8: memref<18x18x16xbf16, #tpu.memory_space<vmem>>) attributes {dimension_semantics = [#tpu.dimension_semantics<parallel>], iteration_bounds = array<i64: 2>, scalar_prefetch = 0 : i64, scratch_operands = 2 : i64, tpu.core_type = #tpu.core_type<tc>, window_params = [{transform_indices = @transform_0, window_bounds = array<i64: 1, 16, 16, 4>}, {pipeline_mode = #tpu.pipeline_mode<synchronous>, transform_indices = @transform_1, window_bounds = array<i64: 3, 12, 16>}, {pipeline_mode = #tpu.pipeline_mode<synchronous>, transform_indices = @transform_2, window_bounds = array<i64: 1, 16>}, {pipeline_mode = #tpu.pipeline_mode<synchronous>, transform_indices = @transform_3, window_bounds = array<i64: 3, 48, 32>}, {pipeline_mode = #tpu.pipeline_mode<synchronous>, transform_indices = @transform_4, window_bounds = array<i64: 1, 32>}, {transform_indices = @transform_5, window_bounds = array<i64: 1, 8, 8, 32>}]} {
    %c0 = arith.constant 0 : index
    %c0_0 = arith.constant 0 : index
    %c0_1 = arith.constant 0 : index
    %c0_2 = arith.constant 0 : index
    %0 = vector.load %arg1[%c0, %c0_0, %c0_1, %c0_2] : memref<1x16x16x4xbf16, #tpu.memory_space<vmem>>, vector<1x16x16x4xbf16>
    %1 = vector.shape_cast %0 : vector<1x16x16x4xbf16> to vector<16x16x4xbf16>
    %cst = arith.constant 0.000000e+00 : bf16
    %2 = vector.broadcast %cst : bf16 to vector<1x18x4xbf16>
    %c0_3 = arith.constant 0 : index
    %c0_4 = arith.constant 0 : index
    %c0_5 = arith.constant 0 : index
    %3 = vector.load %arg7[%c0_3, %c0_4, %c0_5] : memref<18x18x4xbf16, #tpu.memory_space<vmem>>, vector<1x18x4xbf16>
    tpu.vector_store %arg7[%c0_3, %c0_4, %c0_5], %2 {strides = array<i32>} : memref<18x18x4xbf16, #tpu.memory_space<vmem>>, vector<1x18x4xbf16>,
    %c17 = arith.constant 17 : index
    %c0_6 = arith.constant 0 : index
    %c0_7 = arith.constant 0 : index
    %4 = vector.load %arg7[%c17, %c0_6, %c0_7] : memref<18x18x4xbf16, #tpu.memory_space<vmem>>, vector<1x18x4xbf16>
    tpu.vector_store %arg7[%c17, %c0_6, %c0_7], %2 {strides = array<i32>} : memref<18x18x4xbf16, #tpu.memory_space<vmem>>, vector<1x18x4xbf16>,
    %cst_8 = arith.constant 0.000000e+00 : bf16
    %5 = vector.broadcast %cst_8 : bf16 to vector<18x1x4xbf16>
    %c0_9 = arith.constant 0 : index
    %c0_10 = arith.constant 0 : index
    %c0_11 = arith.constant 0 : index
    %6 = vector.load %arg7[%c0_9, %c0_10, %c0_11] : memref<18x18x4xbf16, #tpu.memory_space<vmem>>, vector<18x1x4xbf16>
    tpu.vector_store %arg7[%c0_9, %c0_10, %c0_11], %5 {strides = array<i32>} : memref<18x18x4xbf16, #tpu.memory_space<vmem>>, vector<18x1x4xbf16>,
    %c0_12 = arith.constant 0 : index
    %c17_13 = arith.constant 17 : index
    %c0_14 = arith.constant 0 : index
    %7 = vector.load %arg7[%c0_12, %c17_13, %c0_14] : memref<18x18x4xbf16, #tpu.memory_space<vmem>>, vector<18x1x4xbf16>
    tpu.vector_store %arg7[%c0_12, %c17_13, %c0_14], %5 {strides = array<i32>} : memref<18x18x4xbf16, #tpu.memory_space<vmem>>, vector<18x1x4xbf16>,
    %c1 = arith.constant 1 : index
    %c1_15 = arith.constant 1 : index
    %c0_16 = arith.constant 0 : index
    %8 = vector.load %arg7[%c1, %c1_15, %c0_16] : memref<18x18x4xbf16, #tpu.memory_space<vmem>>, vector<16x16x4xbf16>
    tpu.vector_store %arg7[%c1, %c1_15, %c0_16], %1 {strides = array<i32>} : memref<18x18x4xbf16, #tpu.memory_space<vmem>>, vector<16x16x4xbf16>,
    %c0_17 = arith.constant 0 : index
    %c0_18 = arith.constant 0 : index
    %c0_19 = arith.constant 0 : index
    %9 = vector.load %arg7[%c0_17, %c0_18, %c0_19] : memref<18x18x4xbf16, #tpu.memory_space<vmem>>, vector<18x16x4xbf16>
    %c0_20 = arith.constant 0 : index
    %c1_21 = arith.constant 1 : index
    %c0_22 = arith.constant 0 : index
    %10 = vector.load %arg7[%c0_20, %c1_21, %c0_22] : memref<18x18x4xbf16, #tpu.memory_space<vmem>>, vector<18x16x4xbf16>
    %c0_23 = arith.constant 0 : index
    %c2 = arith.constant 2 : index
    %c0_24 = arith.constant 0 : index
    %11 = vector.load %arg7[%c0_23, %c2, %c0_24] : memref<18x18x4xbf16, #tpu.memory_space<vmem>>, vector<18x16x4xbf16>
    %12 = tpu.concatenate %9, %10, %11 in 2 : vector<18x16x4xbf16>, vector<18x16x4xbf16>, vector<18x16x4xbf16> -> vector<18x16x12xbf16>
    %13 = vector.extract_strided_slice %12 {offsets = [0, 0, 0], sizes = [16, 16, 12], strides = [1, 1, 1]} : vector<18x16x12xbf16> to vector<16x16x12xbf16>
    %14 = vector.shape_cast %13 : vector<16x16x12xbf16> to vector<256x12xbf16>
    %c0_25 = arith.constant 0 : index
    %c0_26 = arith.constant 0 : index
    %c0_27 = arith.constant 0 : index
    %15 = vector.load %arg2[%c0_25, %c0_26, %c0_27] : memref<3x12x16xbf16, #tpu.memory_space<vmem>>, vector<1x12x16xbf16>
    %16 = vector.shape_cast %15 : vector<1x12x16xbf16> to vector<12x16xbf16>
    %cst_28 = arith.constant dense<0.000000e+00> : vector<256x16xf32>
    %17 = tpu.matmul %14, %16, %cst_28 {dimension_numbers = #tpu.dot_dimension_numbers<[1], [0], [0], [1], [0, 0, 1, 1], [], []>} : vector<256x12xbf16>, vector<12x16xbf16>, vector<256x16xf32> -> vector<256x16xf32>
    %18 = vector.extract_strided_slice %12 {offsets = [1, 0, 0], sizes = [16, 16, 12], strides = [1, 1, 1]} : vector<18x16x12xbf16> to vector<16x16x12xbf16>
    %19 = vector.shape_cast %18 : vector<16x16x12xbf16> to vector<256x12xbf16>
    %c1_29 = arith.constant 1 : index
    %c0_30 = arith.constant 0 : index
    %c0_31 = arith.constant 0 : index
    %20 = vector.load %arg2[%c1_29, %c0_30, %c0_31] : memref<3x12x16xbf16, #tpu.memory_space<vmem>>, vector<1x12x16xbf16>
    %21 = vector.shape_cast %20 : vector<1x12x16xbf16> to vector<12x16xbf16>
    %cst_32 = arith.constant dense<0.000000e+00> : vector<256x16xf32>
    %22 = tpu.matmul %19, %21, %cst_32 {dimension_numbers = #tpu.dot_dimension_numbers<[1], [0], [0], [1], [0, 0, 1, 1], [], []>} : vector<256x12xbf16>, vector<12x16xbf16>, vector<256x16xf32> -> vector<256x16xf32>
    %23 = arith.addf %17, %22 : vector<256x16xf32>
    %24 = vector.extract_strided_slice %12 {offsets = [2, 0, 0], sizes = [16, 16, 12], strides = [1, 1, 1]} : vector<18x16x12xbf16> to vector<16x16x12xbf16>
    %25 = vector.shape_cast %24 : vector<16x16x12xbf16> to vector<256x12xbf16>
    %c2_33 = arith.constant 2 : index
    %c0_34 = arith.constant 0 : index
    %c0_35 = arith.constant 0 : index
    %26 = vector.load %arg2[%c2_33, %c0_34, %c0_35] : memref<3x12x16xbf16, #tpu.memory_space<vmem>>, vector<1x12x16xbf16>
    %27 = vector.shape_cast %26 : vector<1x12x16xbf16> to vector<12x16xbf16>
    %cst_36 = arith.constant dense<0.000000e+00> : vector<256x16xf32>
    %28 = tpu.matmul %25, %27, %cst_36 {dimension_numbers = #tpu.dot_dimension_numbers<[1], [0], [0], [1], [0, 0, 1, 1], [], []>} : vector<256x12xbf16>, vector<12x16xbf16>, vector<256x16xf32> -> vector<256x16xf32>
    %29 = arith.addf %23, %28 : vector<256x16xf32>
    %c0_37 = arith.constant 0 : index
    %c0_38 = arith.constant 0 : index
    %30 = vector.load %arg3[%c0_37, %c0_38] : memref<1x16xf32, #tpu.memory_space<vmem>>, vector<1x16xf32>
    %31 = vector.broadcast %30 : vector<1x16xf32> to vector<256x16xf32>
    %32 = arith.addf %29, %31 : vector<256x16xf32>
    %cst_39 = arith.constant 0.000000e+00 : f32
    %33 = vector.broadcast %cst_39 : f32 to vector<256x16xf32>
    %34 = arith.maximumf %32, %33 : vector<256x16xf32>
    %35 = vector.shape_cast %34 : vector<256x16xf32> to vector<16x16x16xf32>
    %cst_40 = arith.constant 0.000000e+00 : bf16
    %36 = vector.broadcast %cst_40 : bf16 to vector<1x18x16xbf16>
    %c0_41 = arith.constant 0 : index
    %c0_42 = arith.constant 0 : index
    %c0_43 = arith.constant 0 : index
    %37 = vector.load %arg8[%c0_41, %c0_42, %c0_43] : memref<18x18x16xbf16, #tpu.memory_space<vmem>>, vector<1x18x16xbf16>
    tpu.vector_store %arg8[%c0_41, %c0_42, %c0_43], %36 {strides = array<i32>} : memref<18x18x16xbf16, #tpu.memory_space<vmem>>, vector<1x18x16xbf16>,
    %c17_44 = arith.constant 17 : index
    %c0_45 = arith.constant 0 : index
    %c0_46 = arith.constant 0 : index
    %38 = vector.load %arg8[%c17_44, %c0_45, %c0_46] : memref<18x18x16xbf16, #tpu.memory_space<vmem>>, vector<1x18x16xbf16>
    tpu.vector_store %arg8[%c17_44, %c0_45, %c0_46], %36 {strides = array<i32>} : memref<18x18x16xbf16, #tpu.memory_space<vmem>>, vector<1x18x16xbf16>,
    %cst_47 = arith.constant 0.000000e+00 : bf16
    %39 = vector.broadcast %cst_47 : bf16 to vector<18x1x16xbf16>
    %c0_48 = arith.constant 0 : index
    %c0_49 = arith.constant 0 : index
    %c0_50 = arith.constant 0 : index
    %40 = vector.load %arg8[%c0_48, %c0_49, %c0_50] : memref<18x18x16xbf16, #tpu.memory_space<vmem>>, vector<18x1x16xbf16>
    tpu.vector_store %arg8[%c0_48, %c0_49, %c0_50], %39 {strides = array<i32>} : memref<18x18x16xbf16, #tpu.memory_space<vmem>>, vector<18x1x16xbf16>,
    %c0_51 = arith.constant 0 : index
    %c17_52 = arith.constant 17 : index
    %c0_53 = arith.constant 0 : index
    %41 = vector.load %arg8[%c0_51, %c17_52, %c0_53] : memref<18x18x16xbf16, #tpu.memory_space<vmem>>, vector<18x1x16xbf16>
    tpu.vector_store %arg8[%c0_51, %c17_52, %c0_53], %39 {strides = array<i32>} : memref<18x18x16xbf16, #tpu.memory_space<vmem>>, vector<18x1x16xbf16>,
    %42 = arith.truncf %35 : vector<16x16x16xf32> to vector<16x16x16xbf16>
    %c1_54 = arith.constant 1 : index
    %c1_55 = arith.constant 1 : index
    %c0_56 = arith.constant 0 : index
    %43 = vector.load %arg8[%c1_54, %c1_55, %c0_56] : memref<18x18x16xbf16, #tpu.memory_space<vmem>>, vector<16x16x16xbf16>
    tpu.vector_store %arg8[%c1_54, %c1_55, %c0_56], %42 {strides = array<i32>} : memref<18x18x16xbf16, #tpu.memory_space<vmem>>, vector<16x16x16xbf16>,
    %c0_57 = arith.constant 0 : index
    %c0_58 = arith.constant 0 : index
    %c0_59 = arith.constant 0 : index
    %44 = vector.load %arg8[%c0_57, %c0_58, %c0_59] : memref<18x18x16xbf16, #tpu.memory_space<vmem>>, vector<18x16x16xbf16>
    %c0_60 = arith.constant 0 : index
    %c1_61 = arith.constant 1 : index
    %c0_62 = arith.constant 0 : index
    %45 = vector.load %arg8[%c0_60, %c1_61, %c0_62] : memref<18x18x16xbf16, #tpu.memory_space<vmem>>, vector<18x16x16xbf16>
    %c0_63 = arith.constant 0 : index
    %c2_64 = arith.constant 2 : index
    %c0_65 = arith.constant 0 : index
    %46 = vector.load %arg8[%c0_63, %c2_64, %c0_65] : memref<18x18x16xbf16, #tpu.memory_space<vmem>>, vector<18x16x16xbf16>
    %47 = tpu.concatenate %44, %45, %46 in 2 : vector<18x16x16xbf16>, vector<18x16x16xbf16>, vector<18x16x16xbf16> -> vector<18x16x48xbf16>
    %48 = vector.extract_strided_slice %47 {offsets = [0, 0, 0], sizes = [16, 16, 48], strides = [1, 1, 1]} : vector<18x16x48xbf16> to vector<16x16x48xbf16>
    %49 = vector.shape_cast %48 : vector<16x16x48xbf16> to vector<256x48xbf16>
    %c0_66 = arith.constant 0 : index
    %c0_67 = arith.constant 0 : index
    %c0_68 = arith.constant 0 : index
    %50 = vector.load %arg4[%c0_66, %c0_67, %c0_68] : memref<3x48x32xbf16, #tpu.memory_space<vmem>>, vector<1x48x32xbf16>
    %51 = vector.shape_cast %50 : vector<1x48x32xbf16> to vector<48x32xbf16>
    %cst_69 = arith.constant dense<0.000000e+00> : vector<256x32xf32>
    %52 = tpu.matmul %49, %51, %cst_69 {dimension_numbers = #tpu.dot_dimension_numbers<[1], [0], [0], [1], [0, 0, 1, 1], [], []>} : vector<256x48xbf16>, vector<48x32xbf16>, vector<256x32xf32> -> vector<256x32xf32>
    %53 = vector.extract_strided_slice %47 {offsets = [1, 0, 0], sizes = [16, 16, 48], strides = [1, 1, 1]} : vector<18x16x48xbf16> to vector<16x16x48xbf16>
    %54 = vector.shape_cast %53 : vector<16x16x48xbf16> to vector<256x48xbf16>
    %c1_70 = arith.constant 1 : index
    %c0_71 = arith.constant 0 : index
    %c0_72 = arith.constant 0 : index
    %55 = vector.load %arg4[%c1_70, %c0_71, %c0_72] : memref<3x48x32xbf16, #tpu.memory_space<vmem>>, vector<1x48x32xbf16>
    %56 = vector.shape_cast %55 : vector<1x48x32xbf16> to vector<48x32xbf16>
    %cst_73 = arith.constant dense<0.000000e+00> : vector<256x32xf32>
    %57 = tpu.matmul %54, %56, %cst_73 {dimension_numbers = #tpu.dot_dimension_numbers<[1], [0], [0], [1], [0, 0, 1, 1], [], []>} : vector<256x48xbf16>, vector<48x32xbf16>, vector<256x32xf32> -> vector<256x32xf32>
    %58 = arith.addf %52, %57 : vector<256x32xf32>
    %59 = vector.extract_strided_slice %47 {offsets = [2, 0, 0], sizes = [16, 16, 48], strides = [1, 1, 1]} : vector<18x16x48xbf16> to vector<16x16x48xbf16>
    %60 = vector.shape_cast %59 : vector<16x16x48xbf16> to vector<256x48xbf16>
    %c2_74 = arith.constant 2 : index
    %c0_75 = arith.constant 0 : index
    %c0_76 = arith.constant 0 : index
    %61 = vector.load %arg4[%c2_74, %c0_75, %c0_76] : memref<3x48x32xbf16, #tpu.memory_space<vmem>>, vector<1x48x32xbf16>
    %62 = vector.shape_cast %61 : vector<1x48x32xbf16> to vector<48x32xbf16>
    %cst_77 = arith.constant dense<0.000000e+00> : vector<256x32xf32>
    %63 = tpu.matmul %60, %62, %cst_77 {dimension_numbers = #tpu.dot_dimension_numbers<[1], [0], [0], [1], [0, 0, 1, 1], [], []>} : vector<256x48xbf16>, vector<48x32xbf16>, vector<256x32xf32> -> vector<256x32xf32>
    %64 = arith.addf %58, %63 : vector<256x32xf32>
    %c0_78 = arith.constant 0 : index
    %c0_79 = arith.constant 0 : index
    %65 = vector.load %arg5[%c0_78, %c0_79] : memref<1x32xf32, #tpu.memory_space<vmem>>, vector<1x32xf32>
    %66 = vector.broadcast %65 : vector<1x32xf32> to vector<256x32xf32>
    %67 = arith.addf %64, %66 : vector<256x32xf32>
    %cst_80 = arith.constant 0.000000e+00 : f32
    %68 = vector.broadcast %cst_80 : f32 to vector<256x32xf32>
    %69 = arith.maximumf %67, %68 : vector<256x32xf32>
    %70 = vector.shape_cast %69 : vector<256x32xf32> to vector<16x16x32xf32>
    %71 = vector.shape_cast %70 : vector<16x16x32xf32> to vector<8x2x16x32xf32>
    %72 = vector.extract_strided_slice %71 {offsets = [0, 0, 0, 0], sizes = [8, 1, 16, 32], strides = [1, 1, 1, 1]} : vector<8x2x16x32xf32> to vector<8x1x16x32xf32>
    %73 = vector.shape_cast %72 : vector<8x1x16x32xf32> to vector<8x16x32xf32>
    %74 = vector.extract_strided_slice %71 {offsets = [0, 1, 0, 0], sizes = [8, 1, 16, 32], strides = [1, 1, 1, 1]} : vector<8x2x16x32xf32> to vector<8x1x16x32xf32>
    %75 = vector.shape_cast %74 : vector<8x1x16x32xf32> to vector<8x16x32xf32>
    %76 = arith.maximumf %73, %75 : vector<8x16x32xf32>
    %77 = vector.shape_cast %76 : vector<8x16x32xf32> to vector<8x8x2x32xf32>
    %cst_81 = arith.constant dense<0xFF800000> : vector<8x8x32xf32>
    %78 = vector.multi_reduction <maximumf>, %77, %cst_81 [2] : vector<8x8x2x32xf32> to vector<8x8x32xf32>
    %c0_82 = arith.constant 0 : index
    %c0_83 = arith.constant 0 : index
    %c0_84 = arith.constant 0 : index
    %c0_85 = arith.constant 0 : index
    %79 = vector.load %arg6[%c0_82, %c0_83, %c0_84, %c0_85] : memref<1x8x8x32xf32, #tpu.memory_space<vmem>>, vector<1x8x8x32xf32>
    %80 = vector.shape_cast %79 : vector<1x8x8x32xf32> to vector<8x8x32xf32>
    %81 = vector.shape_cast %78 : vector<8x8x32xf32> to vector<1x8x8x32xf32>
    tpu.vector_store %arg6[%c0_82, %c0_83, %c0_84, %c0_85], %81 {strides = array<i32>} : memref<1x8x8x32xf32, #tpu.memory_space<vmem>>, vector<1x8x8x32xf32>,
    return
  }
  func.func @transform_0(%arg0: i32) -> (i32, i32, i32, i32) {
    %c0_i32 = arith.constant 0 : i32
    %c0_i32_0 = arith.constant 0 : i32
    %c0_i32_1 = arith.constant 0 : i32
    %c0_i32_2 = arith.constant 0 : i32
    return %arg0, %c0_i32, %c0_i32_0, %c0_i32_1 : i32, i32, i32, i32
  }
  func.func @transform_1(%arg0: i32) -> (i32, i32, i32) {
    %c0_i32 = arith.constant 0 : i32
    %c0_i32_0 = arith.constant 0 : i32
    %c0_i32_1 = arith.constant 0 : i32
    %c0_i32_2 = arith.constant 0 : i32
    return %c0_i32, %c0_i32_0, %c0_i32_1 : i32, i32, i32
  }
  func.func @transform_2(%arg0: i32) -> (i32, i32) {
    %c0_i32 = arith.constant 0 : i32
    %c0_i32_0 = arith.constant 0 : i32
    %c0_i32_1 = arith.constant 0 : i32
    return %c0_i32, %c0_i32_0 : i32, i32
  }
  func.func @transform_3(%arg0: i32) -> (i32, i32, i32) {
    %c0_i32 = arith.constant 0 : i32
    %c0_i32_0 = arith.constant 0 : i32
    %c0_i32_1 = arith.constant 0 : i32
    %c0_i32_2 = arith.constant 0 : i32
    return %c0_i32, %c0_i32_0, %c0_i32_1 : i32, i32, i32
  }
  func.func @transform_4(%arg0: i32) -> (i32, i32) {
    %c0_i32 = arith.constant 0 : i32
    %c0_i32_0 = arith.constant 0 : i32
    %c0_i32_1 = arith.constant 0 : i32
    return %c0_i32, %c0_i32_0 : i32, i32
  }
  func.func @transform_5(%arg0: i32) -> (i32, i32, i32, i32) {
    %c0_i32 = arith.constant 0 : i32
    %c0_i32_0 = arith.constant 0 : i32
    %c0_i32_1 = arith.constant 0 : i32
    %c0_i32_2 = arith.constant 0 : i32
    return %arg0, %c0_i32, %c0_i32_0, %c0_i32_1 : i32, i32, i32, i32
  }
}

</mosaic_0001>

<llo_original>
// kernel: unet_encoder_forward_nhwc.1
$region0: #{unet_encoder_forward_nhwc.1}
  #allocation0 [shape = 'u32[]', space=smem, size = 0x4, offset = 0x4, fixed_abs, tag = 'smem constant byte address 0x4 - core index']
  #allocation1 [shape = 'u32[144,128]{1,0:T(1,128)}', space=vmem, size = 0x12000, scoped, tag = 'internal scratch']
  #allocation2 [shape = 'bf16[18,18,4]{2,1,0:T(8,128)(2,1)}', space=vmem, size = 0x1b000, scoped, tag = 'scratch operand']
  #allocation3 [shape = 'bf16[18,18,16]{2,1,0:T(8,128)(2,1)}', space=vmem, size = 0x1b000, scoped, tag = 'scratch operand']
  %s0 = inlined_call_operand.vmem [shape: bf16[2,16,16,4], index: 0, kind: input, shape index: {}]
  %s1 = inlined_call_operand.vmem [shape: bf16[3,12,16], index: 1, kind: input, shape index: {}]
  %s2 = inlined_call_operand.vmem [shape: f32[1,16], index: 2, kind: input, shape index: {}]
  %s3 = inlined_call_operand.vmem [shape: bf16[3,48,32], index: 3, kind: input, shape index: {}]
  %s4 = inlined_call_operand.vmem [shape: f32[1,32], index: 4, kind: input, shape index: {}]
  %s5 = inlined_call_operand.hbm [shape: f32[2,8,8,32], index: 5, kind: output, shape index: {}]
  %s6 = sld [smem:[#allocation0]]
  $region53: #{unet_encoder_forward_nhwc.1} parent=0
    _
  %s8 = ssub.s32 1, %s6
  %s9 = scalar_select 0, %s8, %s6
  $region1: #{unet_encoder_forward_nhwc.1} parent=0
    #allocation4 [shape = 'u8[65536]{0}', space=vmem, size = 0x10000, scoped, tag = 'output window, operand 0']
    #allocation5 [shape = 's32[2]{0}', space=sflag, size = 0x8, scoped, tag = 'scoped memory for unet_encoder_forward_nhwc.1']
    %10 = vsyncpa [#allocation5], 0
    %s11 = scalar_lea.sflag [#allocation5], 1
    %12 = vsyncpa %s11, 0
    loop: start=0, step=1, limit=4
    $region2: #{unet_encoder_forward_nhwc.1} parent=1 // loop_pre_header
      _
    $region3: #{unet_encoder_forward_nhwc.1} parent=1 // loop_header
      %s14 = sphi 0, %s18
      %p15 = scmp.ge.s32.totalorder %s14, 4
      %s24 = sphi 0, %s26
      %s27 = sphi 0, %s24
      %s28 = sphi 0, %s27
      %s44 = sphi 0, %s28
      %s48 = sphi 0, %s48
      %s50 = sphi 0, %s48
      %s51 = sphi 0, %s50
      %s65 = sphi 0, %s51
      %s69 = sphi 0, %s69
      %s71 = sphi 0, %s69
      %s72 = sphi 0, %s71
      %s86 = sphi 0, %s72
      %s90 = sphi 0, %s90
      %s92 = sphi 0, %s90
      %s93 = sphi 0, %s92
      %s107 = sphi 0, %s93
      %s111 = sphi 0, %s111
      %s113 = sphi 0, %s111
      %s114 = sphi 0, %s113
      %s128 = sphi 0, %s114
      %s134 = sphi 0, %s136
      %s137 = sphi 0, %s134
      %s138 = sphi 0, %s137
      %s154 = sphi 0, %s138
    $region4: #{unet_encoder_forward_nhwc.1} parent=1 // loop_header_branch
      %17 = sbr.rel (%p15) target = $region8
    $region5: #{unet_encoder_forward_nhwc.1} parent=1 // loop_body
      %s19 = ssub.s32 %s14, 1
      %s20 = ssub.s32 %s14, 2
      %s21 = sadd.s32 %s14, 1
      %s22 = ssub.s32 %s14, %s21
      %p23 = scmp.eq.s32.totalorder %s22, 0
      %s25 = sadd.s32 %s24, 1
      %s26 = scalar_select %p23, %s24, %s25
      %p29 = pneg %p23
      %p30 = scmp.eq.s32.totalorder %s14, 1
      %p31 = por %p29, %p30
      %p32 = scmp.ne.s32.totalorder %s24, %s27
      %p33 = scmp.eq.s32.totalorder %s14, 0
      %p34 = por %p32, %p33
      %p35 = scmp.ne.s32.totalorder %s24, %s27
      %p36 = scmp.eq.s32.totalorder %s19, 1
      %p37 = por %p35, %p36
      %p38 = scmp.ne.s32.totalorder %s27, %s28
      %p39 = scmp.eq.s32.totalorder %s19, 0
      %p40 = por %p38, %p39
      %p41 = scmp.ne.s32.totalorder %s27, %s28
      %p42 = scmp.eq.s32.totalorder %s20, 1
      %p43 = por %p41, %p42
      %p45 = scmp.ne.s32.totalorder %s28, %s44
      %p46 = scmp.eq.s32.totalorder %s20, 0
      %p47 = por %p45, %p46
      %s49 = sadd.s32 %s48, 1
      %p52 = scmp.eq.s32.totalorder %s14, 1
      %p53 = scmp.ne.s32.totalorder %s48, %s50
      %p54 = scmp.eq.s32.totalorder %s14, 0
      %p55 = por %p53, %p54
      %p56 = scmp.ne.s32.totalorder %s48, %s50
      %p57 = scmp.eq.s32.totalorder %s19, 1
      %p58 = por %p56, %p57
      %p59 = scmp.ne.s32.totalorder %s50, %s51
      %p60 = scmp.eq.s32.totalorder %s19, 0
      %p61 = por %p59, %p60
      %p62 = scmp.ne.s32.totalorder %s50, %s51
      %p63 = scmp.eq.s32.totalorder %s20, 1
      %p64 = por %p62, %p63
      %p66 = scmp.ne.s32.totalorder %s51, %s65
      %p67 = scmp.eq.s32.totalorder %s20, 0
      %p68 = por %p66, %p67
      %s70 = sadd.s32 %s69, 1
      %p73 = scmp.eq.s32.totalorder %s14, 1
      %p74 = scmp.ne.s32.totalorder %s69, %s71
      %p75 = scmp.eq.s32.totalorder %s14, 0
      %p76 = por %p74, %p75
      %p77 = scmp.ne.s32.totalorder %s69, %s71
      %p78 = scmp.eq.s32.totalorder %s19, 1
      %p79 = por %p77, %p78
      %p80 = scmp.ne.s32.totalorder %s71, %s72
      %p81 = scmp.eq.s32.totalorder %s19, 0
      %p82 = por %p80, %p81
      %p83 = scmp.ne.s32.totalorder %s71, %s72
      %p84 = scmp.eq.s32.totalorder %s20, 1
      %p85 = por %p83, %p84
      %p87 = scmp.ne.s32.totalorder %s72, %s86
      %p88 = scmp.eq.s32.totalorder %s20, 0
      %p89 = por %p87, %p88
      %s91 = sadd.s32 %s90, 1
      %p94 = scmp.eq.s32.totalorder %s14, 1
      %p95 = scmp.ne.s32.totalorder %s90, %s92
      %p96 = scmp.eq.s32.totalorder %s14, 0
      %p97 = por %p95, %p96
      %p98 = scmp.ne.s32.totalorder %s90, %s92
      %p99 = scmp.eq.s32.totalorder %s19, 1
      %p100 = por %p98, %p99
      %p101 = scmp.ne.s32.totalorder %s92, %s93
      %p102 = scmp.eq.s32.totalorder %s19, 0
      %p103 = por %p101, %p102
      %p104 = scmp.ne.s32.totalorder %s92, %s93
      %p105 = scmp.eq.s32.totalorder %s20, 1
      %p106 = por %p104, %p105
      %p108 = scmp.ne.s32.totalorder %s93, %s107
      %p109 = scmp.eq.s32.totalorder %s20, 0
      %p110 = por %p108, %p109
      %s112 = sadd.s32 %s111, 1
      %p115 = scmp.eq.s32.totalorder %s14, 1
      %p116 = scmp.ne.s32.totalorder %s111, %s113
      %p117 = scmp.eq.s32.totalorder %s14, 0
      %p118 = por %p116, %p117
      %p119 = scmp.ne.s32.totalorder %s111, %s113
      %p120 = scmp.eq.s32.totalorder %s19, 1
      %p121 = por %p119, %p120
      %p122 = scmp.ne.s32.totalorder %s113, %s114
      %p123 = scmp.eq.s32.totalorder %s19, 0
      %p124 = por %p122, %p123
      %p125 = scmp.ne.s32.totalorder %s113, %s114
      %p126 = scmp.eq.s32.totalorder %s20, 1
      %p127 = por %p125, %p126
      %p129 = scmp.ne.s32.totalorder %s114, %s128
      %p130 = scmp.eq.s32.totalorder %s20, 0
      %p131 = por %p129, %p130
      %s132 = ssub.s32 %s14, %s21
      %p133 = scmp.eq.s32.totalorder %s132, 0
      %s135 = sadd.s32 %s134, 1
      %s136 = scalar_select %p133, %s134, %s135
      %p139 = pneg %p133
      %p140 = scmp.eq.s32.totalorder %s14, 1
      %p141 = por %p139, %p140
      %p142 = scmp.ne.s32.totalorder %s134, %s137
      %p143 = scmp.eq.s32.totalorder %s14, 0
      %p144 = por %p142, %p143
      %p145 = scmp.ne.s32.totalorder %s134, %s137
      %p146 = scmp.eq.s32.totalorder %s19, 1
      %p147 = por %p145, %p146
      %p148 = scmp.ne.s32.totalorder %s137, %s138
      %p149 = scmp.eq.s32.totalorder %s19, 0
      %p150 = por %p148, %p149
      %p151 = scmp.ne.s32.totalorder %s137, %s138
      %p152 = scmp.eq.s32.totalorder %s20, 1
      %p153 = por %p151, %p152
      %p155 = scmp.ne.s32.totalorder %s138, %s154
      %p156 = scmp.eq.s32.totalorder %s20, 0
      %p157 = por %p155, %p156
      %p158 = scmp.le.s32.totalorder 1, %s14
      %p159 = scmp.lt.s32.totalorder %s14, 3
      %p160 = pnand %p158, %p159
      %p161 = pneg %p160
      // Predicated region
      $region9: #{unet_encoder_forward_nhwc.1} parent=5 // pred_check
        _
      $region10: #{unet_encoder_forward_nhwc.1} parent=5 // pred_check_branch
        %163 = sbr.rel (%p160) target = $region12
      $region11: #{unet_encoder_forward_nhwc.1} parent=5 // pred_region
        %s164 = ssub.s32 %s14, 1
        // Predicated region
        $region13: #{unet_encoder_forward_nhwc.1} parent=11 // pred_check
          %p165 = pneg %p61
        $region14: #{unet_encoder_forward_nhwc.1} parent=11 // pred_check_branch
          %167 = sbr.rel (%p165) target = $region16
        $region15: #{unet_encoder_forward_nhwc.1} parent=11 // pred_region
          _
        $region16: #{unet_encoder_forward_nhwc.1} parent=11 // pred_fallthru
          _
        // Predicated region
        $region17: #{unet_encoder_forward_nhwc.1} parent=11 // pred_check
          %p168 = pneg %p82
        $region18: #{unet_encoder_forward_nhwc.1} parent=11 // pred_check_branch
          %170 = sbr.rel (%p168) target = $region20
        $region19: #{unet_encoder_forward_nhwc.1} parent=11 // pred_region
          _
        $region20: #{unet_encoder_forward_nhwc.1} parent=11 // pred_fallthru
          _
        // Predicated region
        $region21: #{unet_encoder_forward_nhwc.1} parent=11 // pred_check
          %p171 = pneg %p103
        $region22: #{unet_encoder_forward_nhwc.1} parent=11 // pred_check_branch
          %173 = sbr.rel (%p171) target = $region24
        $region23: #{unet_encoder_forward_nhwc.1} parent=11 // pred_region
          _
        $region24: #{unet_encoder_forward_nhwc.1} parent=11 // pred_fallthru
          _
        // Predicated region
        $region25: #{unet_encoder_forward_nhwc.1} parent=11 // pred_check
          %p174 = pneg %p124
        $region26: #{unet_encoder_forward_nhwc.1} parent=11 // pred_check_branch
          %176 = sbr.rel (%p174) target = $region28
        $region27: #{unet_encoder_forward_nhwc.1} parent=11 // pred_region
          _
        $region28: #{unet_encoder_forward_nhwc.1} parent=11 // pred_fallthru
          _
      $region12: #{unet_encoder_forward_nhwc.1} parent=5 // pred_fallthru
        _
      %p177 = scmp.lt.s32.totalorder %s14, 2
      // Predicated region
      $region29: #{unet_encoder_forward_nhwc.1} parent=5 // pred_check
        %p178 = pneg %p177
      $region30: #{unet_encoder_forward_nhwc.1} parent=5 // pred_check_branch
        %180 = sbr.rel (%p178) target = $region32
      $region31: #{unet_encoder_forward_nhwc.1} parent=5 // pred_region
        // Predicated region
        $region33: #{unet_encoder_forward_nhwc.1} parent=31 // pred_check
          %p181 = pneg %p34
        $region34: #{unet_encoder_forward_nhwc.1} parent=31 // pred_check_branch
          %183 = sbr.rel (%p181) target = $region36
        $region35: #{unet_encoder_forward_nhwc.1} parent=31 // pred_region
          %p184 = scmp.lt.s32.totalorder %s14, 1
          %s185 = scalar_select %p184, %s14, 1
          %s186 = smul.addr %s185, 32
          %s187 = smul.addr %s186, 4
          %s188 = scalar_lea.vmem %s0, %s187
        $region36: #{unet_encoder_forward_nhwc.1} parent=31 // pred_fallthru
          _
      $region32: #{unet_encoder_forward_nhwc.1} parent=5 // pred_fallthru
        _
      %p189 = scmp.le.s32.totalorder 1, %s14
      %p190 = scmp.lt.s32.totalorder %s14, 3
      %p191 = pnand %p189, %p190
      %p192 = pneg %p191
      // Predicated region
      $region37: #{unet_encoder_forward_nhwc.1} parent=5 // pred_check
        _
      $region38: #{unet_encoder_forward_nhwc.1} parent=5 // pred_check_branch
        %194 = sbr.rel (%p191) target = $region40
      $region39: #{unet_encoder_forward_nhwc.1} parent=5 // pred_region
        %s195 = ssub.s32 %s14, 1
        %p196 = scmp.lt.s32.totalorder %s19, 1
        %s197 = scalar_select %p196, %s19, 1
        %s198 = smul.addr %s197, 32
        %s199 = smul.addr %s198, 4
        %s200 = scalar_lea.vmem %s0, %s199
        %p201 = pneg %p40
        %p202 = pneg %p37
        %p203 = pneg %p61
        %p204 = pneg %p58
        %p205 = pneg %p82
        %p206 = pneg %p79
        %p207 = pneg %p103
        %p208 = pneg %p100
        %p209 = pneg %p124
        %p210 = pneg %p121
        %p211 = pneg %p150
        %p212 = pneg %p147
        %s213 = sand.u32 %s137, 1
        %s214 = scalar_lea.sflag [#allocation5], %s213
        %s215 = sand.u32 %s137, 1
        %s216 = smul.addr %s215, 64
        %s217 = scalar_lea.vmem [#allocation4], %s216
        %p218 = scmp.lt.s32.totalorder %s19, 1
        %s219 = scalar_select %p218, %s19, 1
        %s220 = smul.addr %s219, 32
        %s221 = smul.addr %s220, 4
        %s222 = scalar_lea.vmem %s0, %s221
        %v224 = vld [vmem:[%s222] sm:$0xf]
        %v225 = vld [vmem:[%s222 + $0x4] sm:$0xf]
        %v226 = vld [vmem:[%s222 + $0x8] sm:$0xf]
        %v227 = vld [vmem:[%s222 + $0xc] sm:$0xf]
        %v228 = vld [vmem:[%s222 + $0x10] sm:$0xf]
        %v229 = vld [vmem:[%s222 + $0x14] sm:$0xf]
        %v230 = vld [vmem:[%s222 + $0x18] sm:$0xf]
        %v231 = vld [vmem:[%s222 + $0x1c] sm:$0xf]
        %v232 = vld [vmem:[%s222 + $0x20] sm:$0xf]
        %v233 = vld [vmem:[%s222 + $0x24] sm:$0xf]
        %v234 = vld [vmem:[%s222 + $0x28] sm:$0xf]
        %v235 = vld [vmem:[%s222 + $0x2c] sm:$0xf]
        %v236 = vld [vmem:[%s222 + $0x30] sm:$0xf]
        %v237 = vld [vmem:[%s222 + $0x34] sm:$0xf]
        %v238 = vld [vmem:[%s222 + $0x38] sm:$0xf]
        %v239 = vld [vmem:[%s222 + $0x3c] sm:$0xf]
        %v240 = vld [vmem:[%s222 + $0x40] sm:$0xf]
        %v241 = vld [vmem:[%s222 + $0x44] sm:$0xf]
        %v242 = vld [vmem:[%s222 + $0x48] sm:$0xf]
        %v243 = vld [vmem:[%s222 + $0x4c] sm:$0xf]
        %v244 = vld [vmem:[%s222 + $0x50] sm:$0xf]
        %v245 = vld [vmem:[%s222 + $0x54] sm:$0xf]
        %v246 = vld [vmem:[%s222 + $0x58] sm:$0xf]
        %v247 = vld [vmem:[%s222 + $0x5c] sm:$0xf]
        %v248 = vld [vmem:[%s222 + $0x60] sm:$0xf]
        %v249 = vld [vmem:[%s222 + $0x64] sm:$0xf]
        %v250 = vld [vmem:[%s222 + $0x68] sm:$0xf]
        %v251 = vld [vmem:[%s222 + $0x6c] sm:$0xf]
        %v252 = vld [vmem:[%s222 + $0x70] sm:$0xf]
        %v253 = vld [vmem:[%s222 + $0x74] sm:$0xf]
        %v254 = vld [vmem:[%s222 + $0x78] sm:$0xf]
        %v255 = vld [vmem:[%s222 + $0x7c] sm:$0xf]
        %vm256 = vcmask 27648
        %257 = vst.msk [vmem:[#allocation2] sm:$0xf] %vm256, 0
        %258 = vst.msk [vmem:[#allocation2 + $0x4] sm:$0xf] %vm256, 0
        %vm259 = vcmask 24576
        %260 = vst.msk [vmem:[#allocation2 + $0x8] sm:$0x1] %vm259, 0
        %s261 = scalar_lea.vmem [#allocation2], 204
        %262 = vst.msk [vmem:[%s261] sm:$0xf] %vm256, 0
        %263 = vst.msk [vmem:[%s261 + $0x4] sm:$0xf] %vm256, 0
        %264 = vst.msk [vmem:[%s261 + $0x8] sm:$0x1] %vm259, 0
        %vm265 = vcmask 24576
        %vm266 = vsmask.f32 256
        %vm267 = vmand %vm265, %vm266
        %v268 = vld [vmem:[#allocation2] sm:$0x1]
        %v269 = vsel %vm267, 0, %v268
        %270 = vst [vmem:[#allocation2] sm:$0x1] %v269
        %v271 = vld [vmem:[#allocation2 + $0xc] sm:$0x1]
        %v272 = vsel %vm267, 0, %v271
        %273 = vst [vmem:[#allocation2 + $0xc] sm:$0x1] %v272
        %v274 = vld [vmem:[#allocation2 + $0x18] sm:$0x1]
        %v275 = vsel %vm267, 0, %v274
        %276 = vst [vmem:[#allocation2 + $0x18] sm:$0x1] %v275
        %v277 = vld [vmem:[#allocation2 + $0x24] sm:$0x1]
        %v278 = vsel %vm267, 0, %v277
        %279 = vst [vmem:[#allocation2 + $0x24] sm:$0x1] %v278
        %v280 = vld [vmem:[#allocation2 + $0x30] sm:$0x1]
        %v281 = vsel %vm267, 0, %v280
        %282 = vst [vmem:[#allocation2 + $0x30] sm:$0x1] %v281
        %v283 = vld [vmem:[#allocation2 + $0x3c] sm:$0x1]
        %v284 = vsel %vm267, 0, %v283
        %285 = vst [vmem:[#allocation2 + $0x3c] sm:$0x1] %v284
        %v286 = vld [vmem:[#allocation2 + $0x48] sm:$0x1]
        %v287 = vsel %vm267, 0, %v286
        %288 = vst [vmem:[#allocation2 + $0x48] sm:$0x1] %v287
        %v289 = vld [vmem:[#allocation2 + $0x54] sm:$0x1]
        %v290 = vsel %vm267, 0, %v289
        %291 = vst [vmem:[#allocation2 + $0x54] sm:$0x1] %v290
        %v292 = vld [vmem:[#allocation2 + $0x60] sm:$0x1]
        %v293 = vsel %vm267, 0, %v292
        %294 = vst [vmem:[#allocation2 + $0x60] sm:$0x1] %v293
        %v295 = vld [vmem:[#allocation2 + $0x6c] sm:$0x1]
        %v296 = vsel %vm267, 0, %v295
        %297 = vst [vmem:[#allocation2 + $0x6c] sm:$0x1] %v296
        %v298 = vld [vmem:[#allocation2 + $0x78] sm:$0x1]
        %v299 = vsel %vm267, 0, %v298
        %300 = vst [vmem:[#allocation2 + $0x78] sm:$0x1] %v299
        %v301 = vld [vmem:[#allocation2 + $0x84] sm:$0x1]
        %v302 = vsel %vm267, 0, %v301
        %303 = vst [vmem:[#allocation2 + $0x84] sm:$0x1] %v302
        %v304 = vld [vmem:[#allocation2 + $0x90] sm:$0x1]
        %v305 = vsel %vm267, 0, %v304
        %306 = vst [vmem:[#allocation2 + $0x90] sm:$0x1] %v305
        %v307 = vld [vmem:[#allocation2 + $0x9c] sm:$0x1]
        %v308 = vsel %vm267, 0, %v307
        %309 = vst [vmem:[#allocation2 + $0x9c] sm:$0x1] %v308
        %v310 = vld [vmem:[#allocation2 + $0xa8] sm:$0x1]
        %v311 = vsel %vm267, 0, %v310
        %312 = vst [vmem:[#allocation2 + $0xa8] sm:$0x1] %v311
        %v313 = vld [vmem:[#allocation2 + $0xb4] sm:$0x1]
        %v314 = vsel %vm267, 0, %v313
        %315 = vst [vmem:[#allocation2 + $0xb4] sm:$0x1] %v314
        %v316 = vld [vmem:[#allocation2 + $0xc0] sm:$0x1]
        %v317 = vsel %vm267, 0, %v316
        %318 = vst [vmem:[#allocation2 + $0xc0] sm:$0x1] %v317
        %v319 = vld [vmem:[#allocation2 + $0xcc] sm:$0x1]
        %v320 = vsel %vm267, 0, %v319
        %321 = vst [vmem:[#allocation2 + $0xcc] sm:$0x1] %v320
        %vm322 = vsmask.f32 7938
        %vm323 = vmand %vm265, %vm322
        %v324 = vld [vmem:[#allocation2 + $0x8] sm:$0x1]
        %v325 = vsel %vm323, 0, %v324
        %326 = vst [vmem:[#allocation2 + $0x8] sm:$0x1] %v325
        %v327 = vld [vmem:[#allocation2 + $0x14] sm:$0x1]
        %v328 = vsel %vm323, 0, %v327
        %329 = vst [vmem:[#allocation2 + $0x14] sm:$0x1] %v328
        %v330 = vld [vmem:[#allocation2 + $0x20] sm:$0x1]
        %v331 = vsel %vm323, 0, %v330
        %332 = vst [vmem:[#allocation2 + $0x20] sm:$0x1] %v331
        %v333 = vld [vmem:[#allocation2 + $0x2c] sm:$0x1]
        %v334 = vsel %vm323, 0, %v333
        %335 = vst [vmem:[#allocation2 + $0x2c] sm:$0x1] %v334
        %v336 = vld [vmem:[#allocation2 + $0x38] sm:$0x1]
        %v337 = vsel %vm323, 0, %v336
        %338 = vst [vmem:[#allocation2 + $0x38] sm:$0x1] %v337
        %v339 = vld [vmem:[#allocation2 + $0x44] sm:$0x1]
        %v340 = vsel %vm323, 0, %v339
        %341 = vst [vmem:[#allocation2 + $0x44] sm:$0x1] %v340
        %v342 = vld [vmem:[#allocation2 + $0x50] sm:$0x1]
        %v343 = vsel %vm323, 0, %v342
        %344 = vst [vmem:[#allocation2 + $0x50] sm:$0x1] %v343
        %v345 = vld [vmem:[#allocation2 + $0x5c] sm:$0x1]
        %v346 = vsel %vm323, 0, %v345
        %347 = vst [vmem:[#allocation2 + $0x5c] sm:$0x1] %v346
        %v348 = vld [vmem:[#allocation2 + $0x68] sm:$0x1]
        %v349 = vsel %vm323, 0, %v348
        %350 = vst [vmem:[#allocation2 + $0x68] sm:$0x1] %v349
        %v351 = vld [vmem:[#allocation2 + $0x74] sm:$0x1]
        %v352 = vsel %vm323, 0, %v351
        %353 = vst [vmem:[#allocation2 + $0x74] sm:$0x1] %v352
        %v354 = vld [vmem:[#allocation2 + $0x80] sm:$0x1]
        %v355 = vsel %vm323, 0, %v354
        %356 = vst [vmem:[#allocation2 + $0x80] sm:$0x1] %v355
        %v357 = vld [vmem:[#allocation2 + $0x8c] sm:$0x1]
        %v358 = vsel %vm323, 0, %v357
        %359 = vst [vmem:[#allocation2 + $0x8c] sm:$0x1] %v358
        %v360 = vld [vmem:[#allocation2 + $0x98] sm:$0x1]
        %v361 = vsel %vm323, 0, %v360
        %362 = vst [vmem:[#allocation2 + $0x98] sm:$0x1] %v361
        %v363 = vld [vmem:[#allocation2 + $0xa4] sm:$0x1]
        %v364 = vsel %vm323, 0, %v363
        %365 = vst [vmem:[#allocation2 + $0xa4] sm:$0x1] %v364
        %v366 = vld [vmem:[#allocation2 + $0xb0] sm:$0x1]
        %v367 = vsel %vm323, 0, %v366
        %368 = vst [vmem:[#allocation2 + $0xb0] sm:$0x1] %v367
        %v369 = vld [vmem:[#allocation2 + $0xbc] sm:$0x1]
        %v370 = vsel %vm323, 0, %v369
        %371 = vst [vmem:[#allocation2 + $0xbc] sm:$0x1] %v370
        %v372 = vld [vmem:[#allocation2 + $0xc8] sm:$0x1]
        %v373 = vsel %vm323, 0, %v372
        %374 = vst [vmem:[#allocation2 + $0xc8] sm:$0x1] %v373
        %v375 = vld [vmem:[#allocation2 + $0xd4] sm:$0x1]
        %v376 = vsel %vm323, 0, %v375
        %377 = vst [vmem:[#allocation2 + $0xd4] sm:$0x1] %v376
        %vm378 = vsmask.f32 4368
        %vm379 = vmor %vm266, %vm378
        %v381 = vshrl.u32 %v224, 16
        %v383 = vrot.slane %v381, 7
        %v384 = vshll.u32 %v224, 16
        %v386 = vor.u32 %v383, %v384
        %v387 = vrot.slane %v383, 4
        %v389 = vshrl.u32 %v225, 16
        %v391 = vrot.slane %v389, 7
        %v392 = vshll.u32 %v225, 16
        %v394 = vor.u32 %v391, %v392
        %v395 = vsel %vm379, %v387, %v394
        %v396 = vrot.slane %v391, 4
        %v398 = vshrl.u32 %v226, 16
        %v400 = vrot.slane %v398, 7
        %v401 = vshll.u32 %v226, 16
        %v403 = vor.u32 %v400, %v401
        %v404 = vrot.slane %v400, 4
        %v406 = vshrl.u32 %v227, 16
        %v408 = vrot.slane %v406, 7
        %v409 = vshll.u32 %v227, 16
        %v411 = vor.u32 %v408, %v409
        %v412 = vsel %vm379, %v404, %v411
        %v413 = vrot.slane %v408, 4
        %v415 = vshrl.u32 %v228, 16
        %v417 = vrot.slane %v415, 7
        %v418 = vshll.u32 %v228, 16
        %v420 = vor.u32 %v417, %v418
        %v421 = vrot.slane %v417, 4
        %v423 = vshrl.u32 %v229, 16
        %v425 = vrot.slane %v423, 7
        %v426 = vshll.u32 %v229, 16
        %v428 = vor.u32 %v425, %v426
        %v429 = vsel %vm379, %v421, %v428
        %v430 = vrot.slane %v425, 4
        %v432 = vshrl.u32 %v230, 16
        %v434 = vrot.slane %v432, 7
        %v435 = vshll.u32 %v230, 16
        %v437 = vor.u32 %v434, %v435
        %v438 = vrot.slane %v434, 4
        %v440 = vshrl.u32 %v231, 16
        %v442 = vrot.slane %v440, 7
        %v443 = vshll.u32 %v231, 16
        %v445 = vor.u32 %v442, %v443
        %v446 = vsel %vm379, %v438, %v445
        %v447 = vrot.slane %v442, 4
        %v449 = vshrl.u32 %v232, 16
        %v451 = vrot.slane %v449, 7
        %v452 = vshll.u32 %v232, 16
        %v454 = vor.u32 %v451, %v452
        %v455 = vrot.slane %v451, 4
        %v457 = vshrl.u32 %v233, 16
        %v459 = vrot.slane %v457, 7
        %v460 = vshll.u32 %v233, 16
        %v462 = vor.u32 %v459, %v460
        %v463 = vsel %vm379, %v455, %v462
        %v464 = vrot.slane %v459, 4
        %v466 = vshrl.u32 %v234, 16
        %v468 = vrot.slane %v466, 7
        %v469 = vshll.u32 %v234, 16
        %v471 = vor.u32 %v468, %v469
        %v472 = vrot.slane %v468, 4
        %v474 = vshrl.u32 %v235, 16
        %v476 = vrot.slane %v474, 7
        %v477 = vshll.u32 %v235, 16
        %v479 = vor.u32 %v476, %v477
        %v480 = vsel %vm379, %v472, %v479
        %v481 = vrot.slane %v476, 4
        %v483 = vshrl.u32 %v236, 16
        %v485 = vrot.slane %v483, 7
        %v486 = vshll.u32 %v236, 16
        %v488 = vor.u32 %v485, %v486
        %v489 = vrot.slane %v485, 4
        %v491 = vshrl.u32 %v237, 16
        %v493 = vrot.slane %v491, 7
        %v494 = vshll.u32 %v237, 16
        %v496 = vor.u32 %v493, %v494
        %v497 = vsel %vm379, %v489, %v496
        %v498 = vrot.slane %v493, 4
        %v500 = vshrl.u32 %v238, 16
        %v502 = vrot.slane %v500, 7
        %v503 = vshll.u32 %v238, 16
        %v505 = vor.u32 %v502, %v503
        %v506 = vrot.slane %v502, 4
        %v508 = vshrl.u32 %v239, 16
        %v510 = vrot.slane %v508, 7
        %v511 = vshll.u32 %v239, 16
        %v513 = vor.u32 %v510, %v511
        %v514 = vsel %vm379, %v506, %v513
        %v515 = vrot.slane %v510, 4
        %v517 = vshrl.u32 %v240, 16
        %v519 = vrot.slane %v517, 7
        %v520 = vshll.u32 %v240, 16
        %v522 = vor.u32 %v519, %v520
        %v523 = vrot.slane %v519, 4
        %v525 = vshrl.u32 %v241, 16
        %v527 = vrot.slane %v525, 7
        %v528 = vshll.u32 %v241, 16
        %v530 = vor.u32 %v527, %v528
        %v531 = vsel %vm379, %v523, %v530
        %v532 = vrot.slane %v527, 4
        %v534 = vshrl.u32 %v242, 16
        %v536 = vrot.slane %v534, 7
        %v537 = vshll.u32 %v242, 16
        %v539 = vor.u32 %v536, %v537
        %v540 = vrot.slane %v536, 4
        %v542 = vshrl.u32 %v243, 16
        %v544 = vrot.slane %v542, 7
        %v545 = vshll.u32 %v243, 16
        %v547 = vor.u32 %v544, %v545
        %v548 = vsel %vm379, %v540, %v547
        %v549 = vrot.slane %v544, 4
        %v551 = vshrl.u32 %v244, 16
        %v553 = vrot.slane %v551, 7
        %v554 = vshll.u32 %v244, 16
        %v556 = vor.u32 %v553, %v554
        %v557 = vrot.slane %v553, 4
        %v559 = vshrl.u32 %v245, 16
        %v561 = vrot.slane %v559, 7
        %v562 = vshll.u32 %v245, 16
        %v564 = vor.u32 %v561, %v562
        %v565 = vsel %vm379, %v557, %v564
        %v566 = vrot.slane %v561, 4
        %v568 = vshrl.u32 %v246, 16
        %v570 = vrot.slane %v568, 7
        %v571 = vshll.u32 %v246, 16
        %v573 = vor.u32 %v570, %v571
        %v574 = vrot.slane %v570, 4
        %v576 = vshrl.u32 %v247, 16
        %v578 = vrot.slane %v576, 7
        %v579 = vshll.u32 %v247, 16
        %v581 = vor.u32 %v578, %v579
        %v582 = vsel %vm379, %v574, %v581
        %v583 = vrot.slane %v578, 4
        %v585 = vshrl.u32 %v248, 16
        %v587 = vrot.slane %v585, 7
        %v588 = vshll.u32 %v248, 16
        %v590 = vor.u32 %v587, %v588
        %v591 = vrot.slane %v587, 4
        %v593 = vshrl.u32 %v249, 16
        %v595 = vrot.slane %v593, 7
        %v596 = vshll.u32 %v249, 16
        %v598 = vor.u32 %v595, %v596
        %v599 = vsel %vm379, %v591, %v598
        %v600 = vrot.slane %v595, 4
        %v602 = vshrl.u32 %v250, 16
        %v604 = vrot.slane %v602, 7
        %v605 = vshll.u32 %v250, 16
        %v607 = vor.u32 %v604, %v605
        %v608 = vrot.slane %v604, 4
        %v610 = vshrl.u32 %v251, 16
        %v612 = vrot.slane %v610, 7
        %v613 = vshll.u32 %v251, 16
        %v615 = vor.u32 %v612, %v613
        %v616 = vsel %vm379, %v608, %v615
        %v617 = vrot.slane %v612, 4
        %v619 = vshrl.u32 %v252, 16
        %v621 = vrot.slane %v619, 7
        %v622 = vshll.u32 %v252, 16
        %v624 = vor.u32 %v621, %v622
        %v625 = vrot.slane %v621, 4
        %v627 = vshrl.u32 %v253, 16
        %v629 = vrot.slane %v627, 7
        %v630 = vshll.u32 %v253, 16
        %v632 = vor.u32 %v629, %v630
        %v633 = vsel %vm379, %v625, %v632
        %v634 = vrot.slane %v629, 4
        %v636 = vshrl.u32 %v254, 16
        %v638 = vrot.slane %v636, 7
        %v639 = vshll.u32 %v254, 16
        %v641 = vor.u32 %v638, %v639
        %v642 = vrot.slane %v638, 4
        %v644 = vshrl.u32 %v255, 16
        %v646 = vrot.slane %v644, 7
        %v647 = vshll.u32 %v255, 16
        %v649 = vor.u32 %v646, %v647
        %v650 = vsel %vm379, %v642, %v649
        %v651 = vrot.slane %v646, 4
        %s700 = scalar_lea.vmem [#allocation2], 12
        %vm701 = vcmask 27648
        %vm702 = vmand %vm701, %vm322
        %v703 = vld [vmem:[%s700] sm:$0xf]
        %v704 = vsel %vm702, %v386, %v703
        %705 = vst [vmem:[%s700] sm:$0xf] %v704
        %706 = vst.msk [vmem:[%s700 + $0x4] sm:$0xf] %vm256, %v395
        %v707 = vld [vmem:[%s700 + $0x8] sm:$0x1]
        %v708 = vsel %vm267, %v396, %v707
        %709 = vst [vmem:[%s700 + $0x8] sm:$0x1] %v708
        %v710 = vld [vmem:[%s700 + $0xc] sm:$0xf]
        %v711 = vsel %vm702, %v403, %v710
        %712 = vst [vmem:[%s700 + $0xc] sm:$0xf] %v711
        %713 = vst.msk [vmem:[%s700 + $0x10] sm:$0xf] %vm256, %v412
        %v714 = vld [vmem:[%s700 + $0x14] sm:$0x1]
        %v715 = vsel %vm267, %v413, %v714
        %716 = vst [vmem:[%s700 + $0x14] sm:$0x1] %v715
        %v717 = vld [vmem:[%s700 + $0x18] sm:$0xf]
        %v718 = vsel %vm702, %v420, %v717
        %719 = vst [vmem:[%s700 + $0x18] sm:$0xf] %v718
        %720 = vst.msk [vmem:[%s700 + $0x1c] sm:$0xf] %vm256, %v429
        %v721 = vld [vmem:[%s700 + $0x20] sm:$0x1]
        %v722 = vsel %vm267, %v430, %v721
        %723 = vst [vmem:[%s700 + $0x20] sm:$0x1] %v722
        %v724 = vld [vmem:[%s700 + $0x24] sm:$0xf]
        %v725 = vsel %vm702, %v437, %v724
        %726 = vst [vmem:[%s700 + $0x24] sm:$0xf] %v725
        %727 = vst.msk [vmem:[%s700 + $0x28] sm:$0xf] %vm256, %v446
        %v728 = vld [vmem:[%s700 + $0x2c] sm:$0x1]
        %v729 = vsel %vm267, %v447, %v728
        %730 = vst [vmem:[%s700 + $0x2c] sm:$0x1] %v729
        %v731 = vld [vmem:[%s700 + $0x30] sm:$0xf]
        %v732 = vsel %vm702, %v454, %v731
        %733 = vst [vmem:[%s700 + $0x30] sm:$0xf] %v732
        %734 = vst.msk [vmem:[%s700 + $0x34] sm:$0xf] %vm256, %v463
        %v735 = vld [vmem:[%s700 + $0x38] sm:$0x1]
        %v736 = vsel %vm267, %v464, %v735
        %737 = vst [vmem:[%s700 + $0x38] sm:$0x1] %v736
        %v738 = vld [vmem:[%s700 + $0x3c] sm:$0xf]
        %v739 = vsel %vm702, %v471, %v738
        %740 = vst [vmem:[%s700 + $0x3c] sm:$0xf] %v739
        %741 = vst.msk [vmem:[%s700 + $0x40] sm:$0xf] %vm256, %v480
        %v742 = vld [vmem:[%s700 + $0x44] sm:$0x1]
        %v743 = vsel %vm267, %v481, %v742
        %744 = vst [vmem:[%s700 + $0x44] sm:$0x1] %v743
        %v745 = vld [vmem:[%s700 + $0x48] sm:$0xf]
        %v746 = vsel %vm702, %v488, %v745
        %747 = vst [vmem:[%s700 + $0x48] sm:$0xf] %v746
        %748 = vst.msk [vmem:[%s700 + $0x4c] sm:$0xf] %vm256, %v497
        %v749 = vld [vmem:[%s700 + $0x50] sm:$0x1]
        %v750 = vsel %vm267, %v498, %v749
        %751 = vst [vmem:[%s700 + $0x50] sm:$0x1] %v750
        %v752 = vld [vmem:[%s700 + $0x54] sm:$0xf]
        %v753 = vsel %vm702, %v505, %v752
        %754 = vst [vmem:[%s700 + $0x54] sm:$0xf] %v753
        %755 = vst.msk [vmem:[%s700 + $0x58] sm:$0xf] %vm256, %v514
        %v756 = vld [vmem:[%s700 + $0x5c] sm:$0x1]
        %v757 = vsel %vm267, %v515, %v756
        %758 = vst [vmem:[%s700 + $0x5c] sm:$0x1] %v757
        %v759 = vld [vmem:[%s700 + $0x60] sm:$0xf]
        %v760 = vsel %vm702, %v522, %v759
        %761 = vst [vmem:[%s700 + $0x60] sm:$0xf] %v760
        %762 = vst.msk [vmem:[%s700 + $0x64] sm:$0xf] %vm256, %v531
        %v763 = vld [vmem:[%s700 + $0x68] sm:$0x1]
        %v764 = vsel %vm267, %v532, %v763
        %765 = vst [vmem:[%s700 + $0x68] sm:$0x1] %v764
        %v766 = vld [vmem:[%s700 + $0x6c] sm:$0xf]
        %v767 = vsel %vm702, %v539, %v766
        %768 = vst [vmem:[%s700 + $0x6c] sm:$0xf] %v767
        %769 = vst.msk [vmem:[%s700 + $0x70] sm:$0xf] %vm256, %v548
        %v770 = vld [vmem:[%s700 + $0x74] sm:$0x1]
        %v771 = vsel %vm267, %v549, %v770
        %772 = vst [vmem:[%s700 + $0x74] sm:$0x1] %v771
        %v773 = vld [vmem:[%s700 + $0x78] sm:$0xf]
        %v774 = vsel %vm702, %v556, %v773
        %775 = vst [vmem:[%s700 + $0x78] sm:$0xf] %v774
        %776 = vst.msk [vmem:[%s700 + $0x7c] sm:$0xf] %vm256, %v565
        %v777 = vld [vmem:[%s700 + $0x80] sm:$0x1]
        %v778 = vsel %vm267, %v566, %v777
        %779 = vst [vmem:[%s700 + $0x80] sm:$0x1] %v778
        %v780 = vld [vmem:[%s700 + $0x84] sm:$0xf]
        %v781 = vsel %vm702, %v573, %v780
        %782 = vst [vmem:[%s700 + $0x84] sm:$0xf] %v781
        %783 = vst.msk [vmem:[%s700 + $0x88] sm:$0xf] %vm256, %v582
        %v784 = vld [vmem:[%s700 + $0x8c] sm:$0x1]
        %v785 = vsel %vm267, %v583, %v784
        %786 = vst [vmem:[%s700 + $0x8c] sm:$0x1] %v785
        %v787 = vld [vmem:[%s700 + $0x90] sm:$0xf]
        %v788 = vsel %vm702, %v590, %v787
        %789 = vst [vmem:[%s700 + $0x90] sm:$0xf] %v788
        %790 = vst.msk [vmem:[%s700 + $0x94] sm:$0xf] %vm256, %v599
        %v791 = vld [vmem:[%s700 + $0x98] sm:$0x1]
        %v792 = vsel %vm267, %v600, %v791
        %793 = vst [vmem:[%s700 + $0x98] sm:$0x1] %v792
        %v794 = vld [vmem:[%s700 + $0x9c] sm:$0xf]
        %v795 = vsel %vm702, %v607, %v794
        %796 = vst [vmem:[%s700 + $0x9c] sm:$0xf] %v795
        %797 = vst.msk [vmem:[%s700 + $0xa0] sm:$0xf] %vm256, %v616
        %v798 = vld [vmem:[%s700 + $0xa4] sm:$0x1]
        %v799 = vsel %vm267, %v617, %v798
        %800 = vst [vmem:[%s700 + $0xa4] sm:$0x1] %v799
        %v801 = vld [vmem:[%s700 + $0xa8] sm:$0xf]
        %v802 = vsel %vm702, %v624, %v801
        %803 = vst [vmem:[%s700 + $0xa8] sm:$0xf] %v802
        %804 = vst.msk [vmem:[%s700 + $0xac] sm:$0xf] %vm256, %v633
        %v805 = vld [vmem:[%s700 + $0xb0] sm:$0x1]
        %v806 = vsel %vm267, %v634, %v805
        %807 = vst [vmem:[%s700 + $0xb0] sm:$0x1] %v806
        %v808 = vld [vmem:[%s700 + $0xb4] sm:$0xf]
        %v809 = vsel %vm702, %v641, %v808
        %810 = vst [vmem:[%s700 + $0xb4] sm:$0xf] %v809
        %811 = vst.msk [vmem:[%s700 + $0xb8] sm:$0xf] %vm256, %v650
        %v812 = vld [vmem:[%s700 + $0xbc] sm:$0x1]
        %v813 = vsel %vm267, %v651, %v812
        %814 = vst [vmem:[%s700 + $0xbc] sm:$0x1] %v813
        %v815 = vld [vmem:[#allocation2] sm:$0xf]
        %v816 = vld [vmem:[#allocation2 + $0x4] sm:$0xf]
        %v817 = vld [vmem:[#allocation2 + $0xc] sm:$0xf]
        %v818 = vld [vmem:[#allocation2 + $0x10] sm:$0xf]
        %v819 = vld [vmem:[#allocation2 + $0x18] sm:$0xf]
        %v820 = vld [vmem:[#allocation2 + $0x1c] sm:$0xf]
        %v821 = vld [vmem:[#allocation2 + $0x24] sm:$0xf]
        %v822 = vld [vmem:[#allocation2 + $0x28] sm:$0xf]
        %v823 = vld [vmem:[#allocation2 + $0x30] sm:$0xf]
        %v824 = vld [vmem:[#allocation2 + $0x34] sm:$0xf]
        %v825 = vld [vmem:[#allocation2 + $0x3c] sm:$0xf]
        %v826 = vld [vmem:[#allocation2 + $0x40] sm:$0xf]
        %v827 = vld [vmem:[#allocation2 + $0x48] sm:$0xf]
        %v828 = vld [vmem:[#allocation2 + $0x4c] sm:$0xf]
        %v829 = vld [vmem:[#allocation2 + $0x54] sm:$0xf]
        %v830 = vld [vmem:[#allocation2 + $0x58] sm:$0xf]
        %v831 = vld [vmem:[#allocation2 + $0x60] sm:$0xf]
        %v832 = vld [vmem:[#allocation2 + $0x64] sm:$0xf]
        %v833 = vld [vmem:[#allocation2 + $0x6c] sm:$0xf]
        %v834 = vld [vmem:[#allocation2 + $0x70] sm:$0xf]
        %v835 = vld [vmem:[#allocation2 + $0x78] sm:$0xf]
        %v836 = vld [vmem:[#allocation2 + $0x7c] sm:$0xf]
        %v837 = vld [vmem:[#allocation2 + $0x84] sm:$0xf]
        %v838 = vld [vmem:[#allocation2 + $0x88] sm:$0xf]
        %v839 = vld [vmem:[#allocation2 + $0x90] sm:$0xf]
        %v840 = vld [vmem:[#allocation2 + $0x94] sm:$0xf]
        %v841 = vld [vmem:[#allocation2 + $0x9c] sm:$0xf]
        %v842 = vld [vmem:[#allocation2 + $0xa0] sm:$0xf]
        %v843 = vld [vmem:[#allocation2 + $0xa8] sm:$0xf]
        %v844 = vld [vmem:[#allocation2 + $0xac] sm:$0xf]
        %v845 = vld [vmem:[#allocation2 + $0xb4] sm:$0xf]
        %v846 = vld [vmem:[#allocation2 + $0xb8] sm:$0xf]
        %v847 = vld [vmem:[#allocation2 + $0xc0] sm:$0xf]
        %v848 = vld [vmem:[#allocation2 + $0xc4] sm:$0xf]
        %v849 = vld [vmem:[#allocation2 + $0xcc] sm:$0xf]
        %v850 = vld [vmem:[#allocation2 + $0xd0] sm:$0xf]
        %v851 = vld [vmem:[#allocation2 + $0x8] sm:$0x1]
        %v852 = vld [vmem:[#allocation2 + $0x14] sm:$0x1]
        %v853 = vld [vmem:[#allocation2 + $0x20] sm:$0x1]
        %v854 = vld [vmem:[#allocation2 + $0x2c] sm:$0x1]
        %v855 = vld [vmem:[#allocation2 + $0x38] sm:$0x1]
        %v856 = vld [vmem:[#allocation2 + $0x44] sm:$0x1]
        %v857 = vld [vmem:[#allocation2 + $0x50] sm:$0x1]
        %v858 = vld [vmem:[#allocation2 + $0x5c] sm:$0x1]
        %v859 = vld [vmem:[#allocation2 + $0x68] sm:$0x1]
        %v860 = vld [vmem:[#allocation2 + $0x74] sm:$0x1]
        %v861 = vld [vmem:[#allocation2 + $0x80] sm:$0x1]
        %v862 = vld [vmem:[#allocation2 + $0x8c] sm:$0x1]
        %v863 = vld [vmem:[#allocation2 + $0x98] sm:$0x1]
        %v864 = vld [vmem:[#allocation2 + $0xa4] sm:$0x1]
        %v865 = vld [vmem:[#allocation2 + $0xb0] sm:$0x1]
        %v866 = vld [vmem:[#allocation2 + $0xbc] sm:$0x1]
        %v867 = vld [vmem:[#allocation2 + $0xc8] sm:$0x1]
        %v868 = vld [vmem:[#allocation2 + $0xd4] sm:$0x1]
        %v869 = vld [vmem:[#allocation2] sm:$0xe]
        %v870 = vld [vmem:[#allocation2 + $0xc] sm:$0xe]
        %v871 = vld [vmem:[#allocation2 + $0x18] sm:$0xe]
        %v872 = vld [vmem:[#allocation2 + $0x24] sm:$0xe]
        %v873 = vld [vmem:[#allocation2 + $0x30] sm:$0xe]
        %v874 = vld [vmem:[#allocation2 + $0x3c] sm:$0xe]
        %v875 = vld [vmem:[#allocation2 + $0x48] sm:$0xe]
        %v876 = vld [vmem:[#allocation2 + $0x54] sm:$0xe]
        %v877 = vld [vmem:[#allocation2 + $0x60] sm:$0xe]
        %v878 = vld [vmem:[#allocation2 + $0x6c] sm:$0xe]
        %v879 = vld [vmem:[#allocation2 + $0x78] sm:$0xe]
        %v880 = vld [vmem:[#allocation2 + $0x84] sm:$0xe]
        %v881 = vld [vmem:[#allocation2 + $0x90] sm:$0xe]
        %v882 = vld [vmem:[#allocation2 + $0x9c] sm:$0xe]
        %v883 = vld [vmem:[#allocation2 + $0xa8] sm:$0xe]
        %v884 = vld [vmem:[#allocation2 + $0xb4] sm:$0xe]
        %v885 = vld [vmem:[#allocation2 + $0xc0] sm:$0xe]
        %v886 = vld [vmem:[#allocation2 + $0xcc] sm:$0xe]
        %v923 = vunpack.c.l.b16 %v815
        %v924 = vunpack.c.l.b16 %v816
        %v925 = vunpack.c.l.b16 %v817
        %v926 = vunpack.c.l.b16 %v818
        %v927 = vunpack.c.l.b16 %v819
        %v928 = vunpack.c.l.b16 %v820
        %v929 = vunpack.c.l.b16 %v821
        %v930 = vunpack.c.l.b16 %v822
        %v931 = vunpack.c.l.b16 %v823
        %v932 = vunpack.c.l.b16 %v824
        %v933 = vunpack.c.l.b16 %v825
        %v934 = vunpack.c.l.b16 %v826
        %v935 = vunpack.c.l.b16 %v827
        %v936 = vunpack.c.l.b16 %v828
        %v937 = vunpack.c.l.b16 %v829
        %v938 = vunpack.c.l.b16 %v830
        %v939 = vunpack.c.l.b16 %v831
        %v940 = vunpack.c.l.b16 %v832
        %v941 = vunpack.c.l.b16 %v833
        %v942 = vunpack.c.l.b16 %v834
        %v943 = vunpack.c.l.b16 %v835
        %v944 = vunpack.c.l.b16 %v836
        %v945 = vunpack.c.l.b16 %v837
        %v946 = vunpack.c.l.b16 %v838
        %v947 = vunpack.c.l.b16 %v839
        %v948 = vunpack.c.l.b16 %v840
        %v949 = vunpack.c.l.b16 %v841
        %v950 = vunpack.c.l.b16 %v842
        %v951 = vunpack.c.l.b16 %v843
        %v952 = vunpack.c.l.b16 %v844
        %v953 = vunpack.c.l.b16 %v845
        %v954 = vunpack.c.l.b16 %v846
        %v955 = vunpack.c.l.b16 %v847
        %v956 = vunpack.c.l.b16 %v848
        %v957 = vunpack.c.l.b16 %v849
        %v958 = vunpack.c.l.b16 %v850
        %v959 = vpack.c.b16 %v924, %v923
        %v960 = vpack.c.b16 %v926, %v925
        %v961 = vpack.c.b16 %v928, %v927
        %v962 = vpack.c.b16 %v930, %v929
        %v963 = vpack.c.b16 %v932, %v931
        %v964 = vpack.c.b16 %v934, %v933
        %v965 = vpack.c.b16 %v936, %v935
        %v966 = vpack.c.b16 %v938, %v937
        %v967 = vpack.c.b16 %v940, %v939
        %v968 = vpack.c.b16 %v942, %v941
        %v969 = vpack.c.b16 %v944, %v943
        %v970 = vpack.c.b16 %v946, %v945
        %v971 = vpack.c.b16 %v948, %v947
        %v972 = vpack.c.b16 %v950, %v949
        %v973 = vpack.c.b16 %v952, %v951
        %v974 = vpack.c.b16 %v954, %v953
        %v975 = vpack.c.b16 %v956, %v955
        %v976 = vpack.c.b16 %v958, %v957
        %v995 = vunpack.c.l.b16 %v851
        %v996 = vunpack.c.l.b16 %v852
        %v997 = vunpack.c.l.b16 %v853
        %v998 = vunpack.c.l.b16 %v854
        %v999 = vunpack.c.l.b16 %v855
        %v1000 = vunpack.c.l.b16 %v856
        %v1001 = vunpack.c.l.b16 %v857
        %v1002 = vunpack.c.l.b16 %v858
        %v1003 = vunpack.c.l.b16 %v859
        %v1004 = vunpack.c.l.b16 %v860
        %v1005 = vunpack.c.l.b16 %v861
        %v1006 = vunpack.c.l.b16 %v862
        %v1007 = vunpack.c.l.b16 %v863
        %v1008 = vunpack.c.l.b16 %v864
        %v1009 = vunpack.c.l.b16 %v865
        %v1010 = vunpack.c.l.b16 %v866
        %v1011 = vunpack.c.l.b16 %v867
        %v1012 = vunpack.c.l.b16 %v868
        %v1013 = vpack.c.b16 %v995, %v995
        %v1014 = vpack.c.b16 %v996, %v996
        %v1015 = vpack.c.b16 %v997, %v997
        %v1016 = vpack.c.b16 %v998, %v998
        %v1017 = vpack.c.b16 %v999, %v999
        %v1018 = vpack.c.b16 %v1000, %v1000
        %v1019 = vpack.c.b16 %v1001, %v1001
        %v1020 = vpack.c.b16 %v1002, %v1002
        %v1021 = vpack.c.b16 %v1003, %v1003
        %v1022 = vpack.c.b16 %v1004, %v1004
        %v1023 = vpack.c.b16 %v1005, %v1005
        %v1024 = vpack.c.b16 %v1006, %v1006
        %v1025 = vpack.c.b16 %v1007, %v1007
        %v1026 = vpack.c.b16 %v1008, %v1008
        %v1027 = vpack.c.b16 %v1009, %v1009
        %v1028 = vpack.c.b16 %v1010, %v1010
        %v1029 = vpack.c.b16 %v1011, %v1011
        %v1030 = vpack.c.b16 %v1012, %v1012
        %vm1031 = vsmask.f32 7424
        %v1033 = vshrl.u32 %v959, 16
        %v1035 = vshll.u32 %v959, 16
        %v1037 = vrot.slane %v1035, 1
        %v1038 = vor.u32 %v1033, %v1037
        %v1040 = vshll.u32 %v1013, 16
        %v1042 = vrot.slane %v1040, 1
        %v1043 = vsel %vm1031, %v1038, %v1042
        %v1045 = vshrl.u32 %v960, 16
        %v1047 = vshll.u32 %v960, 16
        %v1049 = vrot.slane %v1047, 1
        %v1050 = vor.u32 %v1045, %v1049
        %v1052 = vshll.u32 %v1014, 16
        %v1054 = vrot.slane %v1052, 1
        %v1055 = vsel %vm1031, %v1050, %v1054
        %v1057 = vshrl.u32 %v961, 16
        %v1059 = vshll.u32 %v961, 16
        %v1061 = vrot.slane %v1059, 1
        %v1062 = vor.u32 %v1057, %v1061
        %v1064 = vshll.u32 %v1015, 16
        %v1066 = vrot.slane %v1064, 1
        %v1067 = vsel %vm1031, %v1062, %v1066
        %v1069 = vshrl.u32 %v962, 16
        %v1071 = vshll.u32 %v962, 16
        %v1073 = vrot.slane %v1071, 1
        %v1074 = vor.u32 %v1069, %v1073
        %v1076 = vshll.u32 %v1016, 16
        %v1078 = vrot.slane %v1076, 1
        %v1079 = vsel %vm1031, %v1074, %v1078
        %v1081 = vshrl.u32 %v963, 16
        %v1083 = vshll.u32 %v963, 16
        %v1085 = vrot.slane %v1083, 1
        %v1086 = vor.u32 %v1081, %v1085
        %v1088 = vshll.u32 %v1017, 16
        %v1090 = vrot.slane %v1088, 1
        %v1091 = vsel %vm1031, %v1086, %v1090
        %v1093 = vshrl.u32 %v964, 16
        %v1095 = vshll.u32 %v964, 16
        %v1097 = vrot.slane %v1095, 1
        %v1098 = vor.u32 %v1093, %v1097
        %v1100 = vshll.u32 %v1018, 16
        %v1102 = vrot.slane %v1100, 1
        %v1103 = vsel %vm1031, %v1098, %v1102
        %v1105 = vshrl.u32 %v965, 16
        %v1107 = vshll.u32 %v965, 16
        %v1109 = vrot.slane %v1107, 1
        %v1110 = vor.u32 %v1105, %v1109
        %v1112 = vshll.u32 %v1019, 16
        %v1114 = vrot.slane %v1112, 1
        %v1115 = vsel %vm1031, %v1110, %v1114
        %v1117 = vshrl.u32 %v966, 16
        %v1119 = vshll.u32 %v966, 16
        %v1121 = vrot.slane %v1119, 1
        %v1122 = vor.u32 %v1117, %v1121
        %v1124 = vshll.u32 %v1020, 16
        %v1126 = vrot.slane %v1124, 1
        %v1127 = vsel %vm1031, %v1122, %v1126
        %v1129 = vshrl.u32 %v967, 16
        %v1131 = vshll.u32 %v967, 16
        %v1133 = vrot.slane %v1131, 1
        %v1134 = vor.u32 %v1129, %v1133
        %v1136 = vshll.u32 %v1021, 16
        %v1138 = vrot.slane %v1136, 1
        %v1139 = vsel %vm1031, %v1134, %v1138
        %v1141 = vshrl.u32 %v968, 16
        %v1143 = vshll.u32 %v968, 16
        %v1145 = vrot.slane %v1143, 1
        %v1146 = vor.u32 %v1141, %v1145
        %v1148 = vshll.u32 %v1022, 16
        %v1150 = vrot.slane %v1148, 1
        %v1151 = vsel %vm1031, %v1146, %v1150
        %v1153 = vshrl.u32 %v969, 16
        %v1155 = vshll.u32 %v969, 16
        %v1157 = vrot.slane %v1155, 1
        %v1158 = vor.u32 %v1153, %v1157
        %v1160 = vshll.u32 %v1023, 16
        %v1162 = vrot.slane %v1160, 1
        %v1163 = vsel %vm1031, %v1158, %v1162
        %v1165 = vshrl.u32 %v970, 16
        %v1167 = vshll.u32 %v970, 16
        %v1169 = vrot.slane %v1167, 1
        %v1170 = vor.u32 %v1165, %v1169
        %v1172 = vshll.u32 %v1024, 16
        %v1174 = vrot.slane %v1172, 1
        %v1175 = vsel %vm1031, %v1170, %v1174
        %v1177 = vshrl.u32 %v971, 16
        %v1179 = vshll.u32 %v971, 16
        %v1181 = vrot.slane %v1179, 1
        %v1182 = vor.u32 %v1177, %v1181
        %v1184 = vshll.u32 %v1025, 16
        %v1186 = vrot.slane %v1184, 1
        %v1187 = vsel %vm1031, %v1182, %v1186
        %v1189 = vshrl.u32 %v972, 16
        %v1191 = vshll.u32 %v972, 16
        %v1193 = vrot.slane %v1191, 1
        %v1194 = vor.u32 %v1189, %v1193
        %v1196 = vshll.u32 %v1026, 16
        %v1198 = vrot.slane %v1196, 1
        %v1199 = vsel %vm1031, %v1194, %v1198
        %v1201 = vshrl.u32 %v973, 16
        %v1203 = vshll.u32 %v973, 16
        %v1205 = vrot.slane %v1203, 1
        %v1206 = vor.u32 %v1201, %v1205
        %v1208 = vshll.u32 %v1027, 16
        %v1210 = vrot.slane %v1208, 1
        %v1211 = vsel %vm1031, %v1206, %v1210
        %v1213 = vshrl.u32 %v974, 16
        %v1215 = vshll.u32 %v974, 16
        %v1217 = vrot.slane %v1215, 1
        %v1218 = vor.u32 %v1213, %v1217
        %v1220 = vshll.u32 %v1028, 16
        %v1222 = vrot.slane %v1220, 1
        %v1223 = vsel %vm1031, %v1218, %v1222
        %v1225 = vshrl.u32 %v975, 16
        %v1227 = vshll.u32 %v975, 16
        %v1229 = vrot.slane %v1227, 1
        %v1230 = vor.u32 %v1225, %v1229
        %v1232 = vshll.u32 %v1029, 16
        %v1234 = vrot.slane %v1232, 1
        %v1235 = vsel %vm1031, %v1230, %v1234
        %v1237 = vshrl.u32 %v976, 16
        %v1239 = vshll.u32 %v976, 16
        %v1241 = vrot.slane %v1239, 1
        %v1242 = vor.u32 %v1237, %v1241
        %v1244 = vshll.u32 %v1030, 16
        %v1246 = vrot.slane %v1244, 1
        %v1247 = vsel %vm1031, %v1242, %v1246
        %1248 = vrot.lane.b32.xlu0 %v1043, 4
        %v1249 = vpop.permute.xlu0 %1248
        %1250 = vrot.lane.b32.xlu0 %v1055, 4
        %v1251 = vpop.permute.xlu0 %1250
        %1252 = vrot.lane.b32.xlu0 %v1067, 4
        %v1253 = vpop.permute.xlu0 %1252
        %1254 = vrot.lane.b32.xlu0 %v1079, 4
        %v1255 = vpop.permute.xlu0 %1254
        %1256 = vrot.lane.b32.xlu0 %v1091, 4
        %v1257 = vpop.permute.xlu0 %1256
        %1258 = vrot.lane.b32.xlu0 %v1103, 4
        %v1259 = vpop.permute.xlu0 %1258
        %1260 = vrot.lane.b32.xlu0 %v1115, 4
        %v1261 = vpop.permute.xlu0 %1260
        %1262 = vrot.lane.b32.xlu0 %v1127, 4
        %v1263 = vpop.permute.xlu0 %1262
        %1264 = vrot.lane.b32.xlu0 %v1139, 4
        %v1265 = vpop.permute.xlu0 %1264
        %1266 = vrot.lane.b32.xlu0 %v1151, 4
        %v1267 = vpop.permute.xlu0 %1266
        %1268 = vrot.lane.b32.xlu0 %v1163, 4
        %v1269 = vpop.permute.xlu0 %1268
        %1270 = vrot.lane.b32.xlu0 %v1175, 4
        %v1271 = vpop.permute.xlu0 %1270
        %1272 = vrot.lane.b32.xlu0 %v1187, 4
        %v1273 = vpop.permute.xlu0 %1272
        %1274 = vrot.lane.b32.xlu0 %v1199, 4
        %v1275 = vpop.permute.xlu0 %1274
        %1276 = vrot.lane.b32.xlu0 %v1211, 4
        %v1277 = vpop.permute.xlu0 %1276
        %1278 = vrot.lane.b32.xlu0 %v1223, 4
        %v1279 = vpop.permute.xlu0 %1278
        %1280 = vrot.lane.b32.xlu0 %v1235, 4
        %v1281 = vpop.permute.xlu0 %1280
        %1282 = vrot.lane.b32.xlu0 %v1247, 4
        %v1283 = vpop.permute.xlu0 %1282
        %v1302 = vunpack.c.l.b16 %v869
        %v1303 = vunpack.c.l.b16 %v870
        %v1304 = vunpack.c.l.b16 %v871
        %v1305 = vunpack.c.l.b16 %v872
        %v1306 = vunpack.c.l.b16 %v873
        %v1307 = vunpack.c.l.b16 %v874
        %v1308 = vunpack.c.l.b16 %v875
        %v1309 = vunpack.c.l.b16 %v876
        %v1310 = vunpack.c.l.b16 %v877
        %v1311 = vunpack.c.l.b16 %v878
        %v1312 = vunpack.c.l.b16 %v879
        %v1313 = vunpack.c.l.b16 %v880
        %v1314 = vunpack.c.l.b16 %v881
        %v1315 = vunpack.c.l.b16 %v882
        %v1316 = vunpack.c.l.b16 %v883
        %v1317 = vunpack.c.l.b16 %v884
        %v1318 = vunpack.c.l.b16 %v885
        %v1319 = vunpack.c.l.b16 %v886
        %v1320 = vpack.c.b16 %v924, %v1302
        %v1321 = vpack.c.b16 %v926, %v1303
        %v1322 = vpack.c.b16 %v928, %v1304
        %v1323 = vpack.c.b16 %v930, %v1305
        %v1324 = vpack.c.b16 %v932, %v1306
        %v1325 = vpack.c.b16 %v934, %v1307
        %v1326 = vpack.c.b16 %v936, %v1308
        %v1327 = vpack.c.b16 %v938, %v1309
        %v1328 = vpack.c.b16 %v940, %v1310
        %v1329 = vpack.c.b16 %v942, %v1311
        %v1330 = vpack.c.b16 %v944, %v1312
        %v1331 = vpack.c.b16 %v946, %v1313
        %v1332 = vpack.c.b16 %v948, %v1314
        %v1333 = vpack.c.b16 %v950, %v1315
        %v1334 = vpack.c.b16 %v952, %v1316
        %v1335 = vpack.c.b16 %v954, %v1317
        %v1336 = vpack.c.b16 %v956, %v1318
        %v1337 = vpack.c.b16 %v958, %v1319
        %vm1338 = vcmask 1046528
        %v1339 = vrot.slane %v1320, 1
        %v1340 = vrot.slane %v1013, 1
        %v1341 = vsel %vm1338, %v1339, %v1340
        %v1342 = vrot.slane %v1321, 1
        %v1343 = vrot.slane %v1014, 1
        %v1344 = vsel %vm1338, %v1342, %v1343
        %v1345 = vrot.slane %v1322, 1
        %v1346 = vrot.slane %v1015, 1
        %v1347 = vsel %vm1338, %v1345, %v1346
        %v1348 = vrot.slane %v1323, 1
        %v1349 = vrot.slane %v1016, 1
        %v1350 = vsel %vm1338, %v1348, %v1349
        %v1351 = vrot.slane %v1324, 1
        %v1352 = vrot.slane %v1017, 1
        %v1353 = vsel %vm1338, %v1351, %v1352
        %v1354 = vrot.slane %v1325, 1
        %v1355 = vrot.slane %v1018, 1
        %v1356 = vsel %vm1338, %v1354, %v1355
        %v1357 = vrot.slane %v1326, 1
        %v1358 = vrot.slane %v1019, 1
        %v1359 = vsel %vm1338, %v1357, %v1358
        %v1360 = vrot.slane %v1327, 1
        %v1361 = vrot.slane %v1020, 1
        %v1362 = vsel %vm1338, %v1360, %v1361
        %v1363 = vrot.slane %v1328, 1
        %v1364 = vrot.slane %v1021, 1
        %v1365 = vsel %vm1338, %v1363, %v1364
        %v1366 = vrot.slane %v1329, 1
        %v1367 = vrot.slane %v1022, 1
        %v1368 = vsel %vm1338, %v1366, %v1367
        %v1369 = vrot.slane %v1330, 1
        %v1370 = vrot.slane %v1023, 1
        %v1371 = vsel %vm1338, %v1369, %v1370
        %v1372 = vrot.slane %v1331, 1
        %v1373 = vrot.slane %v1024, 1
        %v1374 = vsel %vm1338, %v1372, %v1373
        %v1375 = vrot.slane %v1332, 1
        %v1376 = vrot.slane %v1025, 1
        %v1377 = vsel %vm1338, %v1375, %v1376
        %v1378 = vrot.slane %v1333, 1
        %v1379 = vrot.slane %v1026, 1
        %v1380 = vsel %vm1338, %v1378, %v1379
        %v1381 = vrot.slane %v1334, 1
        %v1382 = vrot.slane %v1027, 1
        %v1383 = vsel %vm1338, %v1381, %v1382
        %v1384 = vrot.slane %v1335, 1
        %v1385 = vrot.slane %v1028, 1
        %v1386 = vsel %vm1338, %v1384, %v1385
        %v1387 = vrot.slane %v1336, 1
        %v1388 = vrot.slane %v1029, 1
        %v1389 = vsel %vm1338, %v1387, %v1388
        %v1390 = vrot.slane %v1337, 1
        %v1391 = vrot.slane %v1030, 1
        %v1392 = vsel %vm1338, %v1390, %v1391
        %1393 = vrot.lane.b32.xlu0 %v1341, 8
        %v1394 = vpop.permute.xlu0 %1393
        %1395 = vrot.lane.b32.xlu0 %v1344, 8
        %v1396 = vpop.permute.xlu0 %1395
        %1397 = vrot.lane.b32.xlu0 %v1347, 8
        %v1398 = vpop.permute.xlu0 %1397
        %1399 = vrot.lane.b32.xlu0 %v1350, 8
        %v1400 = vpop.permute.xlu0 %1399
        %1401 = vrot.lane.b32.xlu0 %v1353, 8
        %v1402 = vpop.permute.xlu0 %1401
        %1403 = vrot.lane.b32.xlu0 %v1356, 8
        %v1404 = vpop.permute.xlu0 %1403
        %1405 = vrot.lane.b32.xlu0 %v1359, 8
        %v1406 = vpop.permute.xlu0 %1405
        %1407 = vrot.lane.b32.xlu0 %v1362, 8
        %v1408 = vpop.permute.xlu0 %1407
        %1409 = vrot.lane.b32.xlu0 %v1365, 8
        %v1410 = vpop.permute.xlu0 %1409
        %1411 = vrot.lane.b32.xlu0 %v1368, 8
        %v1412 = vpop.permute.xlu0 %1411
        %1413 = vrot.lane.b32.xlu0 %v1371, 8
        %v1414 = vpop.permute.xlu0 %1413
        %1415 = vrot.lane.b32.xlu0 %v1374, 8
        %v1416 = vpop.permute.xlu0 %1415
        %1417 = vrot.lane.b32.xlu0 %v1377, 8
        %v1418 = vpop.permute.xlu0 %1417
        %1419 = vrot.lane.b32.xlu0 %v1380, 8
        %v1420 = vpop.permute.xlu0 %1419
        %1421 = vrot.lane.b32.xlu0 %v1383, 8
        %v1422 = vpop.permute.xlu0 %1421
        %1423 = vrot.lane.b32.xlu0 %v1386, 8
        %v1424 = vpop.permute.xlu0 %1423
        %1425 = vrot.lane.b32.xlu0 %v1389, 8
        %v1426 = vpop.permute.xlu0 %1425
        %1427 = vrot.lane.b32.xlu0 %v1392, 8
        %v1428 = vpop.permute.xlu0 %1427
        %vm1429 = vcmask 31744
        %v1431 = vsel %vm1429, %v959, %v1249
        %v1433 = vsel %vm1429, %v960, %v1251
        %v1435 = vsel %vm1429, %v961, %v1253
        %v1437 = vsel %vm1429, %v962, %v1255
        %v1439 = vsel %vm1429, %v963, %v1257
        %v1441 = vsel %vm1429, %v964, %v1259
        %v1443 = vsel %vm1429, %v965, %v1261
        %v1445 = vsel %vm1429, %v966, %v1263
        %v1447 = vsel %vm1429, %v967, %v1265
        %v1449 = vsel %vm1429, %v968, %v1267
        %v1451 = vsel %vm1429, %v969, %v1269
        %v1453 = vsel %vm1429, %v970, %v1271
        %v1455 = vsel %vm1429, %v971, %v1273
        %v1457 = vsel %vm1429, %v972, %v1275
        %v1459 = vsel %vm1429, %v973, %v1277
        %v1461 = vsel %vm1429, %v974, %v1279
        %v1463 = vsel %vm1429, %v975, %v1281
        %v1465 = vsel %vm1429, %v976, %v1283
        %vm1466 = vcmask 64512
        %v1468 = vsel %vm1466, %v1431, %v1394
        %v1470 = vsel %vm1466, %v1433, %v1396
        %v1472 = vsel %vm1466, %v1435, %v1398
        %v1474 = vsel %vm1466, %v1437, %v1400
        %v1476 = vsel %vm1466, %v1439, %v1402
        %v1478 = vsel %vm1466, %v1441, %v1404
        %v1480 = vsel %vm1466, %v1443, %v1406
        %v1482 = vsel %vm1466, %v1445, %v1408
        %v1484 = vsel %vm1466, %v1447, %v1410
        %v1486 = vsel %vm1466, %v1449, %v1412
        %v1488 = vsel %vm1466, %v1451, %v1414
        %v1490 = vsel %vm1466, %v1453, %v1416
        %v1492 = vsel %vm1466, %v1455, %v1418
        %v1494 = vsel %vm1466, %v1457, %v1420
        %v1496 = vsel %vm1466, %v1459, %v1422
        %v1498 = vsel %vm1466, %v1461, %v1424
        %v1500 = vsel %vm1466, %v1463, %v1426
        %v1502 = vsel %vm1466, %v1465, %v1428
        %v1503 = vld [vmem:[%s1] sm:$0xf]
        %v1504 = vld [vmem:[%s1 + $0x4] sm:$0x3]
        %s1505 = scalar_lea.vmem %s1, 8
        %v1506 = vld [vmem:[%s1505] sm:$0xf]
        %v1507 = vld [vmem:[%s1505 + $0x4] sm:$0x3]
        %v1510 = vunpack.c.l.b16 %v1506
        %v1511 = vunpack.c.l.b16 %v1507
        %v1512 = vpack.c.b16 %v1511, %v1510
        %vm1513 = vcmask 97280
        %v1514 = vsel %vm1513, %v1470, 0
        %v1516 = vsel %vm1513, %v1472, 0
        %v1518 = vsel %vm1513, %v1474, 0
        %v1520 = vsel %vm1513, %v1476, 0
        %v1522 = vsel %vm1513, %v1478, 0
        %v1524 = vsel %vm1513, %v1480, 0
        %v1526 = vsel %vm1513, %v1482, 0
        %v1528 = vsel %vm1513, %v1484, 0
        %v1530 = vsel %vm1513, %v1486, 0
        %v1532 = vsel %vm1513, %v1488, 0
        %v1534 = vsel %vm1513, %v1490, 0
        %v1536 = vsel %vm1513, %v1492, 0
        %v1538 = vsel %vm1513, %v1494, 0
        %v1540 = vsel %vm1513, %v1496, 0
        %v1542 = vsel %vm1513, %v1498, 0
        %v1544 = vsel %vm1513, %v1500, 0
        %vm1546 = vcmask 1045504
        %v1548 = vsel %vm1546, %v1512, 0
        %1550 = vmatprep.subr.bf16.mxu0 0
        %1551 = vmatpush1.bf16.msra.mxu0 %v1548
        %1552 = vmatprep.subr.bf16.mxu0 0
        %1553 = vmatpush1.bf16.msra.mxu0 0
        %1554 = vmatprep.subr.bf16.mxu0 0
        %1555 = vmatpush1.bf16.msra.mxu0 0
        %1556 = vmatprep.subr.bf16.mxu0 0
        %1557 = vmatpush1.bf16.msra.mxu0 0
        %1558 = vmatprep.subr.bf16.mxu0 0
        %1559 = vmatpush1.bf16.msra.mxu0 0
        %1560 = vmatprep.subr.bf16.mxu0 0
        %1561 = vmatpush1.bf16.msra.mxu0 0
        %1562 = vmatprep.subr.bf16.mxu0 0
        %1563 = vmatpush1.bf16.msra.mxu0 0
        %1564 = vmatprep.subr.bf16.mxu0 0
        %1565 = vmatpush1.bf16.msra.mxu0 0
        %1566 = vmatprep.subr.bf16.mxu0 0
        %1567 = vmatpush1.bf16.msra.mxu0 0
        %1568 = vmatprep.subr.bf16.mxu0 0
        %1569 = vmatpush1.bf16.msra.mxu0 0
        %1570 = vmatprep.subr.bf16.mxu0 0
        %1571 = vmatpush1.bf16.msra.mxu0 0
        %1572 = vmatprep.subr.bf16.mxu0 0
        %1573 = vmatpush1.bf16.msra.mxu0 0
        %1574 = vmatprep.subr.bf16.mxu0 0
        %1575 = vmatpush1.bf16.msra.mxu0 0
        %1576 = vmatprep.subr.bf16.mxu0 0
        %1577 = vmatpush1.bf16.msra.mxu0 0
        %1578 = vmatprep.subr.bf16.mxu0 0
        %1579 = vmatpush1.bf16.msra.mxu0 0
        %1580 = vmatprep.subr.bf16.mxu0 0
        %1581 = vmatpush1.bf16.msra.mxu0 0
        %1582 = vmatprep.mubr.bf16.mxu0 0
        %1583 = vmatmul.mubr.bf16.gmra.mrb[0].mxu0 %v1514
        %v1584 = vpop.f32.mrb[0].mxu0
        %v1585 = vadd.f32 0.0, %v1584
        %v1586 = vpop.f32.mrb[0].mxu0
        %v1587 = vpop.f32.mrb[0].mxu0
        %v1588 = vadd.f32 0.0, %v1587
        %v1589 = vpop.f32.mrb[0].mxu0
        %1590 = vmatprep.mubr.bf16.mxu0 0
        %1591 = vmatmul.mubr.bf16.gmra.mrb[0].mxu0 %v1516
        %v1592 = vpop.f32.mrb[0].mxu0
        %v1593 = vadd.f32 0.0, %v1592
        %v1594 = vpop.f32.mrb[0].mxu0
        %v1595 = vpop.f32.mrb[0].mxu0
        %v1596 = vadd.f32 0.0, %v1595
        %v1597 = vpop.f32.mrb[0].mxu0
        %1598 = vmatprep.mubr.bf16.mxu0 0
        %1599 = vmatmul.mubr.bf16.gmra.mrb[0].mxu0 %v1518
        %v1600 = vpop.f32.mrb[0].mxu0
        %v1601 = vadd.f32 0.0, %v1600
        %v1602 = vpop.f32.mrb[0].mxu0
        %v1603 = vpop.f32.mrb[0].mxu0
        %v1604 = vadd.f32 0.0, %v1603
        %v1605 = vpop.f32.mrb[0].mxu0
        %1606 = vmatprep.mubr.bf16.mxu0 0
        %1607 = vmatmul.mubr.bf16.gmra.mrb[0].mxu0 %v1520
        %v1608 = vpop.f32.mrb[0].mxu0
        %v1609 = vadd.f32 0.0, %v1608
        %v1610 = vpop.f32.mrb[0].mxu0
        %v1611 = vpop.f32.mrb[0].mxu0
        %v1612 = vadd.f32 0.0, %v1611
        %v1613 = vpop.f32.mrb[0].mxu0
        %1614 = vmatprep.mubr.bf16.mxu0 0
        %1615 = vmatmul.mubr.bf16.gmra.mrb[0].mxu0 %v1522
        %v1616 = vpop.f32.mrb[0].mxu0
        %v1617 = vadd.f32 0.0, %v1616
        %v1618 = vpop.f32.mrb[0].mxu0
        %v1619 = vpop.f32.mrb[0].mxu0
        %v1620 = vadd.f32 0.0, %v1619
        %v1621 = vpop.f32.mrb[0].mxu0
        %1622 = vmatprep.mubr.bf16.mxu0 0
        %1623 = vmatmul.mubr.bf16.gmra.mrb[0].mxu0 %v1524
        %v1624 = vpop.f32.mrb[0].mxu0
        %v1625 = vadd.f32 0.0, %v1624
        %v1626 = vpop.f32.mrb[0].mxu0
        %v1627 = vpop.f32.mrb[0].mxu0
        %v1628 = vadd.f32 0.0, %v1627
        %v1629 = vpop.f32.mrb[0].mxu0
        %1630 = vmatprep.mubr.bf16.mxu0 0
        %1631 = vmatmul.mubr.bf16.gmra.mrb[0].mxu0 %v1526
        %v1632 = vpop.f32.mrb[0].mxu0
        %v1633 = vadd.f32 0.0, %v1632
        %v1634 = vpop.f32.mrb[0].mxu0
        %v1635 = vpop.f32.mrb[0].mxu0
        %v1636 = vadd.f32 0.0, %v1635
        %v1637 = vpop.f32.mrb[0].mxu0
        %1638 = vmatprep.mubr.bf16.mxu0 0
        %1639 = vmatmul.mubr.bf16.gmra.mrb[0].mxu0 %v1528
        %v1640 = vpop.f32.mrb[0].mxu0
        %v1641 = vadd.f32 0.0, %v1640
        %v1642 = vpop.f32.mrb[0].mxu0
        %v1643 = vpop.f32.mrb[0].mxu0
        %v1644 = vadd.f32 0.0, %v1643
        %v1645 = vpop.f32.mrb[0].mxu0
        %1646 = vmatprep.mubr.bf16.mxu0 0
        %1647 = vmatmul.mubr.bf16.gmra.mrb[0].mxu0 %v1530
        %v1648 = vpop.f32.mrb[0].mxu0
        %v1649 = vadd.f32 0.0, %v1648
        %v1650 = vpop.f32.mrb[0].mxu0
        %v1651 = vpop.f32.mrb[0].mxu0
        %v1652 = vadd.f32 0.0, %v1651
        %v1653 = vpop.f32.mrb[0].mxu0
        %1654 = vmatprep.mubr.bf16.mxu0 0
        %1655 = vmatmul.mubr.bf16.gmra.mrb[0].mxu0 %v1532
        %v1656 = vpop.f32.mrb[0].mxu0
        %v1657 = vadd.f32 0.0, %v1656
        %v1658 = vpop.f32.mrb[0].mxu0
        %v1659 = vpop.f32.mrb[0].mxu0
        %v1660 = vadd.f32 0.0, %v1659
        %v1661 = vpop.f32.mrb[0].mxu0
        %1662 = vmatprep.mubr.bf16.mxu0 0
        %1663 = vmatmul.mubr.bf16.gmra.mrb[0].mxu0 %v1534
        %v1664 = vpop.f32.mrb[0].mxu0
        %v1665 = vadd.f32 0.0, %v1664
        %v1666 = vpop.f32.mrb[0].mxu0
        %v1667 = vpop.f32.mrb[0].mxu0
        %v1668 = vadd.f32 0.0, %v1667
        %v1669 = vpop.f32.mrb[0].mxu0
        %1670 = vmatprep.mubr.bf16.mxu0 0
        %1671 = vmatmul.mubr.bf16.gmra.mrb[0].mxu0 %v1536
        %v1672 = vpop.f32.mrb[0].mxu0
        %v1673 = vadd.f32 0.0, %v1672
        %v1674 = vpop.f32.mrb[0].mxu0
        %v1675 = vpop.f32.mrb[0].mxu0
        %v1676 = vadd.f32 0.0, %v1675
        %v1677 = vpop.f32.mrb[0].mxu0
        %1678 = vmatprep.mubr.bf16.mxu0 0
        %1679 = vmatmul.mubr.bf16.gmra.mrb[0].mxu0 %v1538
        %v1680 = vpop.f32.mrb[0].mxu0
        %v1681 = vadd.f32 0.0, %v1680
        %v1682 = vpop.f32.mrb[0].mxu0
        %v1683 = vpop.f32.mrb[0].mxu0
        %v1684 = vadd.f32 0.0, %v1683
        %v1685 = vpop.f32.mrb[0].mxu0
        %1686 = vmatprep.mubr.bf16.mxu0 0
        %1687 = vmatmul.mubr.bf16.gmra.mrb[0].mxu0 %v1540
        %v1688 = vpop.f32.mrb[0].mxu0
        %v1689 = vadd.f32 0.0, %v1688
        %v1690 = vpop.f32.mrb[0].mxu0
        %v1691 = vpop.f32.mrb[0].mxu0
        %v1692 = vadd.f32 0.0, %v1691
        %v1693 = vpop.f32.mrb[0].mxu0
        %1694 = vmatprep.mubr.bf16.mxu0 0
        %1695 = vmatmul.mubr.bf16.gmra.mrb[0].mxu0 %v1542
        %v1696 = vpop.f32.mrb[0].mxu0
        %v1697 = vadd.f32 0.0, %v1696
        %v1698 = vpop.f32.mrb[0].mxu0
        %v1699 = vpop.f32.mrb[0].mxu0
        %v1700 = vadd.f32 0.0, %v1699
        %v1701 = vpop.f32.mrb[0].mxu0
        %1702 = vmatprep.mubr.bf16.mxu0 0
        %1703 = vmatmul.mubr.bf16.gmra.mrb[0].mxu0 %v1544
        %v1704 = vpop.f32.mrb[0].mxu0
        %v1705 = vadd.f32 0.0, %v1704
        %v1706 = vpop.f32.mrb[0].mxu0
        %v1707 = vpop.f32.mrb[0].mxu0
        %v1708 = vadd.f32 0.0, %v1707
        %v1709 = vpop.f32.mrb[0].mxu0
        %1710 = vdwg.mxu0
        %v1713 = vunpack.c.l.b16 %v1503
        %v1714 = vunpack.c.l.b16 %v1504
        %v1715 = vpack.c.b16 %v1714, %v1713
        %v1716 = vsel %vm1513, %v1468, 0
        %v1719 = vsel %vm1546, %v1715, 0
        %1721 = vmatprep.subr.bf16.mxu0 0
        %1722 = vmatpush1.bf16.msra.mxu0 %v1719
        %1723 = vmatprep.subr.bf16.mxu0 0
        %1724 = vmatpush1.bf16.msra.mxu0 0
        %1725 = vmatprep.subr.bf16.mxu0 0
        %1726 = vmatpush1.bf16.msra.mxu0 0
        %1727 = vmatprep.subr.bf16.mxu0 0
        %1728 = vmatpush1.bf16.msra.mxu0 0
        %1729 = vmatprep.subr.bf16.mxu0 0
        %1730 = vmatpush1.bf16.msra.mxu0 0
        %1731 = vmatprep.subr.bf16.mxu0 0
        %1732 = vmatpush1.bf16.msra.mxu0 0
        %1733 = vmatprep.subr.bf16.mxu0 0
        %1734 = vmatpush1.bf16.msra.mxu0 0
        %1735 = vmatprep.subr.bf16.mxu0 0
        %1736 = vmatpush1.bf16.msra.mxu0 0
        %1737 = vmatprep.subr.bf16.mxu0 0
        %1738 = vmatpush1.bf16.msra.mxu0 0
        %1739 = vmatprep.subr.bf16.mxu0 0
        %1740 = vmatpush1.bf16.msra.mxu0 0
        %1741 = vmatprep.subr.bf16.mxu0 0
        %1742 = vmatpush1.bf16.msra.mxu0 0
        %1743 = vmatprep.subr.bf16.mxu0 0
        %1744 = vmatpush1.bf16.msra.mxu0 0
        %1745 = vmatprep.subr.bf16.mxu0 0
        %1746 = vmatpush1.bf16.msra.mxu0 0
        %1747 = vmatprep.subr.bf16.mxu0 0
        %1748 = vmatpush1.bf16.msra.mxu0 0
        %1749 = vmatprep.subr.bf16.mxu0 0
        %1750 = vmatpush1.bf16.msra.mxu0 0
        %1751 = vmatprep.subr.bf16.mxu0 0
        %1752 = vmatpush1.bf16.msra.mxu0 0
        %1753 = vmatprep.mubr.bf16.mxu0 0
        %1754 = vmatmul.mubr.bf16.gmra.mrb[0].mxu0 %v1716
        %v1755 = vpop.f32.mrb[0].mxu0
        %v1756 = vadd.f32 %v1585, %v1755
        %v1757 = vpop.f32.mrb[0].mxu0
        %v1758 = vpop.f32.mrb[0].mxu0
        %v1759 = vadd.f32 %v1588, %v1758
        %v1760 = vpop.f32.mrb[0].mxu0
        %1761 = vmatprep.mubr.bf16.mxu0 0
        %1762 = vmatmul.mubr.bf16.gmra.mrb[0].mxu0 %v1514
        %v1763 = vpop.f32.mrb[0].mxu0
        %v1764 = vadd.f32 %v1593, %v1763
        %v1765 = vpop.f32.mrb[0].mxu0
        %v1766 = vpop.f32.mrb[0].mxu0
        %v1767 = vadd.f32 %v1596, %v1766
        %v1768 = vpop.f32.mrb[0].mxu0
        %1769 = vmatprep.mubr.bf16.mxu0 0
        %1770 = vmatmul.mubr.bf16.gmra.mrb[0].mxu0 %v1516
        %v1771 = vpop.f32.mrb[0].mxu0
        %v1772 = vadd.f32 %v1601, %v1771
        %v1773 = vpop.f32.mrb[0].mxu0
        %v1774 = vpop.f32.mrb[0].mxu0
        %v1775 = vadd.f32 %v1604, %v1774
        %v1776 = vpop.f32.mrb[0].mxu0
        %1777 = vmatprep.mubr.bf16.mxu0 0
        %1778 = vmatmul.mubr.bf16.gmra.mrb[0].mxu0 %v1518
        %v1779 = vpop.f32.mrb[0].mxu0
        %v1780 = vadd.f32 %v1609, %v1779
        %v1781 = vpop.f32.mrb[0].mxu0
        %v1782 = vpop.f32.mrb[0].mxu0
        %v1783 = vadd.f32 %v1612, %v1782
        %v1784 = vpop.f32.mrb[0].mxu0
        %1785 = vmatprep.mubr.bf16.mxu0 0
        %1786 = vmatmul.mubr.bf16.gmra.mrb[0].mxu0 %v1520
        %v1787 = vpop.f32.mrb[0].mxu0
        %v1788 = vadd.f32 %v1617, %v1787
        %v1789 = vpop.f32.mrb[0].mxu0
        %v1790 = vpop.f32.mrb[0].mxu0
        %v1791 = vadd.f32 %v1620, %v1790
        %v1792 = vpop.f32.mrb[0].mxu0
        %1793 = vmatprep.mubr.bf16.mxu0 0
        %1794 = vmatmul.mubr.bf16.gmra.mrb[0].mxu0 %v1522
        %v1795 = vpop.f32.mrb[0].mxu0
        %v1796 = vadd.f32 %v1625, %v1795
        %v1797 = vpop.f32.mrb[0].mxu0
        %v1798 = vpop.f32.mrb[0].mxu0
        %v1799 = vadd.f32 %v1628, %v1798
        %v1800 = vpop.f32.mrb[0].mxu0
        %1801 = vmatprep.mubr.bf16.mxu0 0
        %1802 = vmatmul.mubr.bf16.gmra.mrb[0].mxu0 %v1524
        %v1803 = vpop.f32.mrb[0].mxu0
        %v1804 = vadd.f32 %v1633, %v1803
        %v1805 = vpop.f32.mrb[0].mxu0
        %v1806 = vpop.f32.mrb[0].mxu0
        %v1807 = vadd.f32 %v1636, %v1806
        %v1808 = vpop.f32.mrb[0].mxu0
        %1809 = vmatprep.mubr.bf16.mxu0 0
        %1810 = vmatmul.mubr.bf16.gmra.mrb[0].mxu0 %v1526
        %v1811 = vpop.f32.mrb[0].mxu0
        %v1812 = vadd.f32 %v1641, %v1811
        %v1813 = vpop.f32.mrb[0].mxu0
        %v1814 = vpop.f32.mrb[0].mxu0
        %v1815 = vadd.f32 %v1644, %v1814
        %v1816 = vpop.f32.mrb[0].mxu0
        %1817 = vmatprep.mubr.bf16.mxu0 0
        %1818 = vmatmul.mubr.bf16.gmra.mrb[0].mxu0 %v1528
        %v1819 = vpop.f32.mrb[0].mxu0
        %v1820 = vadd.f32 %v1649, %v1819
        %v1821 = vpop.f32.mrb[0].mxu0
        %v1822 = vpop.f32.mrb[0].mxu0
        %v1823 = vadd.f32 %v1652, %v1822
        %v1824 = vpop.f32.mrb[0].mxu0
        %1825 = vmatprep.mubr.bf16.mxu0 0
        %1826 = vmatmul.mubr.bf16.gmra.mrb[0].mxu0 %v1530
        %v1827 = vpop.f32.mrb[0].mxu0
        %v1828 = vadd.f32 %v1657, %v1827
        %v1829 = vpop.f32.mrb[0].mxu0
        %v1830 = vpop.f32.mrb[0].mxu0
        %v1831 = vadd.f32 %v1660, %v1830
        %v1832 = vpop.f32.mrb[0].mxu0
        %1833 = vmatprep.mubr.bf16.mxu0 0
        %1834 = vmatmul.mubr.bf16.gmra.mrb[0].mxu0 %v1532
        %v1835 = vpop.f32.mrb[0].mxu0
        %v1836 = vadd.f32 %v1665, %v1835
        %v1837 = vpop.f32.mrb[0].mxu0
        %v1838 = vpop.f32.mrb[0].mxu0
        %v1839 = vadd.f32 %v1668, %v1838
        %v1840 = vpop.f32.mrb[0].mxu0
        %1841 = vmatprep.mubr.bf16.mxu0 0
        %1842 = vmatmul.mubr.bf16.gmra.mrb[0].mxu0 %v1534
        %v1843 = vpop.f32.mrb[0].mxu0
        %v1844 = vadd.f32 %v1673, %v1843
        %v1845 = vpop.f32.mrb[0].mxu0
        %v1846 = vpop.f32.mrb[0].mxu0
        %v1847 = vadd.f32 %v1676, %v1846
        %v1848 = vpop.f32.mrb[0].mxu0
        %1849 = vmatprep.mubr.bf16.mxu0 0
        %1850 = vmatmul.mubr.bf16.gmra.mrb[0].mxu0 %v1536
        %v1851 = vpop.f32.mrb[0].mxu0
        %v1852 = vadd.f32 %v1681, %v1851
        %v1853 = vpop.f32.mrb[0].mxu0
        %v1854 = vpop.f32.mrb[0].mxu0
        %v1855 = vadd.f32 %v1684, %v1854
        %v1856 = vpop.f32.mrb[0].mxu0
        %1857 = vmatprep.mubr.bf16.mxu0 0
        %1858 = vmatmul.mubr.bf16.gmra.mrb[0].mxu0 %v1538
        %v1859 = vpop.f32.mrb[0].mxu0
        %v1860 = vadd.f32 %v1689, %v1859
        %v1861 = vpop.f32.mrb[0].mxu0
        %v1862 = vpop.f32.mrb[0].mxu0
        %v1863 = vadd.f32 %v1692, %v1862
        %v1864 = vpop.f32.mrb[0].mxu0
        %1865 = vmatprep.mubr.bf16.mxu0 0
        %1866 = vmatmul.mubr.bf16.gmra.mrb[0].mxu0 %v1540
        %v1867 = vpop.f32.mrb[0].mxu0
        %v1868 = vadd.f32 %v1697, %v1867
        %v1869 = vpop.f32.mrb[0].mxu0
        %v1870 = vpop.f32.mrb[0].mxu0
        %v1871 = vadd.f32 %v1700, %v1870
        %v1872 = vpop.f32.mrb[0].mxu0
        %1873 = vmatprep.mubr.bf16.mxu0 0
        %1874 = vmatmul.mubr.bf16.gmra.mrb[0].mxu0 %v1542
        %v1875 = vpop.f32.mrb[0].mxu0
        %v1876 = vadd.f32 %v1705, %v1875
        %v1877 = vpop.f32.mrb[0].mxu0
        %v1878 = vpop.f32.mrb[0].mxu0
        %v1879 = vadd.f32 %v1708, %v1878
        %v1880 = vpop.f32.mrb[0].mxu0
        %1881 = vdwg.mxu0
        %s1882 = scalar_lea.vmem %s1, 16
        %v1883 = vld [vmem:[%s1882] sm:$0xf]
        %v1884 = vld [vmem:[%s1882 + $0x4] sm:$0x3]
        %v1887 = vunpack.c.l.b16 %v1883
        %v1888 = vunpack.c.l.b16 %v1884
        %v1889 = vpack.c.b16 %v1888, %v1887
        %v1890 = vsel %vm1513, %v1502, 0
        %v1893 = vsel %vm1546, %v1889, 0
        %1895 = vmatprep.subr.bf16.mxu0 0
        %1896 = vmatpush1.bf16.msra.mxu0 %v1893
        %1897 = vmatprep.subr.bf16.mxu0 0
        %1898 = vmatpush1.bf16.msra.mxu0 0
        %1899 = vmatprep.subr.bf16.mxu0 0
        %1900 = vmatpush1.bf16.msra.mxu0 0
        %1901 = vmatprep.subr.bf16.mxu0 0
        %1902 = vmatpush1.bf16.msra.mxu0 0
        %1903 = vmatprep.subr.bf16.mxu0 0
        %1904 = vmatpush1.bf16.msra.mxu0 0
        %1905 = vmatprep.subr.bf16.mxu0 0
        %1906 = vmatpush1.bf16.msra.mxu0 0
        %1907 = vmatprep.subr.bf16.mxu0 0
        %1908 = vmatpush1.bf16.msra.mxu0 0
        %1909 = vmatprep.subr.bf16.mxu0 0
        %1910 = vmatpush1.bf16.msra.mxu0 0
        %1911 = vmatprep.subr.bf16.mxu0 0
        %1912 = vmatpush1.bf16.msra.mxu0 0
        %1913 = vmatprep.subr.bf16.mxu0 0
        %1914 = vmatpush1.bf16.msra.mxu0 0
        %1915 = vmatprep.subr.bf16.mxu0 0
        %1916 = vmatpush1.bf16.msra.mxu0 0
        %1917 = vmatprep.subr.bf16.mxu0 0
        %1918 = vmatpush1.bf16.msra.mxu0 0
        %1919 = vmatprep.subr.bf16.mxu0 0
        %1920 = vmatpush1.bf16.msra.mxu0 0
        %1921 = vmatprep.subr.bf16.mxu0 0
        %1922 = vmatpush1.bf16.msra.mxu0 0
        %1923 = vmatprep.subr.bf16.mxu0 0
        %1924 = vmatpush1.bf16.msra.mxu0 0
        %1925 = vmatprep.subr.bf16.mxu0 0
        %1926 = vmatpush1.bf16.msra.mxu0 0
        %1927 = vmatprep.mubr.bf16.mxu0 0
        %1928 = vmatmul.mubr.bf16.gmra.mrb[0].mxu0 %v1516
        %v1929 = vpop.f32.mrb[0].mxu0
        %v1930 = vadd.f32 0.0, %v1929
        %v1931 = vpop.f32.mrb[0].mxu0
        %v1932 = vpop.f32.mrb[0].mxu0
        %v1933 = vadd.f32 0.0, %v1932
        %v1934 = vpop.f32.mrb[0].mxu0
        %1935 = vmatprep.mubr.bf16.mxu0 0
        %1936 = vmatmul.mubr.bf16.gmra.mrb[0].mxu0 %v1518
        %v1937 = vpop.f32.mrb[0].mxu0
        %v1938 = vadd.f32 0.0, %v1937
        %v1939 = vpop.f32.mrb[0].mxu0
        %v1940 = vpop.f32.mrb[0].mxu0
        %v1941 = vadd.f32 0.0, %v1940
        %v1942 = vpop.f32.mrb[0].mxu0
        %1943 = vmatprep.mubr.bf16.mxu0 0
        %1944 = vmatmul.mubr.bf16.gmra.mrb[0].mxu0 %v1520
        %v1945 = vpop.f32.mrb[0].mxu0
        %v1946 = vadd.f32 0.0, %v1945
        %v1947 = vpop.f32.mrb[0].mxu0
        %v1948 = vpop.f32.mrb[0].mxu0
        %v1949 = vadd.f32 0.0, %v1948
        %v1950 = vpop.f32.mrb[0].mxu0
        %1951 = vmatprep.mubr.bf16.mxu0 0
        %1952 = vmatmul.mubr.bf16.gmra.mrb[0].mxu0 %v1522
        %v1953 = vpop.f32.mrb[0].mxu0
        %v1954 = vadd.f32 0.0, %v1953
        %v1955 = vpop.f32.mrb[0].mxu0
        %v1956 = vpop.f32.mrb[0].mxu0
        %v1957 = vadd.f32 0.0, %v1956
        %v1958 = vpop.f32.mrb[0].mxu0
        %1959 = vmatprep.mubr.bf16.mxu0 0
        %1960 = vmatmul.mubr.bf16.gmra.mrb[0].mxu0 %v1524
        %v1961 = vpop.f32.mrb[0].mxu0
        %v1962 = vadd.f32 0.0, %v1961
        %v1963 = vpop.f32.mrb[0].mxu0
        %v1964 = vpop.f32.mrb[0].mxu0
        %v1965 = vadd.f32 0.0, %v1964
        %v1966 = vpop.f32.mrb[0].mxu0
        %1967 = vmatprep.mubr.bf16.mxu0 0
        %1968 = vmatmul.mubr.bf16.gmra.mrb[0].mxu0 %v1526
        %v1969 = vpop.f32.mrb[0].mxu0
        %v1970 = vadd.f32 0.0, %v1969
        %v1971 = vpop.f32.mrb[0].mxu0
        %v1972 = vpop.f32.mrb[0].mxu0
        %v1973 = vadd.f32 0.0, %v1972
        %v1974 = vpop.f32.mrb[0].mxu0
        %1975 = vmatprep.mubr.bf16.mxu0 0
        %1976 = vmatmul.mubr.bf16.gmra.mrb[0].mxu0 %v1528
        %v1977 = vpop.f32.mrb[0].mxu0
        %v1978 = vadd.f32 0.0, %v1977
        %v1979 = vpop.f32.mrb[0].mxu0
        %v1980 = vpop.f32.mrb[0].mxu0
        %v1981 = vadd.f32 0.0, %v1980
        %v1982 = vpop.f32.mrb[0].mxu0
        %1983 = vmatprep.mubr.bf16.mxu0 0
        %1984 = vmatmul.mubr.bf16.gmra.mrb[0].mxu0 %v1530
        %v1985 = vpop.f32.mrb[0].mxu0
        %v1986 = vadd.f32 0.0, %v1985
        %v1987 = vpop.f32.mrb[0].mxu0
        %v1988 = vpop.f32.mrb[0].mxu0
        %v1989 = vadd.f32 0.0, %v1988
        %v1990 = vpop.f32.mrb[0].mxu0
        %1991 = vmatprep.mubr.bf16.mxu0 0
        %1992 = vmatmul.mubr.bf16.gmra.mrb[0].mxu0 %v1532
        %v1993 = vpop.f32.mrb[0].mxu0
        %v1994 = vadd.f32 0.0, %v1993
        %v1995 = vpop.f32.mrb[0].mxu0
        %v1996 = vpop.f32.mrb[0].mxu0
        %v1997 = vadd.f32 0.0, %v1996
        %v1998 = vpop.f32.mrb[0].mxu0
        %1999 = vmatprep.mubr.bf16.mxu0 0
        %2000 = vmatmul.mubr.bf16.gmra.mrb[0].mxu0 %v1534
        %v2001 = vpop.f32.mrb[0].mxu0
        %v2002 = vadd.f32 0.0, %v2001
        %v2003 = vpop.f32.mrb[0].mxu0
        %v2004 = vpop.f32.mrb[0].mxu0
        %v2005 = vadd.f32 0.0, %v2004
        %v2006 = vpop.f32.mrb[0].mxu0
        %2007 = vmatprep.mubr.bf16.mxu0 0
        %2008 = vmatmul.mubr.bf16.gmra.mrb[0].mxu0 %v1536
        %v2009 = vpop.f32.mrb[0].mxu0
        %v2010 = vadd.f32 0.0, %v2009
        %v2011 = vpop.f32.mrb[0].mxu0
        %v2012 = vpop.f32.mrb[0].mxu0
        %v2013 = vadd.f32 0.0, %v2012
        %v2014 = vpop.f32.mrb[0].mxu0
        %2015 = vmatprep.mubr.bf16.mxu0 0
        %2016 = vmatmul.mubr.bf16.gmra.mrb[0].mxu0 %v1538
        %v2017 = vpop.f32.mrb[0].mxu0
        %v2018 = vadd.f32 0.0, %v2017
        %v2019 = vpop.f32.mrb[0].mxu0
        %v2020 = vpop.f32.mrb[0].mxu0
        %v2021 = vadd.f32 0.0, %v2020
        %v2022 = vpop.f32.mrb[0].mxu0
        %2023 = vmatprep.mubr.bf16.mxu0 0
        %2024 = vmatmul.mubr.bf16.gmra.mrb[0].mxu0 %v1540
        %v2025 = vpop.f32.mrb[0].mxu0
        %v2026 = vadd.f32 0.0, %v2025
        %v2027 = vpop.f32.mrb[0].mxu0
        %v2028 = vpop.f32.mrb[0].mxu0
        %v2029 = vadd.f32 0.0, %v2028
        %v2030 = vpop.f32.mrb[0].mxu0
        %2031 = vmatprep.mubr.bf16.mxu0 0
        %2032 = vmatmul.mubr.bf16.gmra.mrb[0].mxu0 %v1542
        %v2033 = vpop.f32.mrb[0].mxu0
        %v2034 = vadd.f32 0.0, %v2033
        %v2035 = vpop.f32.mrb[0].mxu0
        %v2036 = vpop.f32.mrb[0].mxu0
        %v2037 = vadd.f32 0.0, %v2036
        %v2038 = vpop.f32.mrb[0].mxu0
        %2039 = vmatprep.mubr.bf16.mxu0 0
        %2040 = vmatmul.mubr.bf16.gmra.mrb[0].mxu0 %v1544
        %v2041 = vpop.f32.mrb[0].mxu0
        %v2042 = vadd.f32 0.0, %v2041
        %v2043 = vpop.f32.mrb[0].mxu0
        %v2044 = vpop.f32.mrb[0].mxu0
        %v2045 = vadd.f32 0.0, %v2044
        %v2046 = vpop.f32.mrb[0].mxu0
        %2047 = vmatprep.mubr.bf16.mxu0 0
        %2048 = vmatmul.mubr.bf16.gmra.mrb[0].mxu0 %v1890
        %v2049 = vpop.f32.mrb[0].mxu0
        %v2050 = vadd.f32 0.0, %v2049
        %v2051 = vpop.f32.mrb[0].mxu0
        %v2052 = vpop.f32.mrb[0].mxu0
        %v2053 = vadd.f32 0.0, %v2052
        %v2054 = vpop.f32.mrb[0].mxu0
        %2055 = vdwg.mxu0
        %v2056 = vadd.f32 %v1756, %v1930
        %v2057 = vadd.f32 %v1759, %v1933
        %v2058 = vadd.f32 %v1764, %v1938
        %v2059 = vadd.f32 %v1767, %v1941
        %v2060 = vadd.f32 %v1772, %v1946
        %v2061 = vadd.f32 %v1775, %v1949
        %v2062 = vadd.f32 %v1780, %v1954
        %v2063 = vadd.f32 %v1783, %v1957
        %v2064 = vadd.f32 %v1788, %v1962
        %v2065 = vadd.f32 %v1791, %v1965
        %v2066 = vadd.f32 %v1796, %v1970
        %v2067 = vadd.f32 %v1799, %v1973
        %v2068 = vadd.f32 %v1804, %v1978
        %v2069 = vadd.f32 %v1807, %v1981
        %v2070 = vadd.f32 %v1812, %v1986
        %v2071 = vadd.f32 %v1815, %v1989
        %v2072 = vadd.f32 %v1820, %v1994
        %v2073 = vadd.f32 %v1823, %v1997
        %v2074 = vadd.f32 %v1828, %v2002
        %v2075 = vadd.f32 %v1831, %v2005
        %v2076 = vadd.f32 %v1836, %v2010
        %v2077 = vadd.f32 %v1839, %v2013
        %v2078 = vadd.f32 %v1844, %v2018
        %v2079 = vadd.f32 %v1847, %v2021
        %v2080 = vadd.f32 %v1852, %v2026
        %v2081 = vadd.f32 %v1855, %v2029
        %v2082 = vadd.f32 %v1860, %v2034
        %v2083 = vadd.f32 %v1863, %v2037
        %v2084 = vadd.f32 %v1868, %v2042
        %v2085 = vadd.f32 %v1871, %v2045
        %v2086 = vadd.f32 %v1876, %v2050
        %v2087 = vadd.f32 %v1879, %v2053
        %v2088 = vld [vmem:[%s2] sm:$0x1]
        %v2090 = vlaneseq
        %v2091 = vshrl.u32 %v2090, 7
        %v2092 = vsub.s32 0, %v2091
        %v2093 = vrot.slane %v2088, %v2092
        %v2095 = vadd.f32 %v2056, %v2093
        %v2096 = vadd.f32 %v2057, %v2093
        %v2097 = vadd.f32 %v2058, %v2093
        %v2098 = vadd.f32 %v2059, %v2093
        %v2099 = vadd.f32 %v2060, %v2093
        %v2100 = vadd.f32 %v2061, %v2093
        %v2101 = vadd.f32 %v2062, %v2093
        %v2102 = vadd.f32 %v2063, %v2093
        %v2103 = vadd.f32 %v2064, %v2093
        %v2104 = vadd.f32 %v2065, %v2093
        %v2105 = vadd.f32 %v2066, %v2093
        %v2106 = vadd.f32 %v2067, %v2093
        %v2107 = vadd.f32 %v2068, %v2093
        %v2108 = vadd.f32 %v2069, %v2093
        %v2109 = vadd.f32 %v2070, %v2093
        %v2110 = vadd.f32 %v2071, %v2093
        %v2111 = vadd.f32 %v2072, %v2093
        %v2112 = vadd.f32 %v2073, %v2093
        %v2113 = vadd.f32 %v2074, %v2093
        %v2114 = vadd.f32 %v2075, %v2093
        %v2115 = vadd.f32 %v2076, %v2093
        %v2116 = vadd.f32 %v2077, %v2093
        %v2117 = vadd.f32 %v2078, %v2093
        %v2118 = vadd.f32 %v2079, %v2093
        %v2119 = vadd.f32 %v2080, %v2093
        %v2120 = vadd.f32 %v2081, %v2093
        %v2121 = vadd.f32 %v2082, %v2093
        %v2122 = vadd.f32 %v2083, %v2093
        %v2123 = vadd.f32 %v2084, %v2093
        %v2124 = vadd.f32 %v2085, %v2093
        %v2125 = vadd.f32 %v2086, %v2093
        %v2126 = vadd.f32 %v2087, %v2093
        %v2127 = vmax.f32 %v2095, 0.0
        %v2128 = vmax.f32 %v2096, 0.0
        %v2129 = vmax.f32 %v2097, 0.0
        %v2130 = vmax.f32 %v2098, 0.0
        %v2131 = vmax.f32 %v2099, 0.0
        %v2132 = vmax.f32 %v2100, 0.0
        %v2133 = vmax.f32 %v2101, 0.0
        %v2134 = vmax.f32 %v2102, 0.0
        %v2135 = vmax.f32 %v2103, 0.0
        %v2136 = vmax.f32 %v2104, 0.0
        %v2137 = vmax.f32 %v2105, 0.0
        %v2138 = vmax.f32 %v2106, 0.0
        %v2139 = vmax.f32 %v2107, 0.0
        %v2140 = vmax.f32 %v2108, 0.0
        %v2141 = vmax.f32 %v2109, 0.0
        %v2142 = vmax.f32 %v2110, 0.0
        %v2143 = vmax.f32 %v2111, 0.0
        %v2144 = vmax.f32 %v2112, 0.0
        %v2145 = vmax.f32 %v2113, 0.0
        %v2146 = vmax.f32 %v2114, 0.0
        %v2147 = vmax.f32 %v2115, 0.0
        %v2148 = vmax.f32 %v2116, 0.0
        %v2149 = vmax.f32 %v2117, 0.0
        %v2150 = vmax.f32 %v2118, 0.0
        %v2151 = vmax.f32 %v2119, 0.0
        %v2152 = vmax.f32 %v2120, 0.0
        %v2153 = vmax.f32 %v2121, 0.0
        %v2154 = vmax.f32 %v2122, 0.0
        %v2155 = vmax.f32 %v2123, 0.0
        %v2156 = vmax.f32 %v2124, 0.0
        %v2157 = vmax.f32 %v2125, 0.0
        %v2158 = vmax.f32 %v2126, 0.0
        %vm2159 = vcmask 125952
        %2160 = vst.msk [vmem:[#allocation3] sm:$0xf] %vm2159, 0
        %2161 = vst.msk [vmem:[#allocation3 + $0x4] sm:$0xf] %vm2159, 0
        %vm2162 = vcmask 122880
        %2163 = vst.msk [vmem:[#allocation3 + $0x8] sm:$0x1] %vm2162, 0
        %s2164 = scalar_lea.vmem [#allocation3], 204
        %2165 = vst.msk [vmem:[%s2164] sm:$0xf] %vm2159, 0
        %2166 = vst.msk [vmem:[%s2164 + $0x4] sm:$0xf] %vm2159, 0
        %2167 = vst.msk [vmem:[%s2164 + $0x8] sm:$0x1] %vm2162, 0
        %vm2168 = vcmask 122880
        %vm2169 = vmand %vm2168, %vm266
        %v2170 = vld [vmem:[#allocation3] sm:$0x1]
        %v2171 = vsel %vm2169, 0, %v2170
        %2172 = vst [vmem:[#allocation3] sm:$0x1] %v2171
        %v2173 = vld [vmem:[#allocation3 + $0xc] sm:$0x1]
        %v2174 = vsel %vm2169, 0, %v2173
        %2175 = vst [vmem:[#allocation3 + $0xc] sm:$0x1] %v2174
        %v2176 = vld [vmem:[#allocation3 + $0x18] sm:$0x1]
        %v2177 = vsel %vm2169, 0, %v2176
        %2178 = vst [vmem:[#allocation3 + $0x18] sm:$0x1] %v2177
        %v2179 = vld [vmem:[#allocation3 + $0x24] sm:$0x1]
        %v2180 = vsel %vm2169, 0, %v2179
        %2181 = vst [vmem:[#allocation3 + $0x24] sm:$0x1] %v2180
        %v2182 = vld [vmem:[#allocation3 + $0x30] sm:$0x1]
        %v2183 = vsel %vm2169, 0, %v2182
        %2184 = vst [vmem:[#allocation3 + $0x30] sm:$0x1] %v2183
        %v2185 = vld [vmem:[#allocation3 + $0x3c] sm:$0x1]
        %v2186 = vsel %vm2169, 0, %v2185
        %2187 = vst [vmem:[#allocation3 + $0x3c] sm:$0x1] %v2186
        %v2188 = vld [vmem:[#allocation3 + $0x48] sm:$0x1]
        %v2189 = vsel %vm2169, 0, %v2188
        %2190 = vst [vmem:[#allocation3 + $0x48] sm:$0x1] %v2189
        %v2191 = vld [vmem:[#allocation3 + $0x54] sm:$0x1]
        %v2192 = vsel %vm2169, 0, %v2191
        %2193 = vst [vmem:[#allocation3 + $0x54] sm:$0x1] %v2192
        %v2194 = vld [vmem:[#allocation3 + $0x60] sm:$0x1]
        %v2195 = vsel %vm2169, 0, %v2194
        %2196 = vst [vmem:[#allocation3 + $0x60] sm:$0x1] %v2195
        %v2197 = vld [vmem:[#allocation3 + $0x6c] sm:$0x1]
        %v2198 = vsel %vm2169, 0, %v2197
        %2199 = vst [vmem:[#allocation3 + $0x6c] sm:$0x1] %v2198
        %v2200 = vld [vmem:[#allocation3 + $0x78] sm:$0x1]
        %v2201 = vsel %vm2169, 0, %v2200
        %2202 = vst [vmem:[#allocation3 + $0x78] sm:$0x1] %v2201
        %v2203 = vld [vmem:[#allocation3 + $0x84] sm:$0x1]
        %v2204 = vsel %vm2169, 0, %v2203
        %2205 = vst [vmem:[#allocation3 + $0x84] sm:$0x1] %v2204
        %v2206 = vld [vmem:[#allocation3 + $0x90] sm:$0x1]
        %v2207 = vsel %vm2169, 0, %v2206
        %2208 = vst [vmem:[#allocation3 + $0x90] sm:$0x1] %v2207
        %v2209 = vld [vmem:[#allocation3 + $0x9c] sm:$0x1]
        %v2210 = vsel %vm2169, 0, %v2209
        %2211 = vst [vmem:[#allocation3 + $0x9c] sm:$0x1] %v2210
        %v2212 = vld [vmem:[#allocation3 + $0xa8] sm:$0x1]
        %v2213 = vsel %vm2169, 0, %v2212
        %2214 = vst [vmem:[#allocation3 + $0xa8] sm:$0x1] %v2213
        %v2215 = vld [vmem:[#allocation3 + $0xb4] sm:$0x1]
        %v2216 = vsel %vm2169, 0, %v2215
        %2217 = vst [vmem:[#allocation3 + $0xb4] sm:$0x1] %v2216
        %v2218 = vld [vmem:[#allocation3 + $0xc0] sm:$0x1]
        %v2219 = vsel %vm2169, 0, %v2218
        %2220 = vst [vmem:[#allocation3 + $0xc0] sm:$0x1] %v2219
        %v2221 = vld [vmem:[#allocation3 + $0xcc] sm:$0x1]
        %v2222 = vsel %vm2169, 0, %v2221
        %2223 = vst [vmem:[#allocation3 + $0xcc] sm:$0x1] %v2222
        %vm2224 = vmand %vm2168, %vm322
        %v2225 = vld [vmem:[#allocation3 + $0x8] sm:$0x1]
        %v2226 = vsel %vm2224, 0, %v2225
        %2227 = vst [vmem:[#allocation3 + $0x8] sm:$0x1] %v2226
        %v2228 = vld [vmem:[#allocation3 + $0x14] sm:$0x1]
        %v2229 = vsel %vm2224, 0, %v2228
        %2230 = vst [vmem:[#allocation3 + $0x14] sm:$0x1] %v2229
        %v2231 = vld [vmem:[#allocation3 + $0x20] sm:$0x1]
        %v2232 = vsel %vm2224, 0, %v2231
        %2233 = vst [vmem:[#allocation3 + $0x20] sm:$0x1] %v2232
        %v2234 = vld [vmem:[#allocation3 + $0x2c] sm:$0x1]
        %v2235 = vsel %vm2224, 0, %v2234
        %2236 = vst [vmem:[#allocation3 + $0x2c] sm:$0x1] %v2235
        %v2237 = vld [vmem:[#allocation3 + $0x38] sm:$0x1]
        %v2238 = vsel %vm2224, 0, %v2237
        %2239 = vst [vmem:[#allocation3 + $0x38] sm:$0x1] %v2238
        %v2240 = vld [vmem:[#allocation3 + $0x44] sm:$0x1]
        %v2241 = vsel %vm2224, 0, %v2240
        %2242 = vst [vmem:[#allocation3 + $0x44] sm:$0x1] %v2241
        %v2243 = vld [vmem:[#allocation3 + $0x50] sm:$0x1]
        %v2244 = vsel %vm2224, 0, %v2243
        %2245 = vst [vmem:[#allocation3 + $0x50] sm:$0x1] %v2244
        %v2246 = vld [vmem:[#allocation3 + $0x5c] sm:$0x1]
        %v2247 = vsel %vm2224, 0, %v2246
        %2248 = vst [vmem:[#allocation3 + $0x5c] sm:$0x1] %v2247
        %v2249 = vld [vmem:[#allocation3 + $0x68] sm:$0x1]
        %v2250 = vsel %vm2224, 0, %v2249
        %2251 = vst [vmem:[#allocation3 + $0x68] sm:$0x1] %v2250
        %v2252 = vld [vmem:[#allocation3 + $0x74] sm:$0x1]
        %v2253 = vsel %vm2224, 0, %v2252
        %2254 = vst [vmem:[#allocation3 + $0x74] sm:$0x1] %v2253
        %v2255 = vld [vmem:[#allocation3 + $0x80] sm:$0x1]
        %v2256 = vsel %vm2224, 0, %v2255
        %2257 = vst [vmem:[#allocation3 + $0x80] sm:$0x1] %v2256
        %v2258 = vld [vmem:[#allocation3 + $0x8c] sm:$0x1]
        %v2259 = vsel %vm2224, 0, %v2258
        %2260 = vst [vmem:[#allocation3 + $0x8c] sm:$0x1] %v2259
        %v2261 = vld [vmem:[#allocation3 + $0x98] sm:$0x1]
        %v2262 = vsel %vm2224, 0, %v2261
        %2263 = vst [vmem:[#allocation3 + $0x98] sm:$0x1] %v2262
        %v2264 = vld [vmem:[#allocation3 + $0xa4] sm:$0x1]
        %v2265 = vsel %vm2224, 0, %v2264
        %2266 = vst [vmem:[#allocation3 + $0xa4] sm:$0x1] %v2265
        %v2267 = vld [vmem:[#allocation3 + $0xb0] sm:$0x1]
        %v2268 = vsel %vm2224, 0, %v2267
        %2269 = vst [vmem:[#allocation3 + $0xb0] sm:$0x1] %v2268
        %v2270 = vld [vmem:[#allocation3 + $0xbc] sm:$0x1]
        %v2271 = vsel %vm2224, 0, %v2270
        %2272 = vst [vmem:[#allocation3 + $0xbc] sm:$0x1] %v2271
        %v2273 = vld [vmem:[#allocation3 + $0xc8] sm:$0x1]
        %v2274 = vsel %vm2224, 0, %v2273
        %2275 = vst [vmem:[#allocation3 + $0xc8] sm:$0x1] %v2274
        %v2276 = vld [vmem:[#allocation3 + $0xd4] sm:$0x1]
        %v2277 = vsel %vm2224, 0, %v2276
        %2278 = vst [vmem:[#allocation3 + $0xd4] sm:$0x1] %v2277
        %v2279 = vpack.c.bf16 %v2128, %v2127
        %v2280 = vpack.c.bf16 %v2130, %v2129
        %v2281 = vpack.c.bf16 %v2132, %v2131
        %v2282 = vpack.c.bf16 %v2134, %v2133
        %v2283 = vpack.c.bf16 %v2136, %v2135
        %v2284 = vpack.c.bf16 %v2138, %v2137
        %v2285 = vpack.c.bf16 %v2140, %v2139
        %v2286 = vpack.c.bf16 %v2142, %v2141
        %v2287 = vpack.c.bf16 %v2144, %v2143
        %v2288 = vpack.c.bf16 %v2146, %v2145
        %v2289 = vpack.c.bf16 %v2148, %v2147
        %v2290 = vpack.c.bf16 %v2150, %v2149
        %v2291 = vpack.c.bf16 %v2152, %v2151
        %v2292 = vpack.c.bf16 %v2154, %v2153
        %v2293 = vpack.c.bf16 %v2156, %v2155
        %v2294 = vpack.c.bf16 %v2158, %v2157
        %v2311 = vunpack.c.l.b16 %v2279
        %v2312 = vunpack.c.h.b16 %v2279
        %v2313 = vunpack.c.l.b16 %v2280
        %v2314 = vunpack.c.h.b16 %v2280
        %v2315 = vunpack.c.l.b16 %v2281
        %v2316 = vunpack.c.h.b16 %v2281
        %v2317 = vunpack.c.l.b16 %v2282
        %v2318 = vunpack.c.h.b16 %v2282
        %v2319 = vunpack.c.l.b16 %v2283
        %v2320 = vunpack.c.h.b16 %v2283
        %v2321 = vunpack.c.l.b16 %v2284
        %v2322 = vunpack.c.h.b16 %v2284
        %v2323 = vunpack.c.l.b16 %v2285
        %v2324 = vunpack.c.h.b16 %v2285
        %v2325 = vunpack.c.l.b16 %v2286
        %v2326 = vunpack.c.h.b16 %v2286
        %v2327 = vunpack.c.l.b16 %v2287
        %v2328 = vunpack.c.h.b16 %v2287
        %v2329 = vunpack.c.l.b16 %v2288
        %v2330 = vunpack.c.h.b16 %v2288
        %v2331 = vunpack.c.l.b16 %v2289
        %v2332 = vunpack.c.h.b16 %v2289
        %v2333 = vunpack.c.l.b16 %v2290
        %v2334 = vunpack.c.h.b16 %v2290
        %v2335 = vunpack.c.l.b16 %v2291
        %v2336 = vunpack.c.h.b16 %v2291
        %v2337 = vunpack.c.l.b16 %v2292
        %v2338 = vunpack.c.h.b16 %v2292
        %v2339 = vunpack.c.l.b16 %v2293
        %v2340 = vunpack.c.h.b16 %v2293
        %v2341 = vunpack.c.l.b16 %v2294
        %v2342 = vunpack.c.h.b16 %v2294
        %v2343 = vpack.c.b16 %v2311, %v2311
        %v2344 = vpack.c.b16 %v2312, %v2312
        %v2345 = vpack.c.b16 %v2313, %v2313
        %v2346 = vpack.c.b16 %v2314, %v2314
        %v2347 = vpack.c.b16 %v2315, %v2315
        %v2348 = vpack.c.b16 %v2316, %v2316
        %v2349 = vpack.c.b16 %v2317, %v2317
        %v2350 = vpack.c.b16 %v2318, %v2318
        %v2351 = vpack.c.b16 %v2319, %v2319
        %v2352 = vpack.c.b16 %v2320, %v2320
        %v2353 = vpack.c.b16 %v2321, %v2321
        %v2354 = vpack.c.b16 %v2322, %v2322
        %v2355 = vpack.c.b16 %v2323, %v2323
        %v2356 = vpack.c.b16 %v2324, %v2324
        %v2357 = vpack.c.b16 %v2325, %v2325
        %v2358 = vpack.c.b16 %v2326, %v2326
        %v2359 = vpack.c.b16 %v2327, %v2327
        %v2360 = vpack.c.b16 %v2328, %v2328
        %v2361 = vpack.c.b16 %v2329, %v2329
        %v2362 = vpack.c.b16 %v2330, %v2330
        %v2363 = vpack.c.b16 %v2331, %v2331
        %v2364 = vpack.c.b16 %v2332, %v2332
        %v2365 = vpack.c.b16 %v2333, %v2333
        %v2366 = vpack.c.b16 %v2334, %v2334
        %v2367 = vpack.c.b16 %v2335, %v2335
        %v2368 = vpack.c.b16 %v2336, %v2336
        %v2369 = vpack.c.b16 %v2337, %v2337
        %v2370 = vpack.c.b16 %v2338, %v2338
        %v2371 = vpack.c.b16 %v2339, %v2339
        %v2372 = vpack.c.b16 %v2340, %v2340
        %v2373 = vpack.c.b16 %v2341, %v2341
        %v2374 = vpack.c.b16 %v2342, %v2342
        %v2376 = vshrl.u32 %v2343, 16
        %v2378 = vrot.slane %v2376, 7
        %v2379 = vshll.u32 %v2343, 16
        %v2381 = vor.u32 %v2378, %v2379
        %v2382 = vrot.slane %v2378, 4
        %v2384 = vshrl.u32 %v2344, 16
        %v2386 = vrot.slane %v2384, 7
        %v2387 = vshll.u32 %v2344, 16
        %v2389 = vor.u32 %v2386, %v2387
        %v2390 = vsel %vm379, %v2382, %v2389
        %v2391 = vrot.slane %v2386, 4
        %v2393 = vshrl.u32 %v2345, 16
        %v2395 = vrot.slane %v2393, 7
        %v2396 = vshll.u32 %v2345, 16
        %v2398 = vor.u32 %v2395, %v2396
        %v2399 = vrot.slane %v2395, 4
        %v2401 = vshrl.u32 %v2346, 16
        %v2403 = vrot.slane %v2401, 7
        %v2404 = vshll.u32 %v2346, 16
        %v2406 = vor.u32 %v2403, %v2404
        %v2407 = vsel %vm379, %v2399, %v2406
        %v2408 = vrot.slane %v2403, 4
        %v2410 = vshrl.u32 %v2347, 16
        %v2412 = vrot.slane %v2410, 7
        %v2413 = vshll.u32 %v2347, 16
        %v2415 = vor.u32 %v2412, %v2413
        %v2416 = vrot.slane %v2412, 4
        %v2418 = vshrl.u32 %v2348, 16
        %v2420 = vrot.slane %v2418, 7
        %v2421 = vshll.u32 %v2348, 16
        %v2423 = vor.u32 %v2420, %v2421
        %v2424 = vsel %vm379, %v2416, %v2423
        %v2425 = vrot.slane %v2420, 4
        %v2427 = vshrl.u32 %v2349, 16
        %v2429 = vrot.slane %v2427, 7
        %v2430 = vshll.u32 %v2349, 16
        %v2432 = vor.u32 %v2429, %v2430
        %v2433 = vrot.slane %v2429, 4
        %v2435 = vshrl.u32 %v2350, 16
        %v2437 = vrot.slane %v2435, 7
        %v2438 = vshll.u32 %v2350, 16
        %v2440 = vor.u32 %v2437, %v2438
        %v2441 = vsel %vm379, %v2433, %v2440
        %v2442 = vrot.slane %v2437, 4
        %v2444 = vshrl.u32 %v2351, 16
        %v2446 = vrot.slane %v2444, 7
        %v2447 = vshll.u32 %v2351, 16
        %v2449 = vor.u32 %v2446, %v2447
        %v2450 = vrot.slane %v2446, 4
        %v2452 = vshrl.u32 %v2352, 16
        %v2454 = vrot.slane %v2452, 7
        %v2455 = vshll.u32 %v2352, 16
        %v2457 = vor.u32 %v2454, %v2455
        %v2458 = vsel %vm379, %v2450, %v2457
        %v2459 = vrot.slane %v2454, 4
        %v2461 = vshrl.u32 %v2353, 16
        %v2463 = vrot.slane %v2461, 7
        %v2464 = vshll.u32 %v2353, 16
        %v2466 = vor.u32 %v2463, %v2464
        %v2467 = vrot.slane %v2463, 4
        %v2469 = vshrl.u32 %v2354, 16
        %v2471 = vrot.slane %v2469, 7
        %v2472 = vshll.u32 %v2354, 16
        %v2474 = vor.u32 %v2471, %v2472
        %v2475 = vsel %vm379, %v2467, %v2474
        %v2476 = vrot.slane %v2471, 4
        %v2478 = vshrl.u32 %v2355, 16
        %v2480 = vrot.slane %v2478, 7
        %v2481 = vshll.u32 %v2355, 16
        %v2483 = vor.u32 %v2480, %v2481
        %v2484 = vrot.slane %v2480, 4
        %v2486 = vshrl.u32 %v2356, 16
        %v2488 = vrot.slane %v2486, 7
        %v2489 = vshll.u32 %v2356, 16
        %v2491 = vor.u32 %v2488, %v2489
        %v2492 = vsel %vm379, %v2484, %v2491
        %v2493 = vrot.slane %v2488, 4
        %v2495 = vshrl.u32 %v2357, 16
        %v2497 = vrot.slane %v2495, 7
        %v2498 = vshll.u32 %v2357, 16
        %v2500 = vor.u32 %v2497, %v2498
        %v2501 = vrot.slane %v2497, 4
        %v2503 = vshrl.u32 %v2358, 16
        %v2505 = vrot.slane %v2503, 7
        %v2506 = vshll.u32 %v2358, 16
        %v2508 = vor.u32 %v2505, %v2506
        %v2509 = vsel %vm379, %v2501, %v2508
        %v2510 = vrot.slane %v2505, 4
        %v2512 = vshrl.u32 %v2359, 16
        %v2514 = vrot.slane %v2512, 7
        %v2515 = vshll.u32 %v2359, 16
        %v2517 = vor.u32 %v2514, %v2515
        %v2518 = vrot.slane %v2514, 4
        %v2520 = vshrl.u32 %v2360, 16
        %v2522 = vrot.slane %v2520, 7
        %v2523 = vshll.u32 %v2360, 16
        %v2525 = vor.u32 %v2522, %v2523
        %v2526 = vsel %vm379, %v2518, %v2525
        %v2527 = vrot.slane %v2522, 4
        %v2529 = vshrl.u32 %v2361, 16
        %v2531 = vrot.slane %v2529, 7
        %v2532 = vshll.u32 %v2361, 16
        %v2534 = vor.u32 %v2531, %v2532
        %v2535 = vrot.slane %v2531, 4
        %v2537 = vshrl.u32 %v2362, 16
        %v2539 = vrot.slane %v2537, 7
        %v2540 = vshll.u32 %v2362, 16
        %v2542 = vor.u32 %v2539, %v2540
        %v2543 = vsel %vm379, %v2535, %v2542
        %v2544 = vrot.slane %v2539, 4
        %v2546 = vshrl.u32 %v2363, 16
        %v2548 = vrot.slane %v2546, 7
        %v2549 = vshll.u32 %v2363, 16
        %v2551 = vor.u32 %v2548, %v2549
        %v2552 = vrot.slane %v2548, 4
        %v2554 = vshrl.u32 %v2364, 16
        %v2556 = vrot.slane %v2554, 7
        %v2557 = vshll.u32 %v2364, 16
        %v2559 = vor.u32 %v2556, %v2557
        %v2560 = vsel %vm379, %v2552, %v2559
        %v2561 = vrot.slane %v2556, 4
        %v2563 = vshrl.u32 %v2365, 16
        %v2565 = vrot.slane %v2563, 7
        %v2566 = vshll.u32 %v2365, 16
        %v2568 = vor.u32 %v2565, %v2566
        %v2569 = vrot.slane %v2565, 4
        %v2571 = vshrl.u32 %v2366, 16
        %v2573 = vrot.slane %v2571, 7
        %v2574 = vshll.u32 %v2366, 16
        %v2576 = vor.u32 %v2573, %v2574
        %v2577 = vsel %vm379, %v2569, %v2576
        %v2578 = vrot.slane %v2573, 4
        %v2580 = vshrl.u32 %v2367, 16
        %v2582 = vrot.slane %v2580, 7
        %v2583 = vshll.u32 %v2367, 16
        %v2585 = vor.u32 %v2582, %v2583
        %v2586 = vrot.slane %v2582, 4
        %v2588 = vshrl.u32 %v2368, 16
        %v2590 = vrot.slane %v2588, 7
        %v2591 = vshll.u32 %v2368, 16
        %v2593 = vor.u32 %v2590, %v2591
        %v2594 = vsel %vm379, %v2586, %v2593
        %v2595 = vrot.slane %v2590, 4
        %v2597 = vshrl.u32 %v2369, 16
        %v2599 = vrot.slane %v2597, 7
        %v2600 = vshll.u32 %v2369, 16
        %v2602 = vor.u32 %v2599, %v2600
        %v2603 = vrot.slane %v2599, 4
        %v2605 = vshrl.u32 %v2370, 16
        %v2607 = vrot.slane %v2605, 7
        %v2608 = vshll.u32 %v2370, 16
        %v2610 = vor.u32 %v2607, %v2608
        %v2611 = vsel %vm379, %v2603, %v2610
        %v2612 = vrot.slane %v2607, 4
        %v2614 = vshrl.u32 %v2371, 16
        %v2616 = vrot.slane %v2614, 7
        %v2617 = vshll.u32 %v2371, 16
        %v2619 = vor.u32 %v2616, %v2617
        %v2620 = vrot.slane %v2616, 4
        %v2622 = vshrl.u32 %v2372, 16
        %v2624 = vrot.slane %v2622, 7
        %v2625 = vshll.u32 %v2372, 16
        %v2627 = vor.u32 %v2624, %v2625
        %v2628 = vsel %vm379, %v2620, %v2627
        %v2629 = vrot.slane %v2624, 4
        %v2631 = vshrl.u32 %v2373, 16
        %v2633 = vrot.slane %v2631, 7
        %v2634 = vshll.u32 %v2373, 16
        %v2636 = vor.u32 %v2633, %v2634
        %v2637 = vrot.slane %v2633, 4
        %v2639 = vshrl.u32 %v2374, 16
        %v2641 = vrot.slane %v2639, 7
        %v2642 = vshll.u32 %v2374, 16
        %v2644 = vor.u32 %v2641, %v2642
        %v2645 = vsel %vm379, %v2637, %v2644
        %v2646 = vrot.slane %v2641, 4
        %s2695 = scalar_lea.vmem [#allocation3], 12
        %vm2696 = vcmask 125952
        %vm2697 = vmand %vm2696, %vm322
        %v2698 = vld [vmem:[%s2695] sm:$0xf]
        %v2699 = vsel %vm2697, %v2381, %v2698
        %2700 = vst [vmem:[%s2695] sm:$0xf] %v2699
        %2701 = vst.msk [vmem:[%s2695 + $0x4] sm:$0xf] %vm2159, %v2390
        %v2702 = vld [vmem:[%s2695 + $0x8] sm:$0x1]
        %v2703 = vsel %vm2169, %v2391, %v2702
        %2704 = vst [vmem:[%s2695 + $0x8] sm:$0x1] %v2703
        %v2705 = vld [vmem:[%s2695 + $0xc] sm:$0xf]
        %v2706 = vsel %vm2697, %v2398, %v2705
        %2707 = vst [vmem:[%s2695 + $0xc] sm:$0xf] %v2706
        %2708 = vst.msk [vmem:[%s2695 + $0x10] sm:$0xf] %vm2159, %v2407
        %v2709 = vld [vmem:[%s2695 + $0x14] sm:$0x1]
        %v2710 = vsel %vm2169, %v2408, %v2709
        %2711 = vst [vmem:[%s2695 + $0x14] sm:$0x1] %v2710
        %v2712 = vld [vmem:[%s2695 + $0x18] sm:$0xf]
        %v2713 = vsel %vm2697, %v2415, %v2712
        %2714 = vst [vmem:[%s2695 + $0x18] sm:$0xf] %v2713
        %2715 = vst.msk [vmem:[%s2695 + $0x1c] sm:$0xf] %vm2159, %v2424
        %v2716 = vld [vmem:[%s2695 + $0x20] sm:$0x1]
        %v2717 = vsel %vm2169, %v2425, %v2716
        %2718 = vst [vmem:[%s2695 + $0x20] sm:$0x1] %v2717
        %v2719 = vld [vmem:[%s2695 + $0x24] sm:$0xf]
        %v2720 = vsel %vm2697, %v2432, %v2719
        %2721 = vst [vmem:[%s2695 + $0x24] sm:$0xf] %v2720
        %2722 = vst.msk [vmem:[%s2695 + $0x28] sm:$0xf] %vm2159, %v2441
        %v2723 = vld [vmem:[%s2695 + $0x2c] sm:$0x1]
        %v2724 = vsel %vm2169, %v2442, %v2723
        %2725 = vst [vmem:[%s2695 + $0x2c] sm:$0x1] %v2724
        %v2726 = vld [vmem:[%s2695 + $0x30] sm:$0xf]
        %v2727 = vsel %vm2697, %v2449, %v2726
        %2728 = vst [vmem:[%s2695 + $0x30] sm:$0xf] %v2727
        %2729 = vst.msk [vmem:[%s2695 + $0x34] sm:$0xf] %vm2159, %v2458
        %v2730 = vld [vmem:[%s2695 + $0x38] sm:$0x1]
        %v2731 = vsel %vm2169, %v2459, %v2730
        %2732 = vst [vmem:[%s2695 + $0x38] sm:$0x1] %v2731
        %v2733 = vld [vmem:[%s2695 + $0x3c] sm:$0xf]
        %v2734 = vsel %vm2697, %v2466, %v2733
        %2735 = vst [vmem:[%s2695 + $0x3c] sm:$0xf] %v2734
        %2736 = vst.msk [vmem:[%s2695 + $0x40] sm:$0xf] %vm2159, %v2475
        %v2737 = vld [vmem:[%s2695 + $0x44] sm:$0x1]
        %v2738 = vsel %vm2169, %v2476, %v2737
        %2739 = vst [vmem:[%s2695 + $0x44] sm:$0x1] %v2738
        %v2740 = vld [vmem:[%s2695 + $0x48] sm:$0xf]
        %v2741 = vsel %vm2697, %v2483, %v2740
        %2742 = vst [vmem:[%s2695 + $0x48] sm:$0xf] %v2741
        %2743 = vst.msk [vmem:[%s2695 + $0x4c] sm:$0xf] %vm2159, %v2492
        %v2744 = vld [vmem:[%s2695 + $0x50] sm:$0x1]
        %v2745 = vsel %vm2169, %v2493, %v2744
        %2746 = vst [vmem:[%s2695 + $0x50] sm:$0x1] %v2745
        %v2747 = vld [vmem:[%s2695 + $0x54] sm:$0xf]
        %v2748 = vsel %vm2697, %v2500, %v2747
        %2749 = vst [vmem:[%s2695 + $0x54] sm:$0xf] %v2748
        %2750 = vst.msk [vmem:[%s2695 + $0x58] sm:$0xf] %vm2159, %v2509
        %v2751 = vld [vmem:[%s2695 + $0x5c] sm:$0x1]
        %v2752 = vsel %vm2169, %v2510, %v2751
        %2753 = vst [vmem:[%s2695 + $0x5c] sm:$0x1] %v2752
        %v2754 = vld [vmem:[%s2695 + $0x60] sm:$0xf]
        %v2755 = vsel %vm2697, %v2517, %v2754
        %2756 = vst [vmem:[%s2695 + $0x60] sm:$0xf] %v2755
        %2757 = vst.msk [vmem:[%s2695 + $0x64] sm:$0xf] %vm2159, %v2526
        %v2758 = vld [vmem:[%s2695 + $0x68] sm:$0x1]
        %v2759 = vsel %vm2169, %v2527, %v2758
        %2760 = vst [vmem:[%s2695 + $0x68] sm:$0x1] %v2759
        %v2761 = vld [vmem:[%s2695 + $0x6c] sm:$0xf]
        %v2762 = vsel %vm2697, %v2534, %v2761
        %2763 = vst [vmem:[%s2695 + $0x6c] sm:$0xf] %v2762
        %2764 = vst.msk [vmem:[%s2695 + $0x70] sm:$0xf] %vm2159, %v2543
        %v2765 = vld [vmem:[%s2695 + $0x74] sm:$0x1]
        %v2766 = vsel %vm2169, %v2544, %v2765
        %2767 = vst [vmem:[%s2695 + $0x74] sm:$0x1] %v2766
        %v2768 = vld [vmem:[%s2695 + $0x78] sm:$0xf]
        %v2769 = vsel %vm2697, %v2551, %v2768
        %2770 = vst [vmem:[%s2695 + $0x78] sm:$0xf] %v2769
        %2771 = vst.msk [vmem:[%s2695 + $0x7c] sm:$0xf] %vm2159, %v2560
        %v2772 = vld [vmem:[%s2695 + $0x80] sm:$0x1]
        %v2773 = vsel %vm2169, %v2561, %v2772
        %2774 = vst [vmem:[%s2695 + $0x80] sm:$0x1] %v2773
        %v2775 = vld [vmem:[%s2695 + $0x84] sm:$0xf]
        %v2776 = vsel %vm2697, %v2568, %v2775
        %2777 = vst [vmem:[%s2695 + $0x84] sm:$0xf] %v2776
        %2778 = vst.msk [vmem:[%s2695 + $0x88] sm:$0xf] %vm2159, %v2577
        %v2779 = vld [vmem:[%s2695 + $0x8c] sm:$0x1]
        %v2780 = vsel %vm2169, %v2578, %v2779
        %2781 = vst [vmem:[%s2695 + $0x8c] sm:$0x1] %v2780
        %v2782 = vld [vmem:[%s2695 + $0x90] sm:$0xf]
        %v2783 = vsel %vm2697, %v2585, %v2782
        %2784 = vst [vmem:[%s2695 + $0x90] sm:$0xf] %v2783
        %2785 = vst.msk [vmem:[%s2695 + $0x94] sm:$0xf] %vm2159, %v2594
        %v2786 = vld [vmem:[%s2695 + $0x98] sm:$0x1]
        %v2787 = vsel %vm2169, %v2595, %v2786
        %2788 = vst [vmem:[%s2695 + $0x98] sm:$0x1] %v2787
        %v2789 = vld [vmem:[%s2695 + $0x9c] sm:$0xf]
        %v2790 = vsel %vm2697, %v2602, %v2789
        %2791 = vst [vmem:[%s2695 + $0x9c] sm:$0xf] %v2790
        %2792 = vst.msk [vmem:[%s2695 + $0xa0] sm:$0xf] %vm2159, %v2611
        %v2793 = vld [vmem:[%s2695 + $0xa4] sm:$0x1]
        %v2794 = vsel %vm2169, %v2612, %v2793
        %2795 = vst [vmem:[%s2695 + $0xa4] sm:$0x1] %v2794
        %v2796 = vld [vmem:[%s2695 + $0xa8] sm:$0xf]
        %v2797 = vsel %vm2697, %v2619, %v2796
        %2798 = vst [vmem:[%s2695 + $0xa8] sm:$0xf] %v2797
        %2799 = vst.msk [vmem:[%s2695 + $0xac] sm:$0xf] %vm2159, %v2628
        %v2800 = vld [vmem:[%s2695 + $0xb0] sm:$0x1]
        %v2801 = vsel %vm2169, %v2629, %v2800
        %2802 = vst [vmem:[%s2695 + $0xb0] sm:$0x1] %v2801
        %v2803 = vld [vmem:[%s2695 + $0xb4] sm:$0xf]
        %v2804 = vsel %vm2697, %v2636, %v2803
        %2805 = vst [vmem:[%s2695 + $0xb4] sm:$0xf] %v2804
        %2806 = vst.msk [vmem:[%s2695 + $0xb8] sm:$0xf] %vm2159, %v2645
        %v2807 = vld [vmem:[%s2695 + $0xbc] sm:$0x1]
        %v2808 = vsel %vm2169, %v2646, %v2807
        %2809 = vst [vmem:[%s2695 + $0xbc] sm:$0x1] %v2808
        %v2810 = vld [vmem:[#allocation3] sm:$0xf]
        %v2811 = vld [vmem:[#allocation3 + $0x4] sm:$0xf]
        %v2812 = vld [vmem:[#allocation3 + $0xc] sm:$0xf]
        %v2813 = vld [vmem:[#allocation3 + $0x10] sm:$0xf]
        %v2814 = vld [vmem:[#allocation3 + $0x18] sm:$0xf]
        %v2815 = vld [vmem:[#allocation3 + $0x1c] sm:$0xf]
        %v2816 = vld [vmem:[#allocation3 + $0x24] sm:$0xf]
        %v2817 = vld [vmem:[#allocation3 + $0x28] sm:$0xf]
        %v2818 = vld [vmem:[#allocation3 + $0x30] sm:$0xf]
        %v2819 = vld [vmem:[#allocation3 + $0x34] sm:$0xf]
        %v2820 = vld [vmem:[#allocation3 + $0x3c] sm:$0xf]
        %v2821 = vld [vmem:[#allocation3 + $0x40] sm:$0xf]
        %v2822 = vld [vmem:[#allocation3 + $0x48] sm:$0xf]
        %v2823 = vld [vmem:[#allocation3 + $0x4c] sm:$0xf]
        %v2824 = vld [vmem:[#allocation3 + $0x54] sm:$0xf]
        %v2825 = vld [vmem:[#allocation3 + $0x58] sm:$0xf]
        %v2826 = vld [vmem:[#allocation3 + $0x60] sm:$0xf]
        %v2827 = vld [vmem:[#allocation3 + $0x64] sm:$0xf]
        %v2828 = vld [vmem:[#allocation3 + $0x6c] sm:$0xf]
        %v2829 = vld [vmem:[#allocation3 + $0x70] sm:$0xf]
        %v2830 = vld [vmem:[#allocation3 + $0x78] sm:$0xf]
        %v2831 = vld [vmem:[#allocation3 + $0x7c] sm:$0xf]
        %v2832 = vld [vmem:[#allocation3 + $0x84] sm:$0xf]
        %v2833 = vld [vmem:[#allocation3 + $0x88] sm:$0xf]
        %v2834 = vld [vmem:[#allocation3 + $0x90] sm:$0xf]
        %v2835 = vld [vmem:[#allocation3 + $0x94] sm:$0xf]
        %v2836 = vld [vmem:[#allocation3 + $0x9c] sm:$0xf]
        %v2837 = vld [vmem:[#allocation3 + $0xa0] sm:$0xf]
        %v2838 = vld [vmem:[#allocation3 + $0xa8] sm:$0xf]
        %v2839 = vld [vmem:[#allocation3 + $0xac] sm:$0xf]
        %v2840 = vld [vmem:[#allocation3 + $0xb4] sm:$0xf]
        %v2841 = vld [vmem:[#allocation3 + $0xb8] sm:$0xf]
        %v2842 = vld [vmem:[#allocation3 + $0xc0] sm:$0xf]
        %v2843 = vld [vmem:[#allocation3 + $0xc4] sm:$0xf]
        %v2844 = vld [vmem:[#allocation3 + $0xcc] sm:$0xf]
        %v2845 = vld [vmem:[#allocation3 + $0xd0] sm:$0xf]
        %v2846 = vld [vmem:[#allocation3 + $0x8] sm:$0x1]
        %v2847 = vld [vmem:[#allocation3 + $0x14] sm:$0x1]
        %v2848 = vld [vmem:[#allocation3 + $0x20] sm:$0x1]
        %v2849 = vld [vmem:[#allocation3 + $0x2c] sm:$0x1]
        %v2850 = vld [vmem:[#allocation3 + $0x38] sm:$0x1]
        %v2851 = vld [vmem:[#allocation3 + $0x44] sm:$0x1]
        %v2852 = vld [vmem:[#allocation3 + $0x50] sm:$0x1]
        %v2853 = vld [vmem:[#allocation3 + $0x5c] sm:$0x1]
        %v2854 = vld [vmem:[#allocation3 + $0x68] sm:$0x1]
        %v2855 = vld [vmem:[#allocation3 + $0x74] sm:$0x1]
        %v2856 = vld [vmem:[#allocation3 + $0x80] sm:$0x1]
        %v2857 = vld [vmem:[#allocation3 + $0x8c] sm:$0x1]
        %v2858 = vld [vmem:[#allocation3 + $0x98] sm:$0x1]
        %v2859 = vld [vmem:[#allocation3 + $0xa4] sm:$0x1]
        %v2860 = vld [vmem:[#allocation3 + $0xb0] sm:$0x1]
        %v2861 = vld [vmem:[#allocation3 + $0xbc] sm:$0x1]
        %v2862 = vld [vmem:[#allocation3 + $0xc8] sm:$0x1]
        %v2863 = vld [vmem:[#allocation3 + $0xd4] sm:$0x1]
        %v2864 = vld [vmem:[#allocation3] sm:$0xe]
        %v2865 = vld [vmem:[#allocation3 + $0xc] sm:$0xe]
        %v2866 = vld [vmem:[#allocation3 + $0x18] sm:$0xe]
        %v2867 = vld [vmem:[#allocation3 + $0x24] sm:$0xe]
        %v2868 = vld [vmem:[#allocation3 + $0x30] sm:$0xe]
        %v2869 = vld [vmem:[#allocation3 + $0x3c] sm:$0xe]
        %v2870 = vld [vmem:[#allocation3 + $0x48] sm:$0xe]
        %v2871 = vld [vmem:[#allocation3 + $0x54] sm:$0xe]
        %v2872 = vld [vmem:[#allocation3 + $0x60] sm:$0xe]
        %v2873 = vld [vmem:[#allocation3 + $0x6c] sm:$0xe]
        %v2874 = vld [vmem:[#allocation3 + $0x78] sm:$0xe]
        %v2875 = vld [vmem:[#allocation3 + $0x84] sm:$0xe]
        %v2876 = vld [vmem:[#allocation3 + $0x90] sm:$0xe]
        %v2877 = vld [vmem:[#allocation3 + $0x9c] sm:$0xe]
        %v2878 = vld [vmem:[#allocation3 + $0xa8] sm:$0xe]
        %v2879 = vld [vmem:[#allocation3 + $0xb4] sm:$0xe]
        %v2880 = vld [vmem:[#allocation3 + $0xc0] sm:$0xe]
        %v2881 = vld [vmem:[#allocation3 + $0xcc] sm:$0xe]
        %v2918 = vunpack.c.l.b16 %v2810
        %v2919 = vunpack.c.l.b16 %v2811
        %v2920 = vunpack.c.l.b16 %v2812
        %v2921 = vunpack.c.l.b16 %v2813
        %v2922 = vunpack.c.l.b16 %v2814
        %v2923 = vunpack.c.l.b16 %v2815
        %v2924 = vunpack.c.l.b16 %v2816
        %v2925 = vunpack.c.l.b16 %v2817
        %v2926 = vunpack.c.l.b16 %v2818
        %v2927 = vunpack.c.l.b16 %v2819
        %v2928 = vunpack.c.l.b16 %v2820
        %v2929 = vunpack.c.l.b16 %v2821
        %v2930 = vunpack.c.l.b16 %v2822
        %v2931 = vunpack.c.l.b16 %v2823
        %v2932 = vunpack.c.l.b16 %v2824
        %v2933 = vunpack.c.l.b16 %v2825
        %v2934 = vunpack.c.l.b16 %v2826
        %v2935 = vunpack.c.l.b16 %v2827
        %v2936 = vunpack.c.l.b16 %v2828
        %v2937 = vunpack.c.l.b16 %v2829
        %v2938 = vunpack.c.l.b16 %v2830
        %v2939 = vunpack.c.l.b16 %v2831
        %v2940 = vunpack.c.l.b16 %v2832
        %v2941 = vunpack.c.l.b16 %v2833
        %v2942 = vunpack.c.l.b16 %v2834
        %v2943 = vunpack.c.l.b16 %v2835
        %v2944 = vunpack.c.l.b16 %v2836
        %v2945 = vunpack.c.l.b16 %v2837
        %v2946 = vunpack.c.l.b16 %v2838
        %v2947 = vunpack.c.l.b16 %v2839
        %v2948 = vunpack.c.l.b16 %v2840
        %v2949 = vunpack.c.l.b16 %v2841
        %v2950 = vunpack.c.l.b16 %v2842
        %v2951 = vunpack.c.l.b16 %v2843
        %v2952 = vunpack.c.l.b16 %v2844
        %v2953 = vunpack.c.l.b16 %v2845
        %v2954 = vpack.c.b16 %v2919, %v2918
        %v2955 = vpack.c.b16 %v2921, %v2920
        %v2956 = vpack.c.b16 %v2923, %v2922
        %v2957 = vpack.c.b16 %v2925, %v2924
        %v2958 = vpack.c.b16 %v2927, %v2926
        %v2959 = vpack.c.b16 %v2929, %v2928
        %v2960 = vpack.c.b16 %v2931, %v2930
        %v2961 = vpack.c.b16 %v2933, %v2932
        %v2962 = vpack.c.b16 %v2935, %v2934
        %v2963 = vpack.c.b16 %v2937, %v2936
        %v2964 = vpack.c.b16 %v2939, %v2938
        %v2965 = vpack.c.b16 %v2941, %v2940
        %v2966 = vpack.c.b16 %v2943, %v2942
        %v2967 = vpack.c.b16 %v2945, %v2944
        %v2968 = vpack.c.b16 %v2947, %v2946
        %v2969 = vpack.c.b16 %v2949, %v2948
        %v2970 = vpack.c.b16 %v2951, %v2950
        %v2971 = vpack.c.b16 %v2953, %v2952
        %v2990 = vunpack.c.l.b16 %v2846
        %v2991 = vunpack.c.l.b16 %v2847
        %v2992 = vunpack.c.l.b16 %v2848
        %v2993 = vunpack.c.l.b16 %v2849
        %v2994 = vunpack.c.l.b16 %v2850
        %v2995 = vunpack.c.l.b16 %v2851
        %v2996 = vunpack.c.l.b16 %v2852
        %v2997 = vunpack.c.l.b16 %v2853
        %v2998 = vunpack.c.l.b16 %v2854
        %v2999 = vunpack.c.l.b16 %v2855
        %v3000 = vunpack.c.l.b16 %v2856
        %v3001 = vunpack.c.l.b16 %v2857
        %v3002 = vunpack.c.l.b16 %v2858
        %v3003 = vunpack.c.l.b16 %v2859
        %v3004 = vunpack.c.l.b16 %v2860
        %v3005 = vunpack.c.l.b16 %v2861
        %v3006 = vunpack.c.l.b16 %v2862
        %v3007 = vunpack.c.l.b16 %v2863
        %v3008 = vpack.c.b16 %v2990, %v2990
        %v3009 = vpack.c.b16 %v2991, %v2991
        %v3010 = vpack.c.b16 %v2992, %v2992
        %v3011 = vpack.c.b16 %v2993, %v2993
        %v3012 = vpack.c.b16 %v2994, %v2994
        %v3013 = vpack.c.b16 %v2995, %v2995
        %v3014 = vpack.c.b16 %v2996, %v2996
        %v3015 = vpack.c.b16 %v2997, %v2997
        %v3016 = vpack.c.b16 %v2998, %v2998
        %v3017 = vpack.c.b16 %v2999, %v2999
        %v3018 = vpack.c.b16 %v3000, %v3000
        %v3019 = vpack.c.b16 %v3001, %v3001
        %v3020 = vpack.c.b16 %v3002, %v3002
        %v3021 = vpack.c.b16 %v3003, %v3003
        %v3022 = vpack.c.b16 %v3004, %v3004
        %v3023 = vpack.c.b16 %v3005, %v3005
        %v3024 = vpack.c.b16 %v3006, %v3006
        %v3025 = vpack.c.b16 %v3007, %v3007
        %v3027 = vshrl.u32 %v2954, 16
        %v3029 = vshll.u32 %v2954, 16
        %v3031 = vrot.slane %v3029, 1
        %v3032 = vor.u32 %v3027, %v3031
        %v3034 = vshll.u32 %v3008, 16
        %v3036 = vrot.slane %v3034, 1
        %v3037 = vsel %vm1031, %v3032, %v3036
        %v3039 = vshrl.u32 %v2955, 16
        %v3041 = vshll.u32 %v2955, 16
        %v3043 = vrot.slane %v3041, 1
        %v3044 = vor.u32 %v3039, %v3043
        %v3046 = vshll.u32 %v3009, 16
        %v3048 = vrot.slane %v3046, 1
        %v3049 = vsel %vm1031, %v3044, %v3048
        %v3051 = vshrl.u32 %v2956, 16
        %v3053 = vshll.u32 %v2956, 16
        %v3055 = vrot.slane %v3053, 1
        %v3056 = vor.u32 %v3051, %v3055
        %v3058 = vshll.u32 %v3010, 16
        %v3060 = vrot.slane %v3058, 1
        %v3061 = vsel %vm1031, %v3056, %v3060
        %v3063 = vshrl.u32 %v2957, 16
        %v3065 = vshll.u32 %v2957, 16
        %v3067 = vrot.slane %v3065, 1
        %v3068 = vor.u32 %v3063, %v3067
        %v3070 = vshll.u32 %v3011, 16
        %v3072 = vrot.slane %v3070, 1
        %v3073 = vsel %vm1031, %v3068, %v3072
        %v3075 = vshrl.u32 %v2958, 16
        %v3077 = vshll.u32 %v2958, 16
        %v3079 = vrot.slane %v3077, 1
        %v3080 = vor.u32 %v3075, %v3079
        %v3082 = vshll.u32 %v3012, 16
        %v3084 = vrot.slane %v3082, 1
        %v3085 = vsel %vm1031, %v3080, %v3084
        %v3087 = vshrl.u32 %v2959, 16
        %v3089 = vshll.u32 %v2959, 16
        %v3091 = vrot.slane %v3089, 1
        %v3092 = vor.u32 %v3087, %v3091
        %v3094 = vshll.u32 %v3013, 16
        %v3096 = vrot.slane %v3094, 1
        %v3097 = vsel %vm1031, %v3092, %v3096
        %v3099 = vshrl.u32 %v2960, 16
        %v3101 = vshll.u32 %v2960, 16
        %v3103 = vrot.slane %v3101, 1
        %v3104 = vor.u32 %v3099, %v3103
        %v3106 = vshll.u32 %v3014, 16
        %v3108 = vrot.slane %v3106, 1
        %v3109 = vsel %vm1031, %v3104, %v3108
        %v3111 = vshrl.u32 %v2961, 16
        %v3113 = vshll.u32 %v2961, 16
        %v3115 = vrot.slane %v3113, 1
        %v3116 = vor.u32 %v3111, %v3115
        %v3118 = vshll.u32 %v3015, 16
        %v3120 = vrot.slane %v3118, 1
        %v3121 = vsel %vm1031, %v3116, %v3120
        %v3123 = vshrl.u32 %v2962, 16
        %v3125 = vshll.u32 %v2962, 16
        %v3127 = vrot.slane %v3125, 1
        %v3128 = vor.u32 %v3123, %v3127
        %v3130 = vshll.u32 %v3016, 16
        %v3132 = vrot.slane %v3130, 1
        %v3133 = vsel %vm1031, %v3128, %v3132
        %v3135 = vshrl.u32 %v2963, 16
        %v3137 = vshll.u32 %v2963, 16
        %v3139 = vrot.slane %v3137, 1
        %v3140 = vor.u32 %v3135, %v3139
        %v3142 = vshll.u32 %v3017, 16
        %v3144 = vrot.slane %v3142, 1
        %v3145 = vsel %vm1031, %v3140, %v3144
        %v3147 = vshrl.u32 %v2964, 16
        %v3149 = vshll.u32 %v2964, 16
        %v3151 = vrot.slane %v3149, 1
        %v3152 = vor.u32 %v3147, %v3151
        %v3154 = vshll.u32 %v3018, 16
        %v3156 = vrot.slane %v3154, 1
        %v3157 = vsel %vm1031, %v3152, %v3156
        %v3159 = vshrl.u32 %v2965, 16
        %v3161 = vshll.u32 %v2965, 16
        %v3163 = vrot.slane %v3161, 1
        %v3164 = vor.u32 %v3159, %v3163
        %v3166 = vshll.u32 %v3019, 16
        %v3168 = vrot.slane %v3166, 1
        %v3169 = vsel %vm1031, %v3164, %v3168
        %v3171 = vshrl.u32 %v2966, 16
        %v3173 = vshll.u32 %v2966, 16
        %v3175 = vrot.slane %v3173, 1
        %v3176 = vor.u32 %v3171, %v3175
        %v3178 = vshll.u32 %v3020, 16
        %v3180 = vrot.slane %v3178, 1
        %v3181 = vsel %vm1031, %v3176, %v3180
        %v3183 = vshrl.u32 %v2967, 16
        %v3185 = vshll.u32 %v2967, 16
        %v3187 = vrot.slane %v3185, 1
        %v3188 = vor.u32 %v3183, %v3187
        %v3190 = vshll.u32 %v3021, 16
        %v3192 = vrot.slane %v3190, 1
        %v3193 = vsel %vm1031, %v3188, %v3192
        %v3195 = vshrl.u32 %v2968, 16
        %v3197 = vshll.u32 %v2968, 16
        %v3199 = vrot.slane %v3197, 1
        %v3200 = vor.u32 %v3195, %v3199
        %v3202 = vshll.u32 %v3022, 16
        %v3204 = vrot.slane %v3202, 1
        %v3205 = vsel %vm1031, %v3200, %v3204
        %v3207 = vshrl.u32 %v2969, 16
        %v3209 = vshll.u32 %v2969, 16
        %v3211 = vrot.slane %v3209, 1
        %v3212 = vor.u32 %v3207, %v3211
        %v3214 = vshll.u32 %v3023, 16
        %v3216 = vrot.slane %v3214, 1
        %v3217 = vsel %vm1031, %v3212, %v3216
        %v3219 = vshrl.u32 %v2970, 16
        %v3221 = vshll.u32 %v2970, 16
        %v3223 = vrot.slane %v3221, 1
        %v3224 = vor.u32 %v3219, %v3223
        %v3226 = vshll.u32 %v3024, 16
        %v3228 = vrot.slane %v3226, 1
        %v3229 = vsel %vm1031, %v3224, %v3228
        %v3231 = vshrl.u32 %v2971, 16
        %v3233 = vshll.u32 %v2971, 16
        %v3235 = vrot.slane %v3233, 1
        %v3236 = vor.u32 %v3231, %v3235
        %v3238 = vshll.u32 %v3025, 16
        %v3240 = vrot.slane %v3238, 1
        %v3241 = vsel %vm1031, %v3236, %v3240
        %3242 = vrot.lane.b32.xlu0 %v3037, 16
        %v3243 = vpop.permute.xlu0 %3242
        %3244 = vrot.lane.b32.xlu0 %v3049, 16
        %v3245 = vpop.permute.xlu0 %3244
        %3246 = vrot.lane.b32.xlu0 %v3061, 16
        %v3247 = vpop.permute.xlu0 %3246
        %3248 = vrot.lane.b32.xlu0 %v3073, 16
        %v3249 = vpop.permute.xlu0 %3248
        %3250 = vrot.lane.b32.xlu0 %v3085, 16
        %v3251 = vpop.permute.xlu0 %3250
        %3252 = vrot.lane.b32.xlu0 %v3097, 16
        %v3253 = vpop.permute.xlu0 %3252
        %3254 = vrot.lane.b32.xlu0 %v3109, 16
        %v3255 = vpop.permute.xlu0 %3254
        %3256 = vrot.lane.b32.xlu0 %v3121, 16
        %v3257 = vpop.permute.xlu0 %3256
        %3258 = vrot.lane.b32.xlu0 %v3133, 16
        %v3259 = vpop.permute.xlu0 %3258
        %3260 = vrot.lane.b32.xlu0 %v3145, 16
        %v3261 = vpop.permute.xlu0 %3260
        %3262 = vrot.lane.b32.xlu0 %v3157, 16
        %v3263 = vpop.permute.xlu0 %3262
        %3264 = vrot.lane.b32.xlu0 %v3169, 16
        %v3265 = vpop.permute.xlu0 %3264
        %3266 = vrot.lane.b32.xlu0 %v3181, 16
        %v3267 = vpop.permute.xlu0 %3266
        %3268 = vrot.lane.b32.xlu0 %v3193, 16
        %v3269 = vpop.permute.xlu0 %3268
        %3270 = vrot.lane.b32.xlu0 %v3205, 16
        %v3271 = vpop.permute.xlu0 %3270
        %3272 = vrot.lane.b32.xlu0 %v3217, 16
        %v3273 = vpop.permute.xlu0 %3272
        %3274 = vrot.lane.b32.xlu0 %v3229, 16
        %v3275 = vpop.permute.xlu0 %3274
        %3276 = vrot.lane.b32.xlu0 %v3241, 16
        %v3277 = vpop.permute.xlu0 %3276
        %v3296 = vunpack.c.l.b16 %v2864
        %v3297 = vunpack.c.l.b16 %v2865
        %v3298 = vunpack.c.l.b16 %v2866
        %v3299 = vunpack.c.l.b16 %v2867
        %v3300 = vunpack.c.l.b16 %v2868
        %v3301 = vunpack.c.l.b16 %v2869
        %v3302 = vunpack.c.l.b16 %v2870
        %v3303 = vunpack.c.l.b16 %v2871
        %v3304 = vunpack.c.l.b16 %v2872
        %v3305 = vunpack.c.l.b16 %v2873
        %v3306 = vunpack.c.l.b16 %v2874
        %v3307 = vunpack.c.l.b16 %v2875
        %v3308 = vunpack.c.l.b16 %v2876
        %v3309 = vunpack.c.l.b16 %v2877
        %v3310 = vunpack.c.l.b16 %v2878
        %v3311 = vunpack.c.l.b16 %v2879
        %v3312 = vunpack.c.l.b16 %v2880
        %v3313 = vunpack.c.l.b16 %v2881
        %v3314 = vpack.c.b16 %v2919, %v3296
        %v3315 = vpack.c.b16 %v2921, %v3297
        %v3316 = vpack.c.b16 %v2923, %v3298
        %v3317 = vpack.c.b16 %v2925, %v3299
        %v3318 = vpack.c.b16 %v2927, %v3300
        %v3319 = vpack.c.b16 %v2929, %v3301
        %v3320 = vpack.c.b16 %v2931, %v3302
        %v3321 = vpack.c.b16 %v2933, %v3303
        %v3322 = vpack.c.b16 %v2935, %v3304
        %v3323 = vpack.c.b16 %v2937, %v3305
        %v3324 = vpack.c.b16 %v2939, %v3306
        %v3325 = vpack.c.b16 %v2941, %v3307
        %v3326 = vpack.c.b16 %v2943, %v3308
        %v3327 = vpack.c.b16 %v2945, %v3309
        %v3328 = vpack.c.b16 %v2947, %v3310
        %v3329 = vpack.c.b16 %v2949, %v3311
        %v3330 = vpack.c.b16 %v2951, %v3312
        %v3331 = vpack.c.b16 %v2953, %v3313
        %v3332 = vrot.slane %v3314, 1
        %v3333 = vrot.slane %v3008, 1
        %v3334 = vsel %vm1338, %v3332, %v3333
        %v3335 = vrot.slane %v3315, 1
        %v3336 = vrot.slane %v3009, 1
        %v3337 = vsel %vm1338, %v3335, %v3336
        %v3338 = vrot.slane %v3316, 1
        %v3339 = vrot.slane %v3010, 1
        %v3340 = vsel %vm1338, %v3338, %v3339
        %v3341 = vrot.slane %v3317, 1
        %v3342 = vrot.slane %v3011, 1
        %v3343 = vsel %vm1338, %v3341, %v3342
        %v3344 = vrot.slane %v3318, 1
        %v3345 = vrot.slane %v3012, 1
        %v3346 = vsel %vm1338, %v3344, %v3345
        %v3347 = vrot.slane %v3319, 1
        %v3348 = vrot.slane %v3013, 1
        %v3349 = vsel %vm1338, %v3347, %v3348
        %v3350 = vrot.slane %v3320, 1
        %v3351 = vrot.slane %v3014, 1
        %v3352 = vsel %vm1338, %v3350, %v3351
        %v3353 = vrot.slane %v3321, 1
        %v3354 = vrot.slane %v3015, 1
        %v3355 = vsel %vm1338, %v3353, %v3354
        %v3356 = vrot.slane %v3322, 1
        %v3357 = vrot.slane %v3016, 1
        %v3358 = vsel %vm1338, %v3356, %v3357
        %v3359 = vrot.slane %v3323, 1
        %v3360 = vrot.slane %v3017, 1
        %v3361 = vsel %vm1338, %v3359, %v3360
        %v3362 = vrot.slane %v3324, 1
        %v3363 = vrot.slane %v3018, 1
        %v3364 = vsel %vm1338, %v3362, %v3363
        %v3365 = vrot.slane %v3325, 1
        %v3366 = vrot.slane %v3019, 1
        %v3367 = vsel %vm1338, %v3365, %v3366
        %v3368 = vrot.slane %v3326, 1
        %v3369 = vrot.slane %v3020, 1
        %v3370 = vsel %vm1338, %v3368, %v3369
        %v3371 = vrot.slane %v3327, 1
        %v3372 = vrot.slane %v3021, 1
        %v3373 = vsel %vm1338, %v3371, %v3372
        %v3374 = vrot.slane %v3328, 1
        %v3375 = vrot.slane %v3022, 1
        %v3376 = vsel %vm1338, %v3374, %v3375
        %v3377 = vrot.slane %v3329, 1
        %v3378 = vrot.slane %v3023, 1
        %v3379 = vsel %vm1338, %v3377, %v3378
        %v3380 = vrot.slane %v3330, 1
        %v3381 = vrot.slane %v3024, 1
        %v3382 = vsel %vm1338, %v3380, %v3381
        %v3383 = vrot.slane %v3331, 1
        %v3384 = vrot.slane %v3025, 1
        %v3385 = vsel %vm1338, %v3383, %v3384
        %3386 = vrot.lane.b32.xlu0 %v3334, 32
        %v3387 = vpop.permute.xlu0 %3386
        %3388 = vrot.lane.b32.xlu0 %v3337, 32
        %v3389 = vpop.permute.xlu0 %3388
        %3390 = vrot.lane.b32.xlu0 %v3340, 32
        %v3391 = vpop.permute.xlu0 %3390
        %3392 = vrot.lane.b32.xlu0 %v3343, 32
        %v3393 = vpop.permute.xlu0 %3392
        %3394 = vrot.lane.b32.xlu0 %v3346, 32
        %v3395 = vpop.permute.xlu0 %3394
        %3396 = vrot.lane.b32.xlu0 %v3349, 32
        %v3397 = vpop.permute.xlu0 %3396
        %3398 = vrot.lane.b32.xlu0 %v3352, 32
        %v3399 = vpop.permute.xlu0 %3398
        %3400 = vrot.lane.b32.xlu0 %v3355, 32
        %v3401 = vpop.permute.xlu0 %3400
        %3402 = vrot.lane.b32.xlu0 %v3358, 32
        %v3403 = vpop.permute.xlu0 %3402
        %3404 = vrot.lane.b32.xlu0 %v3361, 32
        %v3405 = vpop.permute.xlu0 %3404
        %3406 = vrot.lane.b32.xlu0 %v3364, 32
        %v3407 = vpop.permute.xlu0 %3406
        %3408 = vrot.lane.b32.xlu0 %v3367, 32
        %v3409 = vpop.permute.xlu0 %3408
        %3410 = vrot.lane.b32.xlu0 %v3370, 32
        %v3411 = vpop.permute.xlu0 %3410
        %3412 = vrot.lane.b32.xlu0 %v3373, 32
        %v3413 = vpop.permute.xlu0 %3412
        %3414 = vrot.lane.b32.xlu0 %v3376, 32
        %v3415 = vpop.permute.xlu0 %3414
        %3416 = vrot.lane.b32.xlu0 %v3379, 32
        %v3417 = vpop.permute.xlu0 %3416
        %3418 = vrot.lane.b32.xlu0 %v3382, 32
        %v3419 = vpop.permute.xlu0 %3418
        %3420 = vrot.lane.b32.xlu0 %v3385, 32
        %v3421 = vpop.permute.xlu0 %3420
        %vm3422 = vcmask 130048
        %v3424 = vsel %vm3422, %v2954, %v3243
        %v3426 = vsel %vm3422, %v2955, %v3245
        %v3428 = vsel %vm3422, %v2956, %v3247
        %v3430 = vsel %vm3422, %v2957, %v3249
        %v3432 = vsel %vm3422, %v2958, %v3251
        %v3434 = vsel %vm3422, %v2959, %v3253
        %v3436 = vsel %vm3422, %v2960, %v3255
        %v3438 = vsel %vm3422, %v2961, %v3257
        %v3440 = vsel %vm3422, %v2962, %v3259
        %v3442 = vsel %vm3422, %v2963, %v3261
        %v3444 = vsel %vm3422, %v2964, %v3263
        %v3446 = vsel %vm3422, %v2965, %v3265
        %v3448 = vsel %vm3422, %v2966, %v3267
        %v3450 = vsel %vm3422, %v2967, %v3269
        %v3452 = vsel %vm3422, %v2968, %v3271
        %v3454 = vsel %vm3422, %v2969, %v3273
        %v3456 = vsel %vm3422, %v2970, %v3275
        %v3458 = vsel %vm3422, %v2971, %v3277
        %vm3459 = vcmask 261120
        %v3461 = vsel %vm3459, %v3424, %v3387
        %v3463 = vsel %vm3459, %v3426, %v3389
        %v3465 = vsel %vm3459, %v3428, %v3391
        %v3467 = vsel %vm3459, %v3430, %v3393
        %v3469 = vsel %vm3459, %v3432, %v3395
        %v3471 = vsel %vm3459, %v3434, %v3397
        %v3473 = vsel %vm3459, %v3436, %v3399
        %v3475 = vsel %vm3459, %v3438, %v3401
        %v3477 = vsel %vm3459, %v3440, %v3403
        %v3479 = vsel %vm3459, %v3442, %v3405
        %v3481 = vsel %vm3459, %v3444, %v3407
        %v3483 = vsel %vm3459, %v3446, %v3409
        %v3485 = vsel %vm3459, %v3448, %v3411
        %v3487 = vsel %vm3459, %v3450, %v3413
        %v3489 = vsel %vm3459, %v3452, %v3415
        %v3491 = vsel %vm3459, %v3454, %v3417
        %v3493 = vsel %vm3459, %v3456, %v3419
        %v3495 = vsel %vm3459, %v3458, %v3421
        %v3496 = vld [vmem:[%s3] sm:$0xf]
        %v3497 = vld [vmem:[%s3 + $0x4] sm:$0xf]
        %v3498 = vld [vmem:[%s3 + $0x8] sm:$0xf]
        %v3499 = vld [vmem:[%s3 + $0xc] sm:$0xf]
        %v3500 = vld [vmem:[%s3 + $0x10] sm:$0xf]
        %v3501 = vld [vmem:[%s3 + $0x14] sm:$0xf]
        %s3502 = scalar_lea.vmem %s3, 24
        %v3503 = vld [vmem:[%s3502] sm:$0xf]
        %v3504 = vld [vmem:[%s3502 + $0x4] sm:$0xf]
        %v3505 = vld [vmem:[%s3502 + $0x8] sm:$0xf]
        %v3506 = vld [vmem:[%s3502 + $0xc] sm:$0xf]
        %v3507 = vld [vmem:[%s3502 + $0x10] sm:$0xf]
        %v3508 = vld [vmem:[%s3502 + $0x14] sm:$0xf]
        %v3515 = vunpack.c.l.b16 %v3503
        %v3516 = vunpack.c.l.b16 %v3504
        %v3517 = vunpack.c.l.b16 %v3505
        %v3518 = vunpack.c.l.b16 %v3506
        %v3519 = vunpack.c.l.b16 %v3507
        %v3520 = vunpack.c.l.b16 %v3508
        %v3521 = vpack.c.b16 %v3516, %v3515
        %v3522 = vpack.c.b16 %v3518, %v3517
        %v3523 = vpack.c.b16 %v3520, %v3519
        %vm3527 = vcmask 392192
        %v3528 = vsel %vm3527, %v3463, 0
        %v3530 = vsel %vm3527, %v3465, 0
        %v3532 = vsel %vm3527, %v3467, 0
        %v3534 = vsel %vm3527, %v3469, 0
        %v3536 = vsel %vm3527, %v3471, 0
        %v3538 = vsel %vm3527, %v3473, 0
        %v3540 = vsel %vm3527, %v3475, 0
        %v3542 = vsel %vm3527, %v3477, 0
        %v3544 = vsel %vm3527, %v3479, 0
        %v3546 = vsel %vm3527, %v3481, 0
        %v3548 = vsel %vm3527, %v3483, 0
        %v3550 = vsel %vm3527, %v3485, 0
        %v3552 = vsel %vm3527, %v3487, 0
        %v3554 = vsel %vm3527, %v3489, 0
        %v3556 = vsel %vm3527, %v3491, 0
        %v3558 = vsel %vm3527, %v3493, 0
        %3560 = vmatprep.subr.bf16.mxu0 0
        %3561 = vmatpush1.bf16.msra.mxu0 %v3521
        %3562 = vmatprep.subr.bf16.mxu0 0
        %3563 = vmatpush1.bf16.msra.mxu0 %v3522
        %3564 = vmatprep.subr.bf16.mxu0 0
        %3565 = vmatpush1.bf16.msra.mxu0 %v3523
        %3566 = vmatprep.subr.bf16.mxu0 0
        %3567 = vmatpush1.bf16.msra.mxu0 0
        %3568 = vmatprep.subr.bf16.mxu0 0
        %3569 = vmatpush1.bf16.msra.mxu0 0
        %3570 = vmatprep.subr.bf16.mxu0 0
        %3571 = vmatpush1.bf16.msra.mxu0 0
        %3572 = vmatprep.subr.bf16.mxu0 0
        %3573 = vmatpush1.bf16.msra.mxu0 0
        %3574 = vmatprep.subr.bf16.mxu0 0
        %3575 = vmatpush1.bf16.msra.mxu0 0
        %3576 = vmatprep.subr.bf16.mxu0 0
        %3577 = vmatpush1.bf16.msra.mxu0 0
        %3578 = vmatprep.subr.bf16.mxu0 0
        %3579 = vmatpush1.bf16.msra.mxu0 0
        %3580 = vmatprep.subr.bf16.mxu0 0
        %3581 = vmatpush1.bf16.msra.mxu0 0
        %3582 = vmatprep.subr.bf16.mxu0 0
        %3583 = vmatpush1.bf16.msra.mxu0 0
        %3584 = vmatprep.subr.bf16.mxu0 0
        %3585 = vmatpush1.bf16.msra.mxu0 0
        %3586 = vmatprep.subr.bf16.mxu0 0
        %3587 = vmatpush1.bf16.msra.mxu0 0
        %3588 = vmatprep.subr.bf16.mxu0 0
        %3589 = vmatpush1.bf16.msra.mxu0 0
        %3590 = vmatprep.subr.bf16.mxu0 0
        %3591 = vmatpush1.bf16.msra.mxu0 0
        %3592 = vmatprep.mubr.bf16.mxu0 0
        %3593 = vmatmul.mubr.bf16.gmra.mrb[0].mxu0 %v3528
        %v3594 = vpop.f32.mrb[0].mxu0
        %v3595 = vadd.f32 0.0, %v3594
        %v3596 = vpop.f32.mrb[0].mxu0
        %v3597 = vpop.f32.mrb[0].mxu0
        %v3598 = vadd.f32 0.0, %v3597
        %v3599 = vpop.f32.mrb[0].mxu0
        %3600 = vmatprep.mubr.bf16.mxu0 0
        %3601 = vmatmul.mubr.bf16.gmra.mrb[0].mxu0 %v3530
        %v3602 = vpop.f32.mrb[0].mxu0
        %v3603 = vadd.f32 0.0, %v3602
        %v3604 = vpop.f32.mrb[0].mxu0
        %v3605 = vpop.f32.mrb[0].mxu0
        %v3606 = vadd.f32 0.0, %v3605
        %v3607 = vpop.f32.mrb[0].mxu0
        %3608 = vmatprep.mubr.bf16.mxu0 0
        %3609 = vmatmul.mubr.bf16.gmra.mrb[0].mxu0 %v3532
        %v3610 = vpop.f32.mrb[0].mxu0
        %v3611 = vadd.f32 0.0, %v3610
        %v3612 = vpop.f32.mrb[0].mxu0
        %v3613 = vpop.f32.mrb[0].mxu0
        %v3614 = vadd.f32 0.0, %v3613
        %v3615 = vpop.f32.mrb[0].mxu0
        %3616 = vmatprep.mubr.bf16.mxu0 0
        %3617 = vmatmul.mubr.bf16.gmra.mrb[0].mxu0 %v3534
        %v3618 = vpop.f32.mrb[0].mxu0
        %v3619 = vadd.f32 0.0, %v3618
        %v3620 = vpop.f32.mrb[0].mxu0
        %v3621 = vpop.f32.mrb[0].mxu0
        %v3622 = vadd.f32 0.0, %v3621
        %v3623 = vpop.f32.mrb[0].mxu0
        %3624 = vmatprep.mubr.bf16.mxu0 0
        %3625 = vmatmul.mubr.bf16.gmra.mrb[0].mxu0 %v3536
        %v3626 = vpop.f32.mrb[0].mxu0
        %v3627 = vadd.f32 0.0, %v3626
        %v3628 = vpop.f32.mrb[0].mxu0
        %v3629 = vpop.f32.mrb[0].mxu0
        %v3630 = vadd.f32 0.0, %v3629
        %v3631 = vpop.f32.mrb[0].mxu0
        %3632 = vmatprep.mubr.bf16.mxu0 0
        %3633 = vmatmul.mubr.bf16.gmra.mrb[0].mxu0 %v3538
        %v3634 = vpop.f32.mrb[0].mxu0
        %v3635 = vadd.f32 0.0, %v3634
        %v3636 = vpop.f32.mrb[0].mxu0
        %v3637 = vpop.f32.mrb[0].mxu0
        %v3638 = vadd.f32 0.0, %v3637
        %v3639 = vpop.f32.mrb[0].mxu0
        %3640 = vmatprep.mubr.bf16.mxu0 0
        %3641 = vmatmul.mubr.bf16.gmra.mrb[0].mxu0 %v3540
        %v3642 = vpop.f32.mrb[0].mxu0
        %v3643 = vadd.f32 0.0, %v3642
        %v3644 = vpop.f32.mrb[0].mxu0
        %v3645 = vpop.f32.mrb[0].mxu0
        %v3646 = vadd.f32 0.0, %v3645
        %v3647 = vpop.f32.mrb[0].mxu0
        %3648 = vmatprep.mubr.bf16.mxu0 0
        %3649 = vmatmul.mubr.bf16.gmra.mrb[0].mxu0 %v3542
        %v3650 = vpop.f32.mrb[0].mxu0
        %v3651 = vadd.f32 0.0, %v3650
        %v3652 = vpop.f32.mrb[0].mxu0
        %v3653 = vpop.f32.mrb[0].mxu0
        %v3654 = vadd.f32 0.0, %v3653
        %v3655 = vpop.f32.mrb[0].mxu0
        %3656 = vmatprep.mubr.bf16.mxu0 0
        %3657 = vmatmul.mubr.bf16.gmra.mrb[0].mxu0 %v3544
        %v3658 = vpop.f32.mrb[0].mxu0
        %v3659 = vadd.f32 0.0, %v3658
        %v3660 = vpop.f32.mrb[0].mxu0
        %v3661 = vpop.f32.mrb[0].mxu0
        %v3662 = vadd.f32 0.0, %v3661
        %v3663 = vpop.f32.mrb[0].mxu0
        %3664 = vmatprep.mubr.bf16.mxu0 0
        %3665 = vmatmul.mubr.bf16.gmra.mrb[0].mxu0 %v3546
        %v3666 = vpop.f32.mrb[0].mxu0
        %v3667 = vadd.f32 0.0, %v3666
        %v3668 = vpop.f32.mrb[0].mxu0
        %v3669 = vpop.f32.mrb[0].mxu0
        %v3670 = vadd.f32 0.0, %v3669
        %v3671 = vpop.f32.mrb[0].mxu0
        %3672 = vmatprep.mubr.bf16.mxu0 0
        %3673 = vmatmul.mubr.bf16.gmra.mrb[0].mxu0 %v3548
        %v3674 = vpop.f32.mrb[0].mxu0
        %v3675 = vadd.f32 0.0, %v3674
        %v3676 = vpop.f32.mrb[0].mxu0
        %v3677 = vpop.f32.mrb[0].mxu0
        %v3678 = vadd.f32 0.0, %v3677
        %v3679 = vpop.f32.mrb[0].mxu0
        %3680 = vmatprep.mubr.bf16.mxu0 0
        %3681 = vmatmul.mubr.bf16.gmra.mrb[0].mxu0 %v3550
        %v3682 = vpop.f32.mrb[0].mxu0
        %v3683 = vadd.f32 0.0, %v3682
        %v3684 = vpop.f32.mrb[0].mxu0
        %v3685 = vpop.f32.mrb[0].mxu0
        %v3686 = vadd.f32 0.0, %v3685
        %v3687 = vpop.f32.mrb[0].mxu0
        %3688 = vmatprep.mubr.bf16.mxu0 0
        %3689 = vmatmul.mubr.bf16.gmra.mrb[0].mxu0 %v3552
        %v3690 = vpop.f32.mrb[0].mxu0
        %v3691 = vadd.f32 0.0, %v3690
        %v3692 = vpop.f32.mrb[0].mxu0
        %v3693 = vpop.f32.mrb[0].mxu0
        %v3694 = vadd.f32 0.0, %v3693
        %v3695 = vpop.f32.mrb[0].mxu0
        %3696 = vmatprep.mubr.bf16.mxu0 0
        %3697 = vmatmul.mubr.bf16.gmra.mrb[0].mxu0 %v3554
        %v3698 = vpop.f32.mrb[0].mxu0
        %v3699 = vadd.f32 0.0, %v3698
        %v3700 = vpop.f32.mrb[0].mxu0
        %v3701 = vpop.f32.mrb[0].mxu0
        %v3702 = vadd.f32 0.0, %v3701
        %v3703 = vpop.f32.mrb[0].mxu0
        %3704 = vmatprep.mubr.bf16.mxu0 0
        %3705 = vmatmul.mubr.bf16.gmra.mrb[0].mxu0 %v3556
        %v3706 = vpop.f32.mrb[0].mxu0
        %v3707 = vadd.f32 0.0, %v3706
        %v3708 = vpop.f32.mrb[0].mxu0
        %v3709 = vpop.f32.mrb[0].mxu0
        %v3710 = vadd.f32 0.0, %v3709
        %v3711 = vpop.f32.mrb[0].mxu0
        %3712 = vmatprep.mubr.bf16.mxu0 0
        %3713 = vmatmul.mubr.bf16.gmra.mrb[0].mxu0 %v3558
        %v3714 = vpop.f32.mrb[0].mxu0
        %v3715 = vadd.f32 0.0, %v3714
        %v3716 = vpop.f32.mrb[0].mxu0
        %v3717 = vpop.f32.mrb[0].mxu0
        %v3718 = vadd.f32 0.0, %v3717
        %v3719 = vpop.f32.mrb[0].mxu0
        %3720 = vdwg.mxu0
        %v3727 = vunpack.c.l.b16 %v3496
        %v3728 = vunpack.c.l.b16 %v3497
        %v3729 = vunpack.c.l.b16 %v3498
        %v3730 = vunpack.c.l.b16 %v3499
        %v3731 = vunpack.c.l.b16 %v3500
        %v3732 = vunpack.c.l.b16 %v3501
        %v3733 = vpack.c.b16 %v3728, %v3727
        %v3734 = vpack.c.b16 %v3730, %v3729
        %v3735 = vpack.c.b16 %v3732, %v3731
        %v3739 = vsel %vm3527, %v3461, 0
        %3741 = vmatprep.subr.bf16.mxu0 0
        %3742 = vmatpush1.bf16.msra.mxu0 %v3733
        %3743 = vmatprep.subr.bf16.mxu0 0
        %3744 = vmatpush1.bf16.msra.mxu0 %v3734
        %3745 = vmatprep.subr.bf16.mxu0 0
        %3746 = vmatpush1.bf16.msra.mxu0 %v3735
        %3747 = vmatprep.subr.bf16.mxu0 0
        %3748 = vmatpush1.bf16.msra.mxu0 0
        %3749 = vmatprep.subr.bf16.mxu0 0
        %3750 = vmatpush1.bf16.msra.mxu0 0
        %3751 = vmatprep.subr.bf16.mxu0 0
        %3752 = vmatpush1.bf16.msra.mxu0 0
        %3753 = vmatprep.subr.bf16.mxu0 0
        %3754 = vmatpush1.bf16.msra.mxu0 0
        %3755 = vmatprep.subr.bf16.mxu0 0
        %3756 = vmatpush1.bf16.msra.mxu0 0
        %3757 = vmatprep.subr.bf16.mxu0 0
        %3758 = vmatpush1.bf16.msra.mxu0 0
        %3759 = vmatprep.subr.bf16.mxu0 0
        %3760 = vmatpush1.bf16.msra.mxu0 0
        %3761 = vmatprep.subr.bf16.mxu0 0
        %3762 = vmatpush1.bf16.msra.mxu0 0
        %3763 = vmatprep.subr.bf16.mxu0 0
        %3764 = vmatpush1.bf16.msra.mxu0 0
        %3765 = vmatprep.subr.bf16.mxu0 0
        %3766 = vmatpush1.bf16.msra.mxu0 0
        %3767 = vmatprep.subr.bf16.mxu0 0
        %3768 = vmatpush1.bf16.msra.mxu0 0
        %3769 = vmatprep.subr.bf16.mxu0 0
        %3770 = vmatpush1.bf16.msra.mxu0 0
        %3771 = vmatprep.subr.bf16.mxu0 0
        %3772 = vmatpush1.bf16.msra.mxu0 0
        %3773 = vmatprep.mubr.bf16.mxu0 0
        %3774 = vmatmul.mubr.bf16.gmra.mrb[0].mxu0 %v3739
        %v3775 = vpop.f32.mrb[0].mxu0
        %v3776 = vadd.f32 %v3595, %v3775
        %v3777 = vpop.f32.mrb[0].mxu0
        %v3778 = vpop.f32.mrb[0].mxu0
        %v3779 = vadd.f32 %v3598, %v3778
        %v3780 = vpop.f32.mrb[0].mxu0
        %3781 = vmatprep.mubr.bf16.mxu0 0
        %3782 = vmatmul.mubr.bf16.gmra.mrb[0].mxu0 %v3528
        %v3783 = vpop.f32.mrb[0].mxu0
        %v3784 = vadd.f32 %v3603, %v3783
        %v3785 = vpop.f32.mrb[0].mxu0
        %v3786 = vpop.f32.mrb[0].mxu0
        %v3787 = vadd.f32 %v3606, %v3786
        %v3788 = vpop.f32.mrb[0].mxu0
        %3789 = vmatprep.mubr.bf16.mxu0 0
        %3790 = vmatmul.mubr.bf16.gmra.mrb[0].mxu0 %v3530
        %v3791 = vpop.f32.mrb[0].mxu0
        %v3792 = vadd.f32 %v3611, %v3791
        %v3793 = vpop.f32.mrb[0].mxu0
        %v3794 = vpop.f32.mrb[0].mxu0
        %v3795 = vadd.f32 %v3614, %v3794
        %v3796 = vpop.f32.mrb[0].mxu0
        %3797 = vmatprep.mubr.bf16.mxu0 0
        %3798 = vmatmul.mubr.bf16.gmra.mrb[0].mxu0 %v3532
        %v3799 = vpop.f32.mrb[0].mxu0
        %v3800 = vadd.f32 %v3619, %v3799
        %v3801 = vpop.f32.mrb[0].mxu0
        %v3802 = vpop.f32.mrb[0].mxu0
        %v3803 = vadd.f32 %v3622, %v3802
        %v3804 = vpop.f32.mrb[0].mxu0
        %3805 = vmatprep.mubr.bf16.mxu0 0
        %3806 = vmatmul.mubr.bf16.gmra.mrb[0].mxu0 %v3534
        %v3807 = vpop.f32.mrb[0].mxu0
        %v3808 = vadd.f32 %v3627, %v3807
        %v3809 = vpop.f32.mrb[0].mxu0
        %v3810 = vpop.f32.mrb[0].mxu0
        %v3811 = vadd.f32 %v3630, %v3810
        %v3812 = vpop.f32.mrb[0].mxu0
        %3813 = vmatprep.mubr.bf16.mxu0 0
        %3814 = vmatmul.mubr.bf16.gmra.mrb[0].mxu0 %v3536
        %v3815 = vpop.f32.mrb[0].mxu0
        %v3816 = vadd.f32 %v3635, %v3815
        %v3817 = vpop.f32.mrb[0].mxu0
        %v3818 = vpop.f32.mrb[0].mxu0
        %v3819 = vadd.f32 %v3638, %v3818
        %v3820 = vpop.f32.mrb[0].mxu0
        %3821 = vmatprep.mubr.bf16.mxu0 0
        %3822 = vmatmul.mubr.bf16.gmra.mrb[0].mxu0 %v3538
        %v3823 = vpop.f32.mrb[0].mxu0
        %v3824 = vadd.f32 %v3643, %v3823
        %v3825 = vpop.f32.mrb[0].mxu0
        %v3826 = vpop.f32.mrb[0].mxu0
        %v3827 = vadd.f32 %v3646, %v3826
        %v3828 = vpop.f32.mrb[0].mxu0
        %3829 = vmatprep.mubr.bf16.mxu0 0
        %3830 = vmatmul.mubr.bf16.gmra.mrb[0].mxu0 %v3540
        %v3831 = vpop.f32.mrb[0].mxu0
        %v3832 = vadd.f32 %v3651, %v3831
        %v3833 = vpop.f32.mrb[0].mxu0
        %v3834 = vpop.f32.mrb[0].mxu0
        %v3835 = vadd.f32 %v3654, %v3834
        %v3836 = vpop.f32.mrb[0].mxu0
        %3837 = vmatprep.mubr.bf16.mxu0 0
        %3838 = vmatmul.mubr.bf16.gmra.mrb[0].mxu0 %v3542
        %v3839 = vpop.f32.mrb[0].mxu0
        %v3840 = vadd.f32 %v3659, %v3839
        %v3841 = vpop.f32.mrb[0].mxu0
        %v3842 = vpop.f32.mrb[0].mxu0
        %v3843 = vadd.f32 %v3662, %v3842
        %v3844 = vpop.f32.mrb[0].mxu0
        %3845 = vmatprep.mubr.bf16.mxu0 0
        %3846 = vmatmul.mubr.bf16.gmra.mrb[0].mxu0 %v3544
        %v3847 = vpop.f32.mrb[0].mxu0
        %v3848 = vadd.f32 %v3667, %v3847
        %v3849 = vpop.f32.mrb[0].mxu0
        %v3850 = vpop.f32.mrb[0].mxu0
        %v3851 = vadd.f32 %v3670, %v3850
        %v3852 = vpop.f32.mrb[0].mxu0
        %3853 = vmatprep.mubr.bf16.mxu0 0
        %3854 = vmatmul.mubr.bf16.gmra.mrb[0].mxu0 %v3546
        %v3855 = vpop.f32.mrb[0].mxu0
        %v3856 = vadd.f32 %v3675, %v3855
        %v3857 = vpop.f32.mrb[0].mxu0
        %v3858 = vpop.f32.mrb[0].mxu0
        %v3859 = vadd.f32 %v3678, %v3858
        %v3860 = vpop.f32.mrb[0].mxu0
        %3861 = vmatprep.mubr.bf16.mxu0 0
        %3862 = vmatmul.mubr.bf16.gmra.mrb[0].mxu0 %v3548
        %v3863 = vpop.f32.mrb[0].mxu0
        %v3864 = vadd.f32 %v3683, %v3863
        %v3865 = vpop.f32.mrb[0].mxu0
        %v3866 = vpop.f32.mrb[0].mxu0
        %v3867 = vadd.f32 %v3686, %v3866
        %v3868 = vpop.f32.mrb[0].mxu0
        %3869 = vmatprep.mubr.bf16.mxu0 0
        %3870 = vmatmul.mubr.bf16.gmra.mrb[0].mxu0 %v3550
        %v3871 = vpop.f32.mrb[0].mxu0
        %v3872 = vadd.f32 %v3691, %v3871
        %v3873 = vpop.f32.mrb[0].mxu0
        %v3874 = vpop.f32.mrb[0].mxu0
        %v3875 = vadd.f32 %v3694, %v3874
        %v3876 = vpop.f32.mrb[0].mxu0
        %3877 = vmatprep.mubr.bf16.mxu0 0
        %3878 = vmatmul.mubr.bf16.gmra.mrb[0].mxu0 %v3552
        %v3879 = vpop.f32.mrb[0].mxu0
        %v3880 = vadd.f32 %v3699, %v3879
        %v3881 = vpop.f32.mrb[0].mxu0
        %v3882 = vpop.f32.mrb[0].mxu0
        %v3883 = vadd.f32 %v3702, %v3882
        %v3884 = vpop.f32.mrb[0].mxu0
        %3885 = vmatprep.mubr.bf16.mxu0 0
        %3886 = vmatmul.mubr.bf16.gmra.mrb[0].mxu0 %v3554
        %v3887 = vpop.f32.mrb[0].mxu0
        %v3888 = vadd.f32 %v3707, %v3887
        %v3889 = vpop.f32.mrb[0].mxu0
        %v3890 = vpop.f32.mrb[0].mxu0
        %v3891 = vadd.f32 %v3710, %v3890
        %v3892 = vpop.f32.mrb[0].mxu0
        %3893 = vmatprep.mubr.bf16.mxu0 0
        %3894 = vmatmul.mubr.bf16.gmra.mrb[0].mxu0 %v3556
        %v3895 = vpop.f32.mrb[0].mxu0
        %v3896 = vadd.f32 %v3715, %v3895
        %v3897 = vpop.f32.mrb[0].mxu0
        %v3898 = vpop.f32.mrb[0].mxu0
        %v3899 = vadd.f32 %v3718, %v3898
        %v3900 = vpop.f32.mrb[0].mxu0
        %3901 = vdwg.mxu0
        %s3902 = scalar_lea.vmem %s3, 48
        %v3903 = vld [vmem:[%s3902] sm:$0xf]
        %v3904 = vld [vmem:[%s3902 + $0x4] sm:$0xf]
        %v3905 = vld [vmem:[%s3902 + $0x8] sm:$0xf]
        %v3906 = vld [vmem:[%s3902 + $0xc] sm:$0xf]
        %v3907 = vld [vmem:[%s3902 + $0x10] sm:$0xf]
        %v3908 = vld [vmem:[%s3902 + $0x14] sm:$0xf]
        %v3915 = vunpack.c.l.b16 %v3903
        %v3916 = vunpack.c.l.b16 %v3904
        %v3917 = vunpack.c.l.b16 %v3905
        %v3918 = vunpack.c.l.b16 %v3906
        %v3919 = vunpack.c.l.b16 %v3907
        %v3920 = vunpack.c.l.b16 %v3908
        %v3921 = vpack.c.b16 %v3916, %v3915
        %v3922 = vpack.c.b16 %v3918, %v3917
        %v3923 = vpack.c.b16 %v3920, %v3919
        %v3927 = vsel %vm3527, %v3495, 0
        %3929 = vmatprep.subr.bf16.mxu0 0
        %3930 = vmatpush1.bf16.msra.mxu0 %v3921
        %3931 = vmatprep.subr.bf16.mxu0 0
        %3932 = vmatpush1.bf16.msra.mxu0 %v3922
        %3933 = vmatprep.subr.bf16.mxu0 0
        %3934 = vmatpush1.bf16.msra.mxu0 %v3923
        %3935 = vmatprep.subr.bf16.mxu0 0
        %3936 = vmatpush1.bf16.msra.mxu0 0
        %3937 = vmatprep.subr.bf16.mxu0 0
        %3938 = vmatpush1.bf16.msra.mxu0 0
        %3939 = vmatprep.subr.bf16.mxu0 0
        %3940 = vmatpush1.bf16.msra.mxu0 0
        %3941 = vmatprep.subr.bf16.mxu0 0
        %3942 = vmatpush1.bf16.msra.mxu0 0
        %3943 = vmatprep.subr.bf16.mxu0 0
        %3944 = vmatpush1.bf16.msra.mxu0 0
        %3945 = vmatprep.subr.bf16.mxu0 0
        %3946 = vmatpush1.bf16.msra.mxu0 0
        %3947 = vmatprep.subr.bf16.mxu0 0
        %3948 = vmatpush1.bf16.msra.mxu0 0
        %3949 = vmatprep.subr.bf16.mxu0 0
        %3950 = vmatpush1.bf16.msra.mxu0 0
        %3951 = vmatprep.subr.bf16.mxu0 0
        %3952 = vmatpush1.bf16.msra.mxu0 0
        %3953 = vmatprep.subr.bf16.mxu0 0
        %3954 = vmatpush1.bf16.msra.mxu0 0
        %3955 = vmatprep.subr.bf16.mxu0 0
        %3956 = vmatpush1.bf16.msra.mxu0 0
        %3957 = vmatprep.subr.bf16.mxu0 0
        %3958 = vmatpush1.bf16.msra.mxu0 0
        %3959 = vmatprep.subr.bf16.mxu0 0
        %3960 = vmatpush1.bf16.msra.mxu0 0
        %3961 = vmatprep.mubr.bf16.mxu0 0
        %3962 = vmatmul.mubr.bf16.gmra.mrb[0].mxu0 %v3530
        %v3963 = vpop.f32.mrb[0].mxu0
        %v3964 = vadd.f32 0.0, %v3963
        %v3965 = vpop.f32.mrb[0].mxu0
        %v3966 = vpop.f32.mrb[0].mxu0
        %v3967 = vadd.f32 0.0, %v3966
        %v3968 = vpop.f32.mrb[0].mxu0
        %3969 = vmatprep.mubr.bf16.mxu0 0
        %3970 = vmatmul.mubr.bf16.gmra.mrb[0].mxu0 %v3532
        %v3971 = vpop.f32.mrb[0].mxu0
        %v3972 = vadd.f32 0.0, %v3971
        %v3973 = vpop.f32.mrb[0].mxu0
        %v3974 = vpop.f32.mrb[0].mxu0
        %v3975 = vadd.f32 0.0, %v3974
        %v3976 = vpop.f32.mrb[0].mxu0
        %3977 = vmatprep.mubr.bf16.mxu0 0
        %3978 = vmatmul.mubr.bf16.gmra.mrb[0].mxu0 %v3534
        %v3979 = vpop.f32.mrb[0].mxu0
        %v3980 = vadd.f32 0.0, %v3979
        %v3981 = vpop.f32.mrb[0].mxu0
        %v3982 = vpop.f32.mrb[0].mxu0
        %v3983 = vadd.f32 0.0, %v3982
        %v3984 = vpop.f32.mrb[0].mxu0
        %3985 = vmatprep.mubr.bf16.mxu0 0
        %3986 = vmatmul.mubr.bf16.gmra.mrb[0].mxu0 %v3536
        %v3987 = vpop.f32.mrb[0].mxu0
        %v3988 = vadd.f32 0.0, %v3987
        %v3989 = vpop.f32.mrb[0].mxu0
        %v3990 = vpop.f32.mrb[0].mxu0
        %v3991 = vadd.f32 0.0, %v3990
        %v3992 = vpop.f32.mrb[0].mxu0
        %3993 = vmatprep.mubr.bf16.mxu0 0
        %3994 = vmatmul.mubr.bf16.gmra.mrb[0].mxu0 %v3538
        %v3995 = vpop.f32.mrb[0].mxu0
        %v3996 = vadd.f32 0.0, %v3995
        %v3997 = vpop.f32.mrb[0].mxu0
        %v3998 = vpop.f32.mrb[0].mxu0
        %v3999 = vadd.f32 0.0, %v3998
        %v4000 = vpop.f32.mrb[0].mxu0
        %4001 = vmatprep.mubr.bf16.mxu0 0
        %4002 = vmatmul.mubr.bf16.gmra.mrb[0].mxu0 %v3540
        %v4003 = vpop.f32.mrb[0].mxu0
        %v4004 = vadd.f32 0.0, %v4003
        %v4005 = vpop.f32.mrb[0].mxu0
        %v4006 = vpop.f32.mrb[0].mxu0
        %v4007 = vadd.f32 0.0, %v4006
        %v4008 = vpop.f32.mrb[0].mxu0
        %4009 = vmatprep.mubr.bf16.mxu0 0
        %4010 = vmatmul.mubr.bf16.gmra.mrb[0].mxu0 %v3542
        %v4011 = vpop.f32.mrb[0].mxu0
        %v4012 = vadd.f32 0.0, %v4011
        %v4013 = vpop.f32.mrb[0].mxu0
        %v4014 = vpop.f32.mrb[0].mxu0
        %v4015 = vadd.f32 0.0, %v4014
        %v4016 = vpop.f32.mrb[0].mxu0
        %4017 = vmatprep.mubr.bf16.mxu0 0
        %4018 = vmatmul.mubr.bf16.gmra.mrb[0].mxu0 %v3544
        %v4019 = vpop.f32.mrb[0].mxu0
        %v4020 = vadd.f32 0.0, %v4019
        %v4021 = vpop.f32.mrb[0].mxu0
        %v4022 = vpop.f32.mrb[0].mxu0
        %v4023 = vadd.f32 0.0, %v4022
        %v4024 = vpop.f32.mrb[0].mxu0
        %4025 = vmatprep.mubr.bf16.mxu0 0
        %4026 = vmatmul.mubr.bf16.gmra.mrb[0].mxu0 %v3546
        %v4027 = vpop.f32.mrb[0].mxu0
        %v4028 = vadd.f32 0.0, %v4027
        %v4029 = vpop.f32.mrb[0].mxu0
        %v4030 = vpop.f32.mrb[0].mxu0
        %v4031 = vadd.f32 0.0, %v4030
        %v4032 = vpop.f32.mrb[0].mxu0
        %4033 = vmatprep.mubr.bf16.mxu0 0
        %4034 = vmatmul.mubr.bf16.gmra.mrb[0].mxu0 %v3548
        %v4035 = vpop.f32.mrb[0].mxu0
        %v4036 = vadd.f32 0.0, %v4035
        %v4037 = vpop.f32.mrb[0].mxu0
        %v4038 = vpop.f32.mrb[0].mxu0
        %v4039 = vadd.f32 0.0, %v4038
        %v4040 = vpop.f32.mrb[0].mxu0
        %4041 = vmatprep.mubr.bf16.mxu0 0
        %4042 = vmatmul.mubr.bf16.gmra.mrb[0].mxu0 %v3550
        %v4043 = vpop.f32.mrb[0].mxu0
        %v4044 = vadd.f32 0.0, %v4043
        %v4045 = vpop.f32.mrb[0].mxu0
        %v4046 = vpop.f32.mrb[0].mxu0
        %v4047 = vadd.f32 0.0, %v4046
        %v4048 = vpop.f32.mrb[0].mxu0
        %4049 = vmatprep.mubr.bf16.mxu0 0
        %4050 = vmatmul.mubr.bf16.gmra.mrb[0].mxu0 %v3552
        %v4051 = vpop.f32.mrb[0].mxu0
        %v4052 = vadd.f32 0.0, %v4051
        %v4053 = vpop.f32.mrb[0].mxu0
        %v4054 = vpop.f32.mrb[0].mxu0
        %v4055 = vadd.f32 0.0, %v4054
        %v4056 = vpop.f32.mrb[0].mxu0
        %4057 = vmatprep.mubr.bf16.mxu0 0
        %4058 = vmatmul.mubr.bf16.gmra.mrb[0].mxu0 %v3554
        %v4059 = vpop.f32.mrb[0].mxu0
        %v4060 = vadd.f32 0.0, %v4059
        %v4061 = vpop.f32.mrb[0].mxu0
        %v4062 = vpop.f32.mrb[0].mxu0
        %v4063 = vadd.f32 0.0, %v4062
        %v4064 = vpop.f32.mrb[0].mxu0
        %4065 = vmatprep.mubr.bf16.mxu0 0
        %4066 = vmatmul.mubr.bf16.gmra.mrb[0].mxu0 %v3556
        %v4067 = vpop.f32.mrb[0].mxu0
        %v4068 = vadd.f32 0.0, %v4067
        %v4069 = vpop.f32.mrb[0].mxu0
        %v4070 = vpop.f32.mrb[0].mxu0
        %v4071 = vadd.f32 0.0, %v4070
        %v4072 = vpop.f32.mrb[0].mxu0
        %4073 = vmatprep.mubr.bf16.mxu0 0
        %4074 = vmatmul.mubr.bf16.gmra.mrb[0].mxu0 %v3558
        %v4075 = vpop.f32.mrb[0].mxu0
        %v4076 = vadd.f32 0.0, %v4075
        %v4077 = vpop.f32.mrb[0].mxu0
        %v4078 = vpop.f32.mrb[0].mxu0
        %v4079 = vadd.f32 0.0, %v4078
        %v4080 = vpop.f32.mrb[0].mxu0
        %4081 = vmatprep.mubr.bf16.mxu0 0
        %4082 = vmatmul.mubr.bf16.gmra.mrb[0].mxu0 %v3927
        %v4083 = vpop.f32.mrb[0].mxu0
        %v4084 = vadd.f32 0.0, %v4083
        %v4085 = vpop.f32.mrb[0].mxu0
        %v4086 = vpop.f32.mrb[0].mxu0
        %v4087 = vadd.f32 0.0, %v4086
        %v4088 = vpop.f32.mrb[0].mxu0
        %4089 = vdwg.mxu0
        %v4090 = vadd.f32 %v3776, %v3964
        %v4091 = vadd.f32 %v3779, %v3967
        %v4092 = vadd.f32 %v3784, %v3972
        %v4093 = vadd.f32 %v3787, %v3975
        %v4094 = vadd.f32 %v3792, %v3980
        %v4095 = vadd.f32 %v3795, %v3983
        %v4096 = vadd.f32 %v3800, %v3988
        %v4097 = vadd.f32 %v3803, %v3991
        %v4098 = vadd.f32 %v3808, %v3996
        %v4099 = vadd.f32 %v3811, %v3999
        %v4100 = vadd.f32 %v3816, %v4004
        %v4101 = vadd.f32 %v3819, %v4007
        %v4102 = vadd.f32 %v3824, %v4012
        %v4103 = vadd.f32 %v3827, %v4015
        %v4104 = vadd.f32 %v3832, %v4020
        %v4105 = vadd.f32 %v3835, %v4023
        %v4106 = vadd.f32 %v3840, %v4028
        %v4107 = vadd.f32 %v3843, %v4031
        %v4108 = vadd.f32 %v3848, %v4036
        %v4109 = vadd.f32 %v3851, %v4039
        %v4110 = vadd.f32 %v3856, %v4044
        %v4111 = vadd.f32 %v3859, %v4047
        %v4112 = vadd.f32 %v3864, %v4052
        %v4113 = vadd.f32 %v3867, %v4055
        %v4114 = vadd.f32 %v3872, %v4060
        %v4115 = vadd.f32 %v3875, %v4063
        %v4116 = vadd.f32 %v3880, %v4068
        %v4117 = vadd.f32 %v3883, %v4071
        %v4118 = vadd.f32 %v3888, %v4076
        %v4119 = vadd.f32 %v3891, %v4079
        %v4120 = vadd.f32 %v3896, %v4084
        %v4121 = vadd.f32 %v3899, %v4087
        %v4122 = vld [vmem:[%s4] sm:$0x1]
        %v4124 = vlaneseq
        %v4125 = vshrl.u32 %v4124, 7
        %v4126 = vsub.s32 0, %v4125
        %v4127 = vrot.slane %v4122, %v4126
        %v4129 = vadd.f32 %v4090, %v4127
        %v4130 = vadd.f32 %v4091, %v4127
        %v4131 = vadd.f32 %v4092, %v4127
        %v4132 = vadd.f32 %v4093, %v4127
        %v4133 = vadd.f32 %v4094, %v4127
        %v4134 = vadd.f32 %v4095, %v4127
        %v4135 = vadd.f32 %v4096, %v4127
        %v4136 = vadd.f32 %v4097, %v4127
        %v4137 = vadd.f32 %v4098, %v4127
        %v4138 = vadd.f32 %v4099, %v4127
        %v4139 = vadd.f32 %v4100, %v4127
        %v4140 = vadd.f32 %v4101, %v4127
        %v4141 = vadd.f32 %v4102, %v4127
        %v4142 = vadd.f32 %v4103, %v4127
        %v4143 = vadd.f32 %v4104, %v4127
        %v4144 = vadd.f32 %v4105, %v4127
        %v4145 = vadd.f32 %v4106, %v4127
        %v4146 = vadd.f32 %v4107, %v4127
        %v4147 = vadd.f32 %v4108, %v4127
        %v4148 = vadd.f32 %v4109, %v4127
        %v4149 = vadd.f32 %v4110, %v4127
        %v4150 = vadd.f32 %v4111, %v4127
        %v4151 = vadd.f32 %v4112, %v4127
        %v4152 = vadd.f32 %v4113, %v4127
        %v4153 = vadd.f32 %v4114, %v4127
        %v4154 = vadd.f32 %v4115, %v4127
        %v4155 = vadd.f32 %v4116, %v4127
        %v4156 = vadd.f32 %v4117, %v4127
        %v4157 = vadd.f32 %v4118, %v4127
        %v4158 = vadd.f32 %v4119, %v4127
        %v4159 = vadd.f32 %v4120, %v4127
        %v4160 = vadd.f32 %v4121, %v4127
        %v4161 = vmax.f32 %v4129, 0.0
        %v4162 = vmax.f32 %v4130, 0.0
        %v4163 = vmax.f32 %v4131, 0.0
        %v4164 = vmax.f32 %v4132, 0.0
        %v4165 = vmax.f32 %v4133, 0.0
        %v4166 = vmax.f32 %v4134, 0.0
        %v4167 = vmax.f32 %v4135, 0.0
        %v4168 = vmax.f32 %v4136, 0.0
        %v4169 = vmax.f32 %v4137, 0.0
        %v4170 = vmax.f32 %v4138, 0.0
        %v4171 = vmax.f32 %v4139, 0.0
        %v4172 = vmax.f32 %v4140, 0.0
        %v4173 = vmax.f32 %v4141, 0.0
        %v4174 = vmax.f32 %v4142, 0.0
        %v4175 = vmax.f32 %v4143, 0.0
        %v4176 = vmax.f32 %v4144, 0.0
        %v4177 = vmax.f32 %v4145, 0.0
        %v4178 = vmax.f32 %v4146, 0.0
        %v4179 = vmax.f32 %v4147, 0.0
        %v4180 = vmax.f32 %v4148, 0.0
        %v4181 = vmax.f32 %v4149, 0.0
        %v4182 = vmax.f32 %v4150, 0.0
        %v4183 = vmax.f32 %v4151, 0.0
        %v4184 = vmax.f32 %v4152, 0.0
        %v4185 = vmax.f32 %v4153, 0.0
        %v4186 = vmax.f32 %v4154, 0.0
        %v4187 = vmax.f32 %v4155, 0.0
        %v4188 = vmax.f32 %v4156, 0.0
        %v4189 = vmax.f32 %v4157, 0.0
        %v4190 = vmax.f32 %v4158, 0.0
        %v4191 = vmax.f32 %v4159, 0.0
        %v4192 = vmax.f32 %v4160, 0.0
        %v4193 = vmax.f32 %v4161, %v4163
        %v4194 = vmax.f32 %v4162, %v4164
        %v4195 = vmax.f32 %v4165, %v4167
        %v4196 = vmax.f32 %v4166, %v4168
        %v4197 = vmax.f32 %v4169, %v4171
        %v4198 = vmax.f32 %v4170, %v4172
        %v4199 = vmax.f32 %v4173, %v4175
        %v4200 = vmax.f32 %v4174, %v4176
        %v4201 = vmax.f32 %v4177, %v4179
        %v4202 = vmax.f32 %v4178, %v4180
        %v4203 = vmax.f32 %v4181, %v4183
        %v4204 = vmax.f32 %v4182, %v4184
        %v4205 = vmax.f32 %v4185, %v4187
        %v4206 = vmax.f32 %v4186, %v4188
        %v4207 = vmax.f32 %v4189, %v4191
        %v4208 = vmax.f32 %v4190, %v4192
        %v4225 = vcombine.high %v4193, %v4193
        %v4227 = vunpack.c.l.s4 1983009808
        %v4228 = vunpack.c.0.s8 %v4227
        %v4229 = vlaneseq
        %v4230 = vshrl.u32 %v4229, 7
        %v4231 = vsub.s32 %v4228, %v4230
        %v4232 = vrot.slane %v4193, %v4231
        %v4234 = vunpack.c.l.s4 1983009808
        %v4235 = vunpack.c.0.s8 %v4234
        %v4236 = vlaneseq
        %v4237 = vshrl.u32 %v4236, 7
        %v4238 = vsub.s32 %v4235, %v4237
        %v4239 = vrot.slane %v4225, %v4238
        %v4240 = vcombine.high %v4232, %v4232
        %v4241 = vcombine.high %v4239, %v4239
        %v4242 = vcombine.high %v4194, %v4194
        %v4244 = vunpack.c.l.s4 1983009808
        %v4245 = vunpack.c.0.s8 %v4244
        %v4246 = vlaneseq
        %v4247 = vshrl.u32 %v4246, 7
        %v4248 = vsub.s32 %v4245, %v4247
        %v4249 = vrot.slane %v4194, %v4248
        %v4251 = vunpack.c.l.s4 1983009808
        %v4252 = vunpack.c.0.s8 %v4251
        %v4253 = vlaneseq
        %v4254 = vshrl.u32 %v4253, 7
        %v4255 = vsub.s32 %v4252, %v4254
        %v4256 = vrot.slane %v4242, %v4255
        %v4257 = vcombine.high %v4249, %v4249
        %v4258 = vcombine.high %v4256, %v4256
        %v4259 = vcombine.high %v4195, %v4195
        %v4261 = vunpack.c.l.s4 1983009808
        %v4262 = vunpack.c.0.s8 %v4261
        %v4263 = vlaneseq
        %v4264 = vshrl.u32 %v4263, 7
        %v4265 = vsub.s32 %v4262, %v4264
        %v4266 = vrot.slane %v4195, %v4265
        %v4268 = vunpack.c.l.s4 1983009808
        %v4269 = vunpack.c.0.s8 %v4268
        %v4270 = vlaneseq
        %v4271 = vshrl.u32 %v4270, 7
        %v4272 = vsub.s32 %v4269, %v4271
        %v4273 = vrot.slane %v4259, %v4272
        %v4274 = vcombine.high %v4266, %v4266
        %v4275 = vcombine.high %v4273, %v4273
        %v4276 = vcombine.high %v4196, %v4196
        %v4278 = vunpack.c.l.s4 1983009808
        %v4279 = vunpack.c.0.s8 %v4278
        %v4280 = vlaneseq
        %v4281 = vshrl.u32 %v4280, 7
        %v4282 = vsub.s32 %v4279, %v4281
        %v4283 = vrot.slane %v4196, %v4282
        %v4285 = vunpack.c.l.s4 1983009808
        %v4286 = vunpack.c.0.s8 %v4285
        %v4287 = vlaneseq
        %v4288 = vshrl.u32 %v4287, 7
        %v4289 = vsub.s32 %v4286, %v4288
        %v4290 = vrot.slane %v4276, %v4289
        %v4291 = vcombine.high %v4283, %v4283
        %v4292 = vcombine.high %v4290, %v4290
        %v4293 = vcombine.high %v4197, %v4197
        %v4295 = vunpack.c.l.s4 1983009808
        %v4296 = vunpack.c.0.s8 %v4295
        %v4297 = vlaneseq
        %v4298 = vshrl.u32 %v4297, 7
        %v4299 = vsub.s32 %v4296, %v4298
        %v4300 = vrot.slane %v4197, %v4299
        %v4302 = vunpack.c.l.s4 1983009808
        %v4303 = vunpack.c.0.s8 %v4302
        %v4304 = vlaneseq
        %v4305 = vshrl.u32 %v4304, 7
        %v4306 = vsub.s32 %v4303, %v4305
        %v4307 = vrot.slane %v4293, %v4306
        %v4308 = vcombine.high %v4300, %v4300
        %v4309 = vcombine.high %v4307, %v4307
        %v4310 = vcombine.high %v4198, %v4198
        %v4312 = vunpack.c.l.s4 1983009808
        %v4313 = vunpack.c.0.s8 %v4312
        %v4314 = vlaneseq
        %v4315 = vshrl.u32 %v4314, 7
        %v4316 = vsub.s32 %v4313, %v4315
        %v4317 = vrot.slane %v4198, %v4316
        %v4319 = vunpack.c.l.s4 1983009808
        %v4320 = vunpack.c.0.s8 %v4319
        %v4321 = vlaneseq
        %v4322 = vshrl.u32 %v4321, 7
        %v4323 = vsub.s32 %v4320, %v4322
        %v4324 = vrot.slane %v4310, %v4323
        %v4325 = vcombine.high %v4317, %v4317
        %v4326 = vcombine.high %v4324, %v4324
        %v4327 = vcombine.high %v4199, %v4199
        %v4329 = vunpack.c.l.s4 1983009808
        %v4330 = vunpack.c.0.s8 %v4329
        %v4331 = vlaneseq
        %v4332 = vshrl.u32 %v4331, 7
        %v4333 = vsub.s32 %v4330, %v4332
        %v4334 = vrot.slane %v4199, %v4333
        %v4336 = vunpack.c.l.s4 1983009808
        %v4337 = vunpack.c.0.s8 %v4336
        %v4338 = vlaneseq
        %v4339 = vshrl.u32 %v4338, 7
        %v4340 = vsub.s32 %v4337, %v4339
        %v4341 = vrot.slane %v4327, %v4340
        %v4342 = vcombine.high %v4334, %v4334
        %v4343 = vcombine.high %v4341, %v4341
        %v4344 = vcombine.high %v4200, %v4200
        %v4346 = vunpack.c.l.s4 1983009808
        %v4347 = vunpack.c.0.s8 %v4346
        %v4348 = vlaneseq
        %v4349 = vshrl.u32 %v4348, 7
        %v4350 = vsub.s32 %v4347, %v4349
        %v4351 = vrot.slane %v4200, %v4350
        %v4353 = vunpack.c.l.s4 1983009808
        %v4354 = vunpack.c.0.s8 %v4353
        %v4355 = vlaneseq
        %v4356 = vshrl.u32 %v4355, 7
        %v4357 = vsub.s32 %v4354, %v4356
        %v4358 = vrot.slane %v4344, %v4357
        %v4359 = vcombine.high %v4351, %v4351
        %v4360 = vcombine.high %v4358, %v4358
        %v4361 = vcombine.high %v4201, %v4201
        %v4363 = vunpack.c.l.s4 1983009808
        %v4364 = vunpack.c.0.s8 %v4363
        %v4365 = vlaneseq
        %v4366 = vshrl.u32 %v4365, 7
        %v4367 = vsub.s32 %v4364, %v4366
        %v4368 = vrot.slane %v4201, %v4367
        %v4370 = vunpack.c.l.s4 1983009808
        %v4371 = vunpack.c.0.s8 %v4370
        %v4372 = vlaneseq
        %v4373 = vshrl.u32 %v4372, 7
        %v4374 = vsub.s32 %v4371, %v4373
        %v4375 = vrot.slane %v4361, %v4374
        %v4376 = vcombine.high %v4368, %v4368
        %v4377 = vcombine.high %v4375, %v4375
        %v4378 = vcombine.high %v4202, %v4202
        %v4380 = vunpack.c.l.s4 1983009808
        %v4381 = vunpack.c.0.s8 %v4380
        %v4382 = vlaneseq
        %v4383 = vshrl.u32 %v4382, 7
        %v4384 = vsub.s32 %v4381, %v4383
        %v4385 = vrot.slane %v4202, %v4384
        %v4387 = vunpack.c.l.s4 1983009808
        %v4388 = vunpack.c.0.s8 %v4387
        %v4389 = vlaneseq
        %v4390 = vshrl.u32 %v4389, 7
        %v4391 = vsub.s32 %v4388, %v4390
        %v4392 = vrot.slane %v4378, %v4391
        %v4393 = vcombine.high %v4385, %v4385
        %v4394 = vcombine.high %v4392, %v4392
        %v4395 = vcombine.high %v4203, %v4203
        %v4397 = vunpack.c.l.s4 1983009808
        %v4398 = vunpack.c.0.s8 %v4397
        %v4399 = vlaneseq
        %v4400 = vshrl.u32 %v4399, 7
        %v4401 = vsub.s32 %v4398, %v4400
        %v4402 = vrot.slane %v4203, %v4401
        %v4404 = vunpack.c.l.s4 1983009808
        %v4405 = vunpack.c.0.s8 %v4404
        %v4406 = vlaneseq
        %v4407 = vshrl.u32 %v4406, 7
        %v4408 = vsub.s32 %v4405, %v4407
        %v4409 = vrot.slane %v4395, %v4408
        %v4410 = vcombine.high %v4402, %v4402
        %v4411 = vcombine.high %v4409, %v4409
        %v4412 = vcombine.high %v4204, %v4204
        %v4414 = vunpack.c.l.s4 1983009808
        %v4415 = vunpack.c.0.s8 %v4414
        %v4416 = vlaneseq
        %v4417 = vshrl.u32 %v4416, 7
        %v4418 = vsub.s32 %v4415, %v4417
        %v4419 = vrot.slane %v4204, %v4418
        %v4421 = vunpack.c.l.s4 1983009808
        %v4422 = vunpack.c.0.s8 %v4421
        %v4423 = vlaneseq
        %v4424 = vshrl.u32 %v4423, 7
        %v4425 = vsub.s32 %v4422, %v4424
        %v4426 = vrot.slane %v4412, %v4425
        %v4427 = vcombine.high %v4419, %v4419
        %v4428 = vcombine.high %v4426, %v4426
        %v4429 = vcombine.high %v4205, %v4205
        %v4431 = vunpack.c.l.s4 1983009808
        %v4432 = vunpack.c.0.s8 %v4431
        %v4433 = vlaneseq
        %v4434 = vshrl.u32 %v4433, 7
        %v4435 = vsub.s32 %v4432, %v4434
        %v4436 = vrot.slane %v4205, %v4435
        %v4438 = vunpack.c.l.s4 1983009808
        %v4439 = vunpack.c.0.s8 %v4438
        %v4440 = vlaneseq
        %v4441 = vshrl.u32 %v4440, 7
        %v4442 = vsub.s32 %v4439, %v4441
        %v4443 = vrot.slane %v4429, %v4442
        %v4444 = vcombine.high %v4436, %v4436
        %v4445 = vcombine.high %v4443, %v4443
        %v4446 = vcombine.high %v4206, %v4206
        %v4448 = vunpack.c.l.s4 1983009808
        %v4449 = vunpack.c.0.s8 %v4448
        %v4450 = vlaneseq
        %v4451 = vshrl.u32 %v4450, 7
        %v4452 = vsub.s32 %v4449, %v4451
        %v4453 = vrot.slane %v4206, %v4452
        %v4455 = vunpack.c.l.s4 1983009808
        %v4456 = vunpack.c.0.s8 %v4455
        %v4457 = vlaneseq
        %v4458 = vshrl.u32 %v4457, 7
        %v4459 = vsub.s32 %v4456, %v4458
        %v4460 = vrot.slane %v4446, %v4459
        %v4461 = vcombine.high %v4453, %v4453
        %v4462 = vcombine.high %v4460, %v4460
        %v4463 = vcombine.high %v4207, %v4207
        %v4465 = vunpack.c.l.s4 1983009808
        %v4466 = vunpack.c.0.s8 %v4465
        %v4467 = vlaneseq
        %v4468 = vshrl.u32 %v4467, 7
        %v4469 = vsub.s32 %v4466, %v4468
        %v4470 = vrot.slane %v4207, %v4469
        %v4472 = vunpack.c.l.s4 1983009808
        %v4473 = vunpack.c.0.s8 %v4472
        %v4474 = vlaneseq
        %v4475 = vshrl.u32 %v4474, 7
        %v4476 = vsub.s32 %v4473, %v4475
        %v4477 = vrot.slane %v4463, %v4476
        %v4478 = vcombine.high %v4470, %v4470
        %v4479 = vcombine.high %v4477, %v4477
        %v4480 = vcombine.high %v4208, %v4208
        %v4482 = vunpack.c.l.s4 1983009808
        %v4483 = vunpack.c.0.s8 %v4482
        %v4484 = vlaneseq
        %v4485 = vshrl.u32 %v4484, 7
        %v4486 = vsub.s32 %v4483, %v4485
        %v4487 = vrot.slane %v4208, %v4486
        %v4489 = vunpack.c.l.s4 1983009808
        %v4490 = vunpack.c.0.s8 %v4489
        %v4491 = vlaneseq
        %v4492 = vshrl.u32 %v4491, 7
        %v4493 = vsub.s32 %v4490, %v4492
        %v4494 = vrot.slane %v4480, %v4493
        %v4495 = vcombine.high %v4487, %v4487
        %v4496 = vcombine.high %v4494, %v4494
        %vm4561 = vcmask 254976
        %v4562 = vsel %vm4561, %v4232, -inf
        %v4563 = vrot.slane %v4562, 4
        %v4564 = vmax.f32 %v4562, %v4563
        %v4565 = vrot.slane %v4564, 2
        %v4566 = vmax.f32 %v4564, %v4565
        %v4567 = vrot.slane %v4566, 1
        %v4568 = vmax.f32 %v4566, %v4567
        %v4569 = vsel %vm4561, %v4240, -inf
        %v4570 = vrot.slane %v4569, 4
        %v4571 = vmax.f32 %v4569, %v4570
        %v4572 = vrot.slane %v4571, 2
        %v4573 = vmax.f32 %v4571, %v4572
        %v4574 = vrot.slane %v4573, 1
        %v4575 = vmax.f32 %v4573, %v4574
        %v4576 = vsel %vm4561, %v4239, -inf
        %v4577 = vrot.slane %v4576, 4
        %v4578 = vmax.f32 %v4576, %v4577
        %v4579 = vrot.slane %v4578, 2
        %v4580 = vmax.f32 %v4578, %v4579
        %v4581 = vrot.slane %v4580, 1
        %v4582 = vmax.f32 %v4580, %v4581
        %v4583 = vsel %vm4561, %v4241, -inf
        %v4584 = vrot.slane %v4583, 4
        %v4585 = vmax.f32 %v4583, %v4584
        %v4586 = vrot.slane %v4585, 2
        %v4587 = vmax.f32 %v4585, %v4586
        %v4588 = vrot.slane %v4587, 1
        %v4589 = vmax.f32 %v4587, %v4588
        %v4590 = vsel %vm4561, %v4249, -inf
        %v4591 = vrot.slane %v4590, 4
        %v4592 = vmax.f32 %v4590, %v4591
        %v4593 = vrot.slane %v4592, 2
        %v4594 = vmax.f32 %v4592, %v4593
        %v4595 = vrot.slane %v4594, 1
        %v4596 = vmax.f32 %v4594, %v4595
        %v4597 = vsel %vm4561, %v4257, -inf
        %v4598 = vrot.slane %v4597, 4
        %v4599 = vmax.f32 %v4597, %v4598
        %v4600 = vrot.slane %v4599, 2
        %v4601 = vmax.f32 %v4599, %v4600
        %v4602 = vrot.slane %v4601, 1
        %v4603 = vmax.f32 %v4601, %v4602
        %v4604 = vsel %vm4561, %v4256, -inf
        %v4605 = vrot.slane %v4604, 4
        %v4606 = vmax.f32 %v4604, %v4605
        %v4607 = vrot.slane %v4606, 2
        %v4608 = vmax.f32 %v4606, %v4607
        %v4609 = vrot.slane %v4608, 1
        %v4610 = vmax.f32 %v4608, %v4609
        %v4611 = vsel %vm4561, %v4258, -inf
        %v4612 = vrot.slane %v4611, 4
        %v4613 = vmax.f32 %v4611, %v4612
        %v4614 = vrot.slane %v4613, 2
        %v4615 = vmax.f32 %v4613, %v4614
        %v4616 = vrot.slane %v4615, 1
        %v4617 = vmax.f32 %v4615, %v4616
        %v4618 = vsel %vm4561, %v4266, -inf
        %v4619 = vrot.slane %v4618, 4
        %v4620 = vmax.f32 %v4618, %v4619
        %v4621 = vrot.slane %v4620, 2
        %v4622 = vmax.f32 %v4620, %v4621
        %v4623 = vrot.slane %v4622, 1
        %v4624 = vmax.f32 %v4622, %v4623
        %v4625 = vsel %vm4561, %v4274, -inf
        %v4626 = vrot.slane %v4625, 4
        %v4627 = vmax.f32 %v4625, %v4626
        %v4628 = vrot.slane %v4627, 2
        %v4629 = vmax.f32 %v4627, %v4628
        %v4630 = vrot.slane %v4629, 1
        %v4631 = vmax.f32 %v4629, %v4630
        %v4632 = vsel %vm4561, %v4273, -inf
        %v4633 = vrot.slane %v4632, 4
        %v4634 = vmax.f32 %v4632, %v4633
        %v4635 = vrot.slane %v4634, 2
        %v4636 = vmax.f32 %v4634, %v4635
        %v4637 = vrot.slane %v4636, 1
        %v4638 = vmax.f32 %v4636, %v4637
        %v4639 = vsel %vm4561, %v4275, -inf
        %v4640 = vrot.slane %v4639, 4
        %v4641 = vmax.f32 %v4639, %v4640
        %v4642 = vrot.slane %v4641, 2
        %v4643 = vmax.f32 %v4641, %v4642
        %v4644 = vrot.slane %v4643, 1
        %v4645 = vmax.f32 %v4643, %v4644
        %v4646 = vsel %vm4561, %v4283, -inf
        %v4647 = vrot.slane %v4646, 4
        %v4648 = vmax.f32 %v4646, %v4647
        %v4649 = vrot.slane %v4648, 2
        %v4650 = vmax.f32 %v4648, %v4649
        %v4651 = vrot.slane %v4650, 1
        %v4652 = vmax.f32 %v4650, %v4651
        %v4653 = vsel %vm4561, %v4291, -inf
        %v4654 = vrot.slane %v4653, 4
        %v4655 = vmax.f32 %v4653, %v4654
        %v4656 = vrot.slane %v4655, 2
        %v4657 = vmax.f32 %v4655, %v4656
        %v4658 = vrot.slane %v4657, 1
        %v4659 = vmax.f32 %v4657, %v4658
        %v4660 = vsel %vm4561, %v4290, -inf
        %v4661 = vrot.slane %v4660, 4
        %v4662 = vmax.f32 %v4660, %v4661
        %v4663 = vrot.slane %v4662, 2
        %v4664 = vmax.f32 %v4662, %v4663
        %v4665 = vrot.slane %v4664, 1
        %v4666 = vmax.f32 %v4664, %v4665
        %v4667 = vsel %vm4561, %v4292, -inf
        %v4668 = vrot.slane %v4667, 4
        %v4669 = vmax.f32 %v4667, %v4668
        %v4670 = vrot.slane %v4669, 2
        %v4671 = vmax.f32 %v4669, %v4670
        %v4672 = vrot.slane %v4671, 1
        %v4673 = vmax.f32 %v4671, %v4672
        %v4674 = vsel %vm4561, %v4300, -inf
        %v4675 = vrot.slane %v4674, 4
        %v4676 = vmax.f32 %v4674, %v4675
        %v4677 = vrot.slane %v4676, 2
        %v4678 = vmax.f32 %v4676, %v4677
        %v4679 = vrot.slane %v4678, 1
        %v4680 = vmax.f32 %v4678, %v4679
        %v4681 = vsel %vm4561, %v4308, -inf
        %v4682 = vrot.slane %v4681, 4
        %v4683 = vmax.f32 %v4681, %v4682
        %v4684 = vrot.slane %v4683, 2
        %v4685 = vmax.f32 %v4683, %v4684
        %v4686 = vrot.slane %v4685, 1
        %v4687 = vmax.f32 %v4685, %v4686
        %v4688 = vsel %vm4561, %v4307, -inf
        %v4689 = vrot.slane %v4688, 4
        %v4690 = vmax.f32 %v4688, %v4689
        %v4691 = vrot.slane %v4690, 2
        %v4692 = vmax.f32 %v4690, %v4691
        %v4693 = vrot.slane %v4692, 1
        %v4694 = vmax.f32 %v4692, %v4693
        %v4695 = vsel %vm4561, %v4309, -inf
        %v4696 = vrot.slane %v4695, 4
        %v4697 = vmax.f32 %v4695, %v4696
        %v4698 = vrot.slane %v4697, 2
        %v4699 = vmax.f32 %v4697, %v4698
        %v4700 = vrot.slane %v4699, 1
        %v4701 = vmax.f32 %v4699, %v4700
        %v4702 = vsel %vm4561, %v4317, -inf
        %v4703 = vrot.slane %v4702, 4
        %v4704 = vmax.f32 %v4702, %v4703
        %v4705 = vrot.slane %v4704, 2
        %v4706 = vmax.f32 %v4704, %v4705
        %v4707 = vrot.slane %v4706, 1
        %v4708 = vmax.f32 %v4706, %v4707
        %v4709 = vsel %vm4561, %v4325, -inf
        %v4710 = vrot.slane %v4709, 4
        %v4711 = vmax.f32 %v4709, %v4710
        %v4712 = vrot.slane %v4711, 2
        %v4713 = vmax.f32 %v4711, %v4712
        %v4714 = vrot.slane %v4713, 1
        %v4715 = vmax.f32 %v4713, %v4714
        %v4716 = vsel %vm4561, %v4324, -inf
        %v4717 = vrot.slane %v4716, 4
        %v4718 = vmax.f32 %v4716, %v4717
        %v4719 = vrot.slane %v4718, 2
        %v4720 = vmax.f32 %v4718, %v4719
        %v4721 = vrot.slane %v4720, 1
        %v4722 = vmax.f32 %v4720, %v4721
        %v4723 = vsel %vm4561, %v4326, -inf
        %v4724 = vrot.slane %v4723, 4
        %v4725 = vmax.f32 %v4723, %v4724
        %v4726 = vrot.slane %v4725, 2
        %v4727 = vmax.f32 %v4725, %v4726
        %v4728 = vrot.slane %v4727, 1
        %v4729 = vmax.f32 %v4727, %v4728
        %v4730 = vsel %vm4561, %v4334, -inf
        %v4731 = vrot.slane %v4730, 4
        %v4732 = vmax.f32 %v4730, %v4731
        %v4733 = vrot.slane %v4732, 2
        %v4734 = vmax.f32 %v4732, %v4733
        %v4735 = vrot.slane %v4734, 1
        %v4736 = vmax.f32 %v4734, %v4735
        %v4737 = vsel %vm4561, %v4342, -inf
        %v4738 = vrot.slane %v4737, 4
        %v4739 = vmax.f32 %v4737, %v4738
        %v4740 = vrot.slane %v4739, 2
        %v4741 = vmax.f32 %v4739, %v4740
        %v4742 = vrot.slane %v4741, 1
        %v4743 = vmax.f32 %v4741, %v4742
        %v4744 = vsel %vm4561, %v4341, -inf
        %v4745 = vrot.slane %v4744, 4
        %v4746 = vmax.f32 %v4744, %v4745
        %v4747 = vrot.slane %v4746, 2
        %v4748 = vmax.f32 %v4746, %v4747
        %v4749 = vrot.slane %v4748, 1
        %v4750 = vmax.f32 %v4748, %v4749
        %v4751 = vsel %vm4561, %v4343, -inf
        %v4752 = vrot.slane %v4751, 4
        %v4753 = vmax.f32 %v4751, %v4752
        %v4754 = vrot.slane %v4753, 2
        %v4755 = vmax.f32 %v4753, %v4754
        %v4756 = vrot.slane %v4755, 1
        %v4757 = vmax.f32 %v4755, %v4756
        %v4758 = vsel %vm4561, %v4351, -inf
        %v4759 = vrot.slane %v4758, 4
        %v4760 = vmax.f32 %v4758, %v4759
        %v4761 = vrot.slane %v4760, 2
        %v4762 = vmax.f32 %v4760, %v4761
        %v4763 = vrot.slane %v4762, 1
        %v4764 = vmax.f32 %v4762, %v4763
        %v4765 = vsel %vm4561, %v4359, -inf
        %v4766 = vrot.slane %v4765, 4
        %v4767 = vmax.f32 %v4765, %v4766
        %v4768 = vrot.slane %v4767, 2
        %v4769 = vmax.f32 %v4767, %v4768
        %v4770 = vrot.slane %v4769, 1
        %v4771 = vmax.f32 %v4769, %v4770
        %v4772 = vsel %vm4561, %v4358, -inf
        %v4773 = vrot.slane %v4772, 4
        %v4774 = vmax.f32 %v4772, %v4773
        %v4775 = vrot.slane %v4774, 2
        %v4776 = vmax.f32 %v4774, %v4775
        %v4777 = vrot.slane %v4776, 1
        %v4778 = vmax.f32 %v4776, %v4777
        %v4779 = vsel %vm4561, %v4360, -inf
        %v4780 = vrot.slane %v4779, 4
        %v4781 = vmax.f32 %v4779, %v4780
        %v4782 = vrot.slane %v4781, 2
        %v4783 = vmax.f32 %v4781, %v4782
        %v4784 = vrot.slane %v4783, 1
        %v4785 = vmax.f32 %v4783, %v4784
        %v4786 = vsel %vm4561, %v4368, -inf
        %v4787 = vrot.slane %v4786, 4
        %v4788 = vmax.f32 %v4786, %v4787
        %v4789 = vrot.slane %v4788, 2
        %v4790 = vmax.f32 %v4788, %v4789
        %v4791 = vrot.slane %v4790, 1
        %v4792 = vmax.f32 %v4790, %v4791
        %v4793 = vsel %vm4561, %v4376, -inf
        %v4794 = vrot.slane %v4793, 4
        %v4795 = vmax.f32 %v4793, %v4794
        %v4796 = vrot.slane %v4795, 2
        %v4797 = vmax.f32 %v4795, %v4796
        %v4798 = vrot.slane %v4797, 1
        %v4799 = vmax.f32 %v4797, %v4798
        %v4800 = vsel %vm4561, %v4375, -inf
        %v4801 = vrot.slane %v4800, 4
        %v4802 = vmax.f32 %v4800, %v4801
        %v4803 = vrot.slane %v4802, 2
        %v4804 = vmax.f32 %v4802, %v4803
        %v4805 = vrot.slane %v4804, 1
        %v4806 = vmax.f32 %v4804, %v4805
        %v4807 = vsel %vm4561, %v4377, -inf
        %v4808 = vrot.slane %v4807, 4
        %v4809 = vmax.f32 %v4807, %v4808
        %v4810 = vrot.slane %v4809, 2
        %v4811 = vmax.f32 %v4809, %v4810
        %v4812 = vrot.slane %v4811, 1
        %v4813 = vmax.f32 %v4811, %v4812
        %v4814 = vsel %vm4561, %v4385, -inf
        %v4815 = vrot.slane %v4814, 4
        %v4816 = vmax.f32 %v4814, %v4815
        %v4817 = vrot.slane %v4816, 2
        %v4818 = vmax.f32 %v4816, %v4817
        %v4819 = vrot.slane %v4818, 1
        %v4820 = vmax.f32 %v4818, %v4819
        %v4821 = vsel %vm4561, %v4393, -inf
        %v4822 = vrot.slane %v4821, 4
        %v4823 = vmax.f32 %v4821, %v4822
        %v4824 = vrot.slane %v4823, 2
        %v4825 = vmax.f32 %v4823, %v4824
        %v4826 = vrot.slane %v4825, 1
        %v4827 = vmax.f32 %v4825, %v4826
        %v4828 = vsel %vm4561, %v4392, -inf
        %v4829 = vrot.slane %v4828, 4
        %v4830 = vmax.f32 %v4828, %v4829
        %v4831 = vrot.slane %v4830, 2
        %v4832 = vmax.f32 %v4830, %v4831
        %v4833 = vrot.slane %v4832, 1
        %v4834 = vmax.f32 %v4832, %v4833
        %v4835 = vsel %vm4561, %v4394, -inf
        %v4836 = vrot.slane %v4835, 4
        %v4837 = vmax.f32 %v4835, %v4836
        %v4838 = vrot.slane %v4837, 2
        %v4839 = vmax.f32 %v4837, %v4838
        %v4840 = vrot.slane %v4839, 1
        %v4841 = vmax.f32 %v4839, %v4840
        %v4842 = vsel %vm4561, %v4402, -inf
        %v4843 = vrot.slane %v4842, 4
        %v4844 = vmax.f32 %v4842, %v4843
        %v4845 = vrot.slane %v4844, 2
        %v4846 = vmax.f32 %v4844, %v4845
        %v4847 = vrot.slane %v4846, 1
        %v4848 = vmax.f32 %v4846, %v4847
        %v4849 = vsel %vm4561, %v4410, -inf
        %v4850 = vrot.slane %v4849, 4
        %v4851 = vmax.f32 %v4849, %v4850
        %v4852 = vrot.slane %v4851, 2
        %v4853 = vmax.f32 %v4851, %v4852
        %v4854 = vrot.slane %v4853, 1
        %v4855 = vmax.f32 %v4853, %v4854
        %v4856 = vsel %vm4561, %v4409, -inf
        %v4857 = vrot.slane %v4856, 4
        %v4858 = vmax.f32 %v4856, %v4857
        %v4859 = vrot.slane %v4858, 2
        %v4860 = vmax.f32 %v4858, %v4859
        %v4861 = vrot.slane %v4860, 1
        %v4862 = vmax.f32 %v4860, %v4861
        %v4863 = vsel %vm4561, %v4411, -inf
        %v4864 = vrot.slane %v4863, 4
        %v4865 = vmax.f32 %v4863, %v4864
        %v4866 = vrot.slane %v4865, 2
        %v4867 = vmax.f32 %v4865, %v4866
        %v4868 = vrot.slane %v4867, 1
        %v4869 = vmax.f32 %v4867, %v4868
        %v4870 = vsel %vm4561, %v4419, -inf
        %v4871 = vrot.slane %v4870, 4
        %v4872 = vmax.f32 %v4870, %v4871
        %v4873 = vrot.slane %v4872, 2
        %v4874 = vmax.f32 %v4872, %v4873
        %v4875 = vrot.slane %v4874, 1
        %v4876 = vmax.f32 %v4874, %v4875
        %v4877 = vsel %vm4561, %v4427, -inf
        %v4878 = vrot.slane %v4877, 4
        %v4879 = vmax.f32 %v4877, %v4878
        %v4880 = vrot.slane %v4879, 2
        %v4881 = vmax.f32 %v4879, %v4880
        %v4882 = vrot.slane %v4881, 1
        %v4883 = vmax.f32 %v4881, %v4882
        %v4884 = vsel %vm4561, %v4426, -inf
        %v4885 = vrot.slane %v4884, 4
        %v4886 = vmax.f32 %v4884, %v4885
        %v4887 = vrot.slane %v4886, 2
        %v4888 = vmax.f32 %v4886, %v4887
        %v4889 = vrot.slane %v4888, 1
        %v4890 = vmax.f32 %v4888, %v4889
        %v4891 = vsel %vm4561, %v4428, -inf
        %v4892 = vrot.slane %v4891, 4
        %v4893 = vmax.f32 %v4891, %v4892
        %v4894 = vrot.slane %v4893, 2
        %v4895 = vmax.f32 %v4893, %v4894
        %v4896 = vrot.slane %v4895, 1
        %v4897 = vmax.f32 %v4895, %v4896
        %v4898 = vsel %vm4561, %v4436, -inf
        %v4899 = vrot.slane %v4898, 4
        %v4900 = vmax.f32 %v4898, %v4899
        %v4901 = vrot.slane %v4900, 2
        %v4902 = vmax.f32 %v4900, %v4901
        %v4903 = vrot.slane %v4902, 1
        %v4904 = vmax.f32 %v4902, %v4903
        %v4905 = vsel %vm4561, %v4444, -inf
        %v4906 = vrot.slane %v4905, 4
        %v4907 = vmax.f32 %v4905, %v4906
        %v4908 = vrot.slane %v4907, 2
        %v4909 = vmax.f32 %v4907, %v4908
        %v4910 = vrot.slane %v4909, 1
        %v4911 = vmax.f32 %v4909, %v4910
        %v4912 = vsel %vm4561, %v4443, -inf
        %v4913 = vrot.slane %v4912, 4
        %v4914 = vmax.f32 %v4912, %v4913
        %v4915 = vrot.slane %v4914, 2
        %v4916 = vmax.f32 %v4914, %v4915
        %v4917 = vrot.slane %v4916, 1
        %v4918 = vmax.f32 %v4916, %v4917
        %v4919 = vsel %vm4561, %v4445, -inf
        %v4920 = vrot.slane %v4919, 4
        %v4921 = vmax.f32 %v4919, %v4920
        %v4922 = vrot.slane %v4921, 2
        %v4923 = vmax.f32 %v4921, %v4922
        %v4924 = vrot.slane %v4923, 1
        %v4925 = vmax.f32 %v4923, %v4924
        %v4926 = vsel %vm4561, %v4453, -inf
        %v4927 = vrot.slane %v4926, 4
        %v4928 = vmax.f32 %v4926, %v4927
        %v4929 = vrot.slane %v4928, 2
        %v4930 = vmax.f32 %v4928, %v4929
        %v4931 = vrot.slane %v4930, 1
        %v4932 = vmax.f32 %v4930, %v4931
        %v4933 = vsel %vm4561, %v4461, -inf
        %v4934 = vrot.slane %v4933, 4
        %v4935 = vmax.f32 %v4933, %v4934
        %v4936 = vrot.slane %v4935, 2
        %v4937 = vmax.f32 %v4935, %v4936
        %v4938 = vrot.slane %v4937, 1
        %v4939 = vmax.f32 %v4937, %v4938
        %v4940 = vsel %vm4561, %v4460, -inf
        %v4941 = vrot.slane %v4940, 4
        %v4942 = vmax.f32 %v4940, %v4941
        %v4943 = vrot.slane %v4942, 2
        %v4944 = vmax.f32 %v4942, %v4943
        %v4945 = vrot.slane %v4944, 1
        %v4946 = vmax.f32 %v4944, %v4945
        %v4947 = vsel %vm4561, %v4462, -inf
        %v4948 = vrot.slane %v4947, 4
        %v4949 = vmax.f32 %v4947, %v4948
        %v4950 = vrot.slane %v4949, 2
        %v4951 = vmax.f32 %v4949, %v4950
        %v4952 = vrot.slane %v4951, 1
        %v4953 = vmax.f32 %v4951, %v4952
        %v4954 = vsel %vm4561, %v4470, -inf
        %v4955 = vrot.slane %v4954, 4
        %v4956 = vmax.f32 %v4954, %v4955
        %v4957 = vrot.slane %v4956, 2
        %v4958 = vmax.f32 %v4956, %v4957
        %v4959 = vrot.slane %v4958, 1
        %v4960 = vmax.f32 %v4958, %v4959
        %v4961 = vsel %vm4561, %v4478, -inf
        %v4962 = vrot.slane %v4961, 4
        %v4963 = vmax.f32 %v4961, %v4962
        %v4964 = vrot.slane %v4963, 2
        %v4965 = vmax.f32 %v4963, %v4964
        %v4966 = vrot.slane %v4965, 1
        %v4967 = vmax.f32 %v4965, %v4966
        %v4968 = vsel %vm4561, %v4477, -inf
        %v4969 = vrot.slane %v4968, 4
        %v4970 = vmax.f32 %v4968, %v4969
        %v4971 = vrot.slane %v4970, 2
        %v4972 = vmax.f32 %v4970, %v4971
        %v4973 = vrot.slane %v4972, 1
        %v4974 = vmax.f32 %v4972, %v4973
        %v4975 = vsel %vm4561, %v4479, -inf
        %v4976 = vrot.slane %v4975, 4
        %v4977 = vmax.f32 %v4975, %v4976
        %v4978 = vrot.slane %v4977, 2
        %v4979 = vmax.f32 %v4977, %v4978
        %v4980 = vrot.slane %v4979, 1
        %v4981 = vmax.f32 %v4979, %v4980
        %v4982 = vsel %vm4561, %v4487, -inf
        %v4983 = vrot.slane %v4982, 4
        %v4984 = vmax.f32 %v4982, %v4983
        %v4985 = vrot.slane %v4984, 2
        %v4986 = vmax.f32 %v4984, %v4985
        %v4987 = vrot.slane %v4986, 1
        %v4988 = vmax.f32 %v4986, %v4987
        %v4989 = vsel %vm4561, %v4495, -inf
        %v4990 = vrot.slane %v4989, 4
        %v4991 = vmax.f32 %v4989, %v4990
        %v4992 = vrot.slane %v4991, 2
        %v4993 = vmax.f32 %v4991, %v4992
        %v4994 = vrot.slane %v4993, 1
        %v4995 = vmax.f32 %v4993, %v4994
        %v4996 = vsel %vm4561, %v4494, -inf
        %v4997 = vrot.slane %v4996, 4
        %v4998 = vmax.f32 %v4996, %v4997
        %v4999 = vrot.slane %v4998, 2
        %v5000 = vmax.f32 %v4998, %v4999
        %v5001 = vrot.slane %v5000, 1
        %v5002 = vmax.f32 %v5000, %v5001
        %v5003 = vsel %vm4561, %v4496, -inf
        %v5004 = vrot.slane %v5003, 4
        %v5005 = vmax.f32 %v5003, %v5004
        %v5006 = vrot.slane %v5005, 2
        %v5007 = vmax.f32 %v5005, %v5006
        %v5008 = vrot.slane %v5007, 1
        %v5009 = vmax.f32 %v5007, %v5008
        %vm5074 = vcmask 1041409
        %v5075 = vsel %vm5074, %v4575, %v4568
        %vm5076 = vcmask 1042434
        %v5077 = vsel %vm5076, %v4582, %v5075
        %vm5078 = vcmask 1043459
        %v5079 = vsel %vm5078, %v4589, %v5077
        %vm5080 = vcmask 1044484
        %v5081 = vsel %vm5080, %v4596, %v5079
        %vm5082 = vcmask 1045509
        %v5083 = vsel %vm5082, %v4603, %v5081
        %vm5084 = vcmask 1046534
        %v5085 = vsel %vm5084, %v4610, %v5083
        %vm5086 = vcmask 1047559
        %v5087 = vsel %vm5086, %v4617, %v5085
        %v5088 = vsel %vm5074, %v4631, %v4624
        %v5089 = vsel %vm5076, %v4638, %v5088
        %v5090 = vsel %vm5078, %v4645, %v5089
        %v5091 = vsel %vm5080, %v4652, %v5090
        %v5092 = vsel %vm5082, %v4659, %v5091
        %v5093 = vsel %vm5084, %v4666, %v5092
        %v5094 = vsel %vm5086, %v4673, %v5093
        %v5095 = vsel %vm5074, %v4687, %v4680
        %v5096 = vsel %vm5076, %v4694, %v5095
        %v5097 = vsel %vm5078, %v4701, %v5096
        %v5098 = vsel %vm5080, %v4708, %v5097
        %v5099 = vsel %vm5082, %v4715, %v5098
        %v5100 = vsel %vm5084, %v4722, %v5099
        %v5101 = vsel %vm5086, %v4729, %v5100
        %v5102 = vsel %vm5074, %v4743, %v4736
        %v5103 = vsel %vm5076, %v4750, %v5102
        %v5104 = vsel %vm5078, %v4757, %v5103
        %v5105 = vsel %vm5080, %v4764, %v5104
        %v5106 = vsel %vm5082, %v4771, %v5105
        %v5107 = vsel %vm5084, %v4778, %v5106
        %v5108 = vsel %vm5086, %v4785, %v5107
        %v5109 = vsel %vm5074, %v4799, %v4792
        %v5110 = vsel %vm5076, %v4806, %v5109
        %v5111 = vsel %vm5078, %v4813, %v5110
        %v5112 = vsel %vm5080, %v4820, %v5111
        %v5113 = vsel %vm5082, %v4827, %v5112
        %v5114 = vsel %vm5084, %v4834, %v5113
        %v5115 = vsel %vm5086, %v4841, %v5114
        %v5116 = vsel %vm5074, %v4855, %v4848
        %v5117 = vsel %vm5076, %v4862, %v5116
        %v5118 = vsel %vm5078, %v4869, %v5117
        %v5119 = vsel %vm5080, %v4876, %v5118
        %v5120 = vsel %vm5082, %v4883, %v5119
        %v5121 = vsel %vm5084, %v4890, %v5120
        %v5122 = vsel %vm5086, %v4897, %v5121
        %v5123 = vsel %vm5074, %v4911, %v4904
        %v5124 = vsel %vm5076, %v4918, %v5123
        %v5125 = vsel %vm5078, %v4925, %v5124
        %v5126 = vsel %vm5080, %v4932, %v5125
        %v5127 = vsel %vm5082, %v4939, %v5126
        %v5128 = vsel %vm5084, %v4946, %v5127
        %v5129 = vsel %vm5086, %v4953, %v5128
        %v5130 = vsel %vm5074, %v4967, %v4960
        %v5131 = vsel %vm5076, %v4974, %v5130
        %v5132 = vsel %vm5078, %v4981, %v5131
        %v5133 = vsel %vm5080, %v4988, %v5132
        %v5134 = vsel %vm5082, %v4995, %v5133
        %v5135 = vsel %vm5084, %v5002, %v5134
        %v5136 = vsel %vm5086, %v5009, %v5135
        %5145 = vst.msk [vmem:[%s217] sm:$0xff] %vm3459, %v5087
        %5146 = vst.msk [vmem:[%s217 + $0x8] sm:$0xff] %vm3459, %v5094
        %5147 = vst.msk [vmem:[%s217 + $0x10] sm:$0xff] %vm3459, %v5101
        %5148 = vst.msk [vmem:[%s217 + $0x18] sm:$0xff] %vm3459, %v5108
        %5149 = vst.msk [vmem:[%s217 + $0x20] sm:$0xff] %vm3459, %v5115
        %5150 = vst.msk [vmem:[%s217 + $0x28] sm:$0xff] %vm3459, %v5122
        %5151 = vst.msk [vmem:[%s217 + $0x30] sm:$0xff] %vm3459, %v5129
        %5152 = vst.msk [vmem:[%s217 + $0x38] sm:$0xff] %vm3459, %v5136
        %s5153 = sand.u32 %s137, 1
        %s5154 = scalar_lea.sflag [#allocation5], %s5153
        %s5155 = sand.u32 %s137, 1
        %s5156 = smul.addr %s5155, 64
        %s5157 = scalar_lea.vmem [#allocation4], %s5156
        // Predicated region
        $region41: #{unet_encoder_forward_nhwc.1} parent=39 // pred_check
          %p5158 = pneg %p147
        $region42: #{unet_encoder_forward_nhwc.1} parent=39 // pred_check_branch
          %5160 = sbr.rel (%p5158) target = $region44
        $region43: #{unet_encoder_forward_nhwc.1} parent=39 // pred_region
          %s5162 = ssub.s32 1024, 1024
          %5163 = vsyncadd %s5154, %s5162
          %s5164 = smul.addr %s19, 8
          %s5165 = smul.addr %s5164, 128
          %s5166 = scalar_lea.hbm %s5, %s5165
          %s5167 = sshll.u32 %s5157, 4
          %s5168 = int_to_ptr.vmem [resolvable:$true] %s5167
          %5173 = dma.vmem_to_hbm [thread:$0]  %s5168, 1024, %s5166, %s5154, 128, 128, 8
        $region44: #{unet_encoder_forward_nhwc.1} parent=39 // pred_fallthru
          _
      $region40: #{unet_encoder_forward_nhwc.1} parent=5 // pred_fallthru
        _
      %p5174 = scmp.le.s32.totalorder 2, %s14
      // Predicated region
      $region45: #{unet_encoder_forward_nhwc.1} parent=5 // pred_check
        %p5175 = pneg %p5174
      $region46: #{unet_encoder_forward_nhwc.1} parent=5 // pred_check_branch
        %5177 = sbr.rel (%p5175) target = $region48
      $region47: #{unet_encoder_forward_nhwc.1} parent=5 // pred_region
        %s5178 = ssub.s32 %s14, 2
        // Predicated region
        $region49: #{unet_encoder_forward_nhwc.1} parent=47 // pred_check
          %p5179 = pneg %p153
        $region50: #{unet_encoder_forward_nhwc.1} parent=47 // pred_check_branch
          %5181 = sbr.rel (%p5179) target = $region52
        $region51: #{unet_encoder_forward_nhwc.1} parent=47 // pred_region
          %s5182 = sand.u32 %s138, 1
          %s5183 = scalar_lea.sflag [#allocation5], %s5182
          %s5184 = sand.u32 %s138, 1
          %s5185 = smul.addr %s5184, 64
          %s5186 = scalar_lea.vmem [#allocation4], %s5185
          %5187 = dma.done %s5183, 1024
        $region52: #{unet_encoder_forward_nhwc.1} parent=47 // pred_fallthru
          _
      $region48: #{unet_encoder_forward_nhwc.1} parent=5 // pred_fallthru
        _
    $region6: #{unet_encoder_forward_nhwc.1} parent=1 // loop_footer
      %s18 = sadd.s32 1, %s14
    $region7: #{unet_encoder_forward_nhwc.1} parent=1 // loop_footer_branch
      %13 = sbr.rel target = $region3
    $region8: #{unet_encoder_forward_nhwc.1} parent=1 // loop_exit
      _
    %5188 = vsyncpa [#allocation5], 1
    %s5189 = scalar_lea.sflag [#allocation5], 1
    %5190 = vsyncpa %s5189, 1

</llo_original>
